<compile_context>
chip_gen: v5e
topology: v5e:2x2
jax: 0.10.0
libtpu: 0.0.40
codegen_flags: <defaults>
</compile_context>

<pallas_src>
import functools

import numpy as np
import jax
import jax.numpy as jnp
from jax.experimental import pallas as pl
from jax.experimental.pallas import tpu as pltpu

# ----------------------------- configuration --------------------------------
CHANNELS = 2                # audio channels
J = 2                       # wavelet levels
FREQ = 2 ** J               # freq bands after analysis
LATENT_DIM = 4
LATENT_BITS = 6
NE = 8                      # unused for lightweight_encode=True
ND = 8
M_MULT = ND // LATENT_DIM   # Oobleck channel multiple
HID = LATENT_DIM * M_MULT
LATENT_MAX = 2 ** (LATENT_BITS - 1) - 1 + 0.5 - 0.001
SCALE = (2 ** (LATENT_BITS - 1) - 1) / 1.85
LOSS_W = 128                # lane-dense loss output row width

# internal channel layout is band-major: internal index f*C + c  <->  torch index c*FREQ + f
_PERM = np.array([(i % CHANNELS) * FREQ + (i // CHANNELS)
                  for i in range(CHANNELS * FREQ)])

# -------------------- bior4.4 filters (pywt convention) ---------------------
_DEC_LO = np.array([0.0, 0.03782845550726404, -0.023849465019556843,
                    -0.11062440441843718, 0.37740285561283066, 0.8526986790088938,
                    0.37740285561283066, -0.11062440441843718,
                    -0.023849465019556843, 0.03782845550726404])
_DEC_HI = np.array([0.0, -0.06453888262869706, 0.04068941760916406,
                    0.41809227322161724, -0.7884856164055829, 0.41809227322161724,
                    0.04068941760916406, -0.06453888262869706, 0.0, 0.0])
_REC_LO = np.array([0.0, -0.06453888262869706, -0.04068941760916406,
                    0.41809227322161724, 0.7884856164055829, 0.41809227322161724,
                    -0.04068941760916406, -0.06453888262869706, 0.0, 0.0])
_REC_HI = np.array([0.0, -0.03782845550726404, -0.023849465019556843,
                    0.11062440441843718, 0.37740285561283066, -0.8526986790088938,
                    0.37740285561283066, 0.11062440441843718,
                    -0.023849465019556843, -0.03782845550726404])


def _afb_matrix(N):
    """Analysis operator A (N, N): x @ A == concat([lowpass, highpass]) (periodization)."""
    Lf = len(_DEC_LO)
    L2 = Lf // 2
    N2 = N // 2
    g0 = _DEC_LO[::-1]          # pytorch_wavelets flips analysis filters (conv==correlation)
    g1 = _DEC_HI[::-1]
    x = np.eye(N)
    xr = np.roll(x, -L2, axis=-1)
    xp = np.pad(xr, ((0, 0), (Lf - 1, Lf - 1)))
    n_out = (N + Lf - 2) // 2 + 1
    lo = np.zeros((N, n_out))
    hi = np.zeros((N, n_out))
    for m in range(n_out):
        win = xp[:, 2 * m:2 * m + Lf]
        lo[:, m] = win @ g0
        hi[:, m] = win @ g1
    lo[:, :L2] += lo[:, N2:N2 + L2]
    hi[:, :L2] += hi[:, N2:N2 + L2]
    return np.concatenate([lo[:, :N2], hi[:, :N2]], axis=1)


def _sfb_matrix(N):
    """Synthesis operator S (N, N): concat([lowpass, highpass]) @ S == signal (length N)."""
    Lf = len(_REC_LO)
    N2 = N // 2

    def one(g):
        y = np.zeros((N2, 2 * N2 - 2 + Lf))
        eye = np.eye(N2)
        for m in range(N2):
            y[:, 2 * m:2 * m + Lf] += eye[:, m:m + 1] * g[None, :]
        y[:, :Lf - 2] += y[:, N:N + Lf - 2]
        y = y[:, :N]
        return np.roll(y, 1 - Lf // 2, axis=-1)

    return np.concatenate([one(_REC_LO), one(_REC_HI)], axis=0)


# TODO(synk): combined band operators below hard-code J=2 (the configured value) and are
# dense O(L^2); for large L they should become cascaded 10-tap stride-2 AFB/SFB convs.
def _analysis_bands(L):
    """(4, L, L/4): band f (torch band index 2*f1+f2) of a length-L row = row @ M[f]."""
    A1 = _afb_matrix(L)
    A2 = _afb_matrix(L // 2)
    lo1, hi1 = A1[:, :L // 2], A1[:, L // 2:]
    lo2, hi2 = A2[:, :L // 4], A2[:, L // 4:]
    return np.stack([lo1 @ lo2, lo1 @ hi2, hi1 @ lo2, hi1 @ hi2], axis=0)


def _synthesis_bands(L):
    """(4, L/4, L): signal = sum_f band_f @ S[f] (exact inverse of _analysis_bands)."""
    S1 = _sfb_matrix(L)
    S2 = _sfb_matrix(L // 2)
    s2lo, s2hi = S2[:L // 4, :], S2[L // 4:, :]
    s1lo, s1hi = S1[:L // 2, :], S1[L // 2:, :]
    return np.stack([s2lo @ s1lo, s2hi @ s1lo, s2lo @ s1hi, s2hi @ s1hi], axis=0)


# --------------------------- in-kernel math helpers ---------------------------
_TWO_PI_HI = 6.28125                       # 2*pi split (Cody-Waite), hi exactly representable
_TWO_PI_LO = 0.0019353071795864769
_SQRT1_2 = 0.7071067811865476


def _sin(t):
    """sin(t) from mul/add/floor/where only (Mosaic-safe); Cody-Waite range reduction."""
    k = jnp.floor(t * (1.0 / (2.0 * np.pi)) + 0.5)
    r = (t - k * _TWO_PI_HI) - k * _TWO_PI_LO            # r in [-pi, pi)
    r = jnp.where(r > 0.5 * np.pi, np.pi - r, r)
    r = jnp.where(r < -0.5 * np.pi, -np.pi - r, r)       # r in [-pi/2, pi/2]
    r2 = r * r
    return r * (1.0 + r2 * (-1.0 / 6.0 + r2 * (1.0 / 120.0 + r2 * (-1.0 / 5040.0
               + r2 * (1.0 / 362880.0 - r2 * (1.0 / 39916800.0))))))


def _snake(h, alpha, inv_beta):
    """diffusers Snake1d (logscale): h + 1/(exp(b)+1e-9) * sin(exp(a)*h)^2 (pre-exp'd)."""
    s = _sin(alpha * h)
    return h + inv_beta * (s * s)


def _erf(x):
    """Abramowitz & Stegun 7.1.26, |abs err| < 1.5e-7 (uses exp only -> EUP)."""
    a1, a2, a3, a4, a5 = 0.254829592, -0.284496736, 1.421413741, -1.453152027, 1.061405429
    p = 0.3275911
    ax = jnp.abs(x)
    t = 1.0 / (1.0 + p * ax)
    poly = ((((a5 * t + a4) * t + a3) * t + a2) * t + a1) * t
    y = 1.0 - poly * jnp.exp(-ax * ax)
    return jnp.where(x < 0.0, -y, y)


def _ndtr(x):
    """Standard normal CDF."""
    return 0.5 * (1.0 + _erf(x * _SQRT1_2))


def _ndtri(p):
    """Acklam's inverse normal CDF (|rel err| ~1e-9); inputs are pre-clamped to [1e-4, 0.9999]."""
    a1, a2, a3, a4, a5, a6 = (-3.969683028665376e+01, 2.209460984245205e+02,
                              -2.759285104469687e+02, 1.383577518672690e+02,
                              -3.066479806614716e+01, 2.506628277459239e+00)
    b1, b2, b3, b4, b5 = (-5.447609879822406e+01, 1.615858368580409e+02,
                          -1.556989798598866e+02, 6.680131188771972e+01,
                          -1.328068155288572e+01)
    c1, c2, c3, c4, c5, c6 = (-7.784894002430293e-03, -3.223964580411365e-01,
                              -2.400758277161838e+00, -2.549732539343734e+00,
                              4.374664141464968e+00, 2.938163982698783e+00)
    d1, d2, d3, d4 = (7.784695709041462e-03, 3.224671290700398e-01,
                      2.445134137142996e+00, 3.754408661907416e+00)
    p_low = 0.02425
    # central region
    q = p - 0.5
    r = q * q
    num_c = ((((a1 * r + a2) * r + a3) * r + a4) * r + a5) * r + a6
    den_c = ((((b1 * r + b2) * r + b3) * r + b4) * r + b5) * r + 1.0
    x_c = q * num_c / den_c
    # tails (branchless on min(p, 1-p); safe since p is clamped away from 0/1)
    pt = jnp.minimum(p, 1.0 - p)
    ql = jnp.sqrt(-2.0 * jnp.log(pt))
    num_t = ((((c1 * ql + c2) * ql + c3) * ql + c4) * ql + c5) * ql + c6
    den_t = (((d1 * ql + d2) * ql + d3) * ql + d4) * ql + 1.0
    x_t = num_t / den_t                     # lower-tail (negative) value
    x_t = jnp.where(p > 0.5, -x_t, x_t)
    return jnp.where((p < p_low) | (p > 1.0 - p_low), x_t, x_c)


def _round_half_even(x):
    """torch.round semantics (half-to-even) from floor/where only."""
    f = jnp.floor(x)
    frac = x - f
    half_up = jnp.floor(x + 0.5)
    f_is_even = (f - 2.0 * jnp.floor(f * 0.5)) == 0.0
    tie = jnp.where(f_is_even, f, f + 1.0)
    return jnp.where(frac == 0.5, tie, half_up)


def _to_uniform(x):
    x = x * (1.0 / SCALE)
    x = _ndtr(x)
    return 2.0 * LATENT_MAX * (x - 0.5)


def _to_normal(x):
    x = x * (1.0 / (2.0 * LATENT_MAX)) + 0.5
    x = jnp.clip(x, 0.0001, 0.9999)         # Hardtanh(1e-4, 0.9999)
    return SCALE * _ndtri(x)


def _conv(x, w_flat, bias, K, dilation, padding):
    """PyTorch Conv1d (stride=1) as ONE f32 im2col dot; x (Cin, L), w_flat (Cout, K*Cin)."""
    Cin = x.shape[0]
    if padding > 0:
        z = jnp.zeros((Cin, padding), x.dtype)
        x = jnp.concatenate([z, x, z], axis=1)
    Lout = x.shape[1] - dilation * (K - 1)
    if K == 1:
        col = x
    else:
        col = jnp.concatenate(
            [x[:, k * dilation:k * dilation + Lout] for k in range(K)], axis=0)
    out = jnp.dot(w_flat, col, preferred_element_type=jnp.float32)
    if bias is not None:
        out = out + bias
    return out


def _res_unit(h, pre, dil, P):
    y = _snake(h, P(pre + "s1a"), P(pre + "s1ib"))
    y = _conv(y, P(pre + "c1w"), P(pre + "c1b"), K=7, dilation=dil, padding=3 * dil)
    y = _snake(y, P(pre + "s2a"), P(pre + "s2ib"))
    y = _conv(y, P(pre + "c2w"), P(pre + "c2b"), K=1, dilation=1, padding=0)
    return h + y                                   # equal lengths -> no crop


def _dec_block(h, pre, P):
    h = _snake(h, P(pre + "sa"), P(pre + "sib"))
    # ConvTranspose1d(k=2, s=1, p=1) rewritten as an ordinary 2-tap valid conv
    h = _conv(h, P(pre + "ctw"), P(pre + "ctb"), K=2, dilation=1, padding=0)
    for j, dil in ((0, 1), (1, 3), (2, 9)):
        h = _res_unit(h, pre + "r%d_" % j, dil, P)
    return h


# ------------------------------ the fused kernel ------------------------------
def _codec_kernel(layout, x_ref, bands_ref, wpack_ref, xhat_ref, loss_ref):
    """Analysis + encoder + entropy bottleneck + OobleckDecoder + synthesis + losses."""
    C = x_ref.shape[1]
    L = x_ref.shape[2]
    L4 = L // FREQ

    x = x_ref[0]                                   # (C, L)
    W = wpack_ref[...]                             # (8, Wcols) packed params, loaded once

    def P(name):
        off, r, c = layout[name]
        return W[:r, off:off + c]

    man = bands_ref[:, :L]                         # (L, FREQ*L4) stacked analysis operator
    msyn = bands_ref[:, L:]                        # (FREQ*L4, L) stacked synthesis operator

    # ---- wavelet analysis (J=2): one lane-dense MXU dot + cheap relayout ----
    Xf = jnp.dot(x, man, preferred_element_type=jnp.float32)          # (C, FREQ*L4)
    X = jnp.concatenate([Xf[:, f * L4:(f + 1) * L4] for f in range(FREQ)],
                        axis=0)                                       # (FREQ*C, L4) band-major

    # ---- encoder: Conv1d(k=1, pad=1); edge columns of the padded output are bias ----
    benc = P("enc_b")                                                 # (D, 1)
    ymid = jnp.dot(P("enc_w"), X, preferred_element_type=jnp.float32) + benc
    ypre = jnp.concatenate([benc, ymid, benc], axis=1)                # (D, L4+2)

    # ---- entropy bottleneck (eval-mode Round), fully in-kernel ----
    # TODO(synk): training-mode Round adds U(-0.5,0.5) noise; eval-mode round implemented.
    z = _to_normal(_round_half_even(_to_uniform(ypre)))               # (D, L4+2)

    # ---- OobleckDecoder ----
    h = _conv(z, P("d_c1_w"), P("d_c1_b"), K=7, dilation=1, padding=3)
    h = _dec_block(h, "b0_", P)
    h = _dec_block(h, "b1_", P)
    h = _snake(h, P("d_sa"), P("d_sib"))
    Xh = _conv(h, P("d_c2_w"), None, K=7, dilation=1, padding=3)      # (FREQ*C, L4)

    # ---- tf_loss partial sum (both tensors in the same band-major layout) ----
    dX = X - Xh
    tf_ssq = jnp.sum(jnp.sum(dX * dX, axis=1, keepdims=True), axis=0, keepdims=True)

    # ---- wavelet synthesis (J=2): relayout + one lane-dense MXU dot ----
    Xh_flat = jnp.concatenate(
        [Xh[f * CHANNELS:(f + 1) * CHANNELS, :] for f in range(FREQ)], axis=1)  # (C, FREQ*L4)
    xh = jnp.dot(Xh_flat, msyn, preferred_element_type=jnp.float32)   # (C, L)

    # rec_loss uses the UN-clamped x_hat (matches torch: F.mse_loss(x, x_hat))
    d = x - xh
    rec_ssq = jnp.sum(jnp.sum(d * d, axis=1, keepdims=True), axis=0, keepdims=True)

    xhat_ref[0] = jnp.clip(xh, -0.5, 0.5)                             # Hardtanh(-0.5, 0.5)
    lane = jax.lax.broadcasted_iota(jnp.int32, (1, LOSS_W), 1)
    loss_ref[0] = (rec_ssq * (lane == 0).astype(jnp.float32)
                   + tf_ssq * (lane == 1).astype(jnp.float32))


# ------------------------------ pallas_call wrapper ---------------------------
def build_forward(layout):
    def forward(x, bands, wpack):
        B, C, L = x.shape
        kernel = functools.partial(_codec_kernel, layout)
        x_hat, losses = pl.pallas_call(
            kernel,
            grid=(B,),
            in_specs=[
                pl.BlockSpec((1, C, L), lambda i: (i, 0, 0)),
                pl.BlockSpec(bands.shape, lambda i: (0, 0)),     # constant, DMA'd once
                pl.BlockSpec(wpack.shape, lambda i: (0, 0)),     # constant, DMA'd once
            ],
            out_specs=(
                pl.BlockSpec((1, C, L), lambda i: (i, 0, 0)),
                pl.BlockSpec((1, 1, LOSS_W), lambda i: (i, 0, 0)),
            ),
            out_shape=(
                jax.ShapeDtypeStruct((B, C, L), jnp.float32),
                jax.ShapeDtypeStruct((B, 1, LOSS_W), jnp.float32),
            ),
            compiler_params=pltpu.CompilerParams(
                dimension_semantics=("parallel",)),
            cost_estimate=pl.CostEstimate(flops=700_000, transcendentals=2_000,
                                          bytes_accessed=300_000),
        )(x, bands, wpack)
        rec_loss = jnp.sum(losses[:, 0, 0]) / (B * C * L)
        tf_loss = jnp.sum(losses[:, 0, 1]) / (B * FREQ * CHANNELS * (L // FREQ))
        # TODO(synk): post_filter branch not implemented (config uses post_filter=False).
        return x_hat, rec_loss, tf_loss
    return forward


# ------------------------------ parameter packing -----------------------------
def _conv_flat(w):            # (Cout, Cin, K) -> (Cout, K*Cin), k-major blocks
    w = np.asarray(w, np.float32)
    return np.transpose(w, (0, 2, 1)).reshape(w.shape[0], -1)


def _convT_flat(w):           # torch (Cin, Cout, 2) -> equivalent 2-tap conv (Cout, 2*Cin)
    w = np.asarray(w, np.float32)
    return np.concatenate([w[:, :, 1].T, w[:, :, 0].T], axis=1)


def _snake_prep(a, b):
    a = np.asarray(a, np.float32).reshape(-1, 1)
    b = np.asarray(b, np.float32).reshape(-1, 1)
    return np.exp(a), 1.0 / (np.exp(b) + 1e-9)


class _Packer:
    """Packs all small parameters into one (rows, N*128) f32 array + static layout dict."""

    def __init__(self, rows):
        self.rows = rows
        self.chunks = []
        self.layout = {}
        self.off = 0

    def add(self, name, arr):
        arr = np.asarray(arr, np.float32)
        if arr.ndim == 1:
            arr = arr.reshape(-1, 1)
        r, c = arr.shape
        buf = np.zeros((self.rows, c), np.float32)
        buf[:r, :] = arr
        self.chunks.append(buf)
        self.layout[name] = (self.off, r, c)
        self.off += c

    def pack(self):
        w = np.concatenate(self.chunks, axis=1)
        pad = (-w.shape[1]) % 128
        if pad:
            w = np.pad(w, ((0, 0), (0, pad)))
        return jnp.asarray(w), self.layout


def prepare_params(params, L):
    """One-time (outside jit) conversion of torch-layout params into packed kernel layout."""
    assert L % FREQ == 0
    man = _analysis_bands(L)                        # (4, L, L/4)
    msyn = _synthesis_bands(L)                      # (4, L/4, L)
    man_s = np.concatenate(list(man), axis=1)       # (L, FREQ*L4) == (L, L)
    msyn_s = np.concatenate(list(msyn), axis=0)     # (FREQ*L4, L) == (L, L)
    bands = jnp.asarray(np.concatenate([man_s, msyn_s], axis=1), jnp.float32)  # (L, 2L)

    pk = _Packer(rows=max(HID, CHANNELS * FREQ, LATENT_DIM))

    enc_w = np.asarray(params["enc_w"], np.float32)[:, :, 0][:, _PERM]  # cols -> band-major
    pk.add("enc_w", enc_w)
    pk.add("enc_b", np.asarray(params["enc_b"]))

    d = params["dec"]
    pk.add("d_c1_w", _conv_flat(d["c1_w"]))
    pk.add("d_c1_b", np.asarray(d["c1_b"]))

    def add_res(pre, p):
        a1, i1 = _snake_prep(p["s1_a"], p["s1_b"])
        a2, i2 = _snake_prep(p["s2_a"], p["s2_b"])
        pk.add(pre + "s1a", a1); pk.add(pre + "s1ib", i1)
        pk.add(pre + "c1w", _conv_flat(p["c1_w"])); pk.add(pre + "c1b", np.asarray(p["c1_b"]))
        pk.add(pre + "s2a", a2); pk.add(pre + "s2ib", i2)
        pk.add(pre + "c2w", _conv_flat(p["c2_w"])); pk.add(pre + "c2b", np.asarray(p["c2_b"]))

    def add_block(pre, p):
        a, i = _snake_prep(p["s_a"], p["s_b"])
        pk.add(pre + "sa", a); pk.add(pre + "sib", i)
        pk.add(pre + "ctw", _convT_flat(p["ct_w"])); pk.add(pre + "ctb", np.asarray(p["ct_b"]))
        for j, name in enumerate(("res0", "res1", "res2")):
            add_res(pre + "r%d_" % j, p[name])

    add_block("b0_", d["block0"])
    add_block("b1_", d["block1"])
    sa, sib = _snake_prep(d["snake_a"], d["snake_b"])
    pk.add("d_sa", sa); pk.add("d_sib", sib)
    pk.add("d_c2_w", _conv_flat(np.asarray(d["c2_w"], np.float32)[_PERM]))  # rows -> band-major

    wpack, layout = pk.pack()
    return bands, wpack, layout


# ------------------------------ random init (torch layout) --------------------
def init_params(key):
    """Random parameters in torch nn.Module layout (same structure as the reference)."""
    keys = iter(jax.random.split(key, 64))

    def w(shape, scale=0.1):
        return (scale * jax.random.normal(next(keys), shape)).astype(jnp.float32)

    def zeros(shape):
        return jnp.zeros(shape, jnp.float32)

    def res_unit(dim):
        return dict(
            s1_a=zeros((dim,)), s1_b=zeros((dim,)),
            c1_w=w((dim, dim, 7)), c1_b=w((dim,)),
            s2_a=zeros((dim,)), s2_b=zeros((dim,)),
            c2_w=w((dim, dim, 1)), c2_b=w((dim,)),
        )

    def dec_block(cin, cout):
        return dict(
            s_a=zeros((cin,)), s_b=zeros((cin,)),
            ct_w=w((cin, cout, 2)), ct_b=w((cout,)),
            res0=res_unit(cout), res1=res_unit(cout), res2=res_unit(cout),
        )

    return dict(
        enc_w=w((LATENT_DIM, CHANNELS * FREQ, 1)),
        enc_b=w((LATENT_DIM,)),
        dec=dict(
            c1_w=w((HID, LATENT_DIM, 7)), c1_b=w((HID,)),
            block0=dec_block(HID, HID),
            block1=dec_block(HID, LATENT_DIM),
            snake_a=zeros((LATENT_DIM,)), snake_b=zeros((LATENT_DIM,)),
            c2_w=w((CHANNELS * FREQ, LATENT_DIM, 7)),
        ),
    )


# ----------------------------------- main --------------------------------------
if __name__ == "__main__":
    key = jax.random.PRNGKey(0)
    kx, kp = jax.random.split(key)
    B, L = 2, 128
    x = 0.25 * jax.random.normal(kx, (B, CHANNELS, L), dtype=jnp.float32)
    params = init_params(kp)

    # one-time weight preprocessing / packing (outside the jitted forward)
    bands, wpack, layout = prepare_params(params, L)

    fwd = jax.jit(build_forward(layout))
    x_hat_clamped, rec_loss, tf_loss = fwd(x, bands, wpack)
    jax.block_until_ready((x_hat_clamped, rec_loss, tf_loss))

    assert x_hat_clamped.shape == x.shape
    assert rec_loss.shape == () and tf_loss.shape == ()
    assert bool(jnp.isfinite(rec_loss)) and bool(jnp.isfinite(tf_loss))
    print("KERNEL_OK")
</pallas_src>

<mosaic_0001>
module attributes {stable_mosaic.version = 11 : i64} {
  func.func @_codec_kernel(%arg0: i32, %arg1: memref<1x2x128xf32, #tpu.memory_space<vmem>>, %arg2: memref<128x256xf32, #tpu.memory_space<vmem>>, %arg3: memref<8x512xf32, #tpu.memory_space<vmem>>, %arg4: memref<1x2x128xf32, #tpu.memory_space<vmem>>, %arg5: memref<1x1x128xf32, #tpu.memory_space<vmem>>) attributes {dimension_semantics = [#tpu.dimension_semantics<parallel>], iteration_bounds = array<i64: 2>, scalar_prefetch = 0 : i64, scratch_operands = 0 : i64, tpu.core_type = #tpu.core_type<tc>, window_params = [{transform_indices = @transform_0, window_bounds = array<i64: 1, 2, 128>}, {pipeline_mode = #tpu.pipeline_mode<synchronous>, transform_indices = @transform_1, window_bounds = array<i64: 128, 256>}, {pipeline_mode = #tpu.pipeline_mode<synchronous>, transform_indices = @transform_2, window_bounds = array<i64: 8, 512>}, {transform_indices = @transform_3, window_bounds = array<i64: 1, 2, 128>}, {transform_indices = @transform_4, window_bounds = array<i64: 1, 1, 128>}]} {
    %c0 = arith.constant 0 : index
    %c0_0 = arith.constant 0 : index
    %c0_1 = arith.constant 0 : index
    %0 = vector.load %arg1[%c0, %c0_0, %c0_1] : memref<1x2x128xf32, #tpu.memory_space<vmem>>, vector<1x2x128xf32>
    %1 = vector.shape_cast %0 : vector<1x2x128xf32> to vector<2x128xf32>
    %c0_2 = arith.constant 0 : index
    %c0_3 = arith.constant 0 : index
    %2 = vector.load %arg3[%c0_2, %c0_3] : memref<8x512xf32, #tpu.memory_space<vmem>>, vector<8x512xf32>
    %c0_4 = arith.constant 0 : index
    %c0_5 = arith.constant 0 : index
    %3 = vector.load %arg2[%c0_4, %c0_5] : memref<128x256xf32, #tpu.memory_space<vmem>>, vector<128x128xf32>
    %c0_6 = arith.constant 0 : index
    %c128 = arith.constant 128 : index
    %4 = vector.load %arg2[%c0_6, %c128] : memref<128x256xf32, #tpu.memory_space<vmem>>, vector<128x128xf32>
    %cst = arith.constant dense<0.000000e+00> : vector<2x128xf32>
    %5 = tpu.matmul %1, %3, %cst {dimension_numbers = #tpu.dot_dimension_numbers<[1], [0], [0], [1], [0, 0, 1, 1], [], []>} : vector<2x128xf32>, vector<128x128xf32>, vector<2x128xf32> -> vector<2x128xf32>
    %6 = vector.extract_strided_slice %5 {offsets = [0, 0], sizes = [2, 32], strides = [1, 1]} : vector<2x128xf32> to vector<2x32xf32>
    %7 = vector.extract_strided_slice %5 {offsets = [0, 32], sizes = [2, 32], strides = [1, 1]} : vector<2x128xf32> to vector<2x32xf32>
    %8 = vector.extract_strided_slice %5 {offsets = [0, 64], sizes = [2, 32], strides = [1, 1]} : vector<2x128xf32> to vector<2x32xf32>
    %9 = vector.extract_strided_slice %5 {offsets = [0, 96], sizes = [2, 32], strides = [1, 1]} : vector<2x128xf32> to vector<2x32xf32>
    %10 = tpu.concatenate %6, %7, %8, %9 in 0 : vector<2x32xf32>, vector<2x32xf32>, vector<2x32xf32>, vector<2x32xf32> -> vector<8x32xf32>
    %11 = vector.extract_strided_slice %2 {offsets = [0, 8], sizes = [4, 1], strides = [1, 1]} : vector<8x512xf32> to vector<4x1xf32>
    %12 = vector.extract_strided_slice %2 {offsets = [0, 0], sizes = [4, 8], strides = [1, 1]} : vector<8x512xf32> to vector<4x8xf32>
    %cst_7 = arith.constant dense<0.000000e+00> : vector<4x32xf32>
    %13 = tpu.matmul %12, %10, %cst_7 {dimension_numbers = #tpu.dot_dimension_numbers<[1], [0], [0], [1], [0, 0, 1, 1], [], []>} : vector<4x8xf32>, vector<8x32xf32>, vector<4x32xf32> -> vector<4x32xf32>
    %14 = vector.broadcast %11 : vector<4x1xf32> to vector<4x32xf32>
    %15 = arith.addf %13, %14 : vector<4x32xf32>
    %16 = tpu.concatenate %11, %15, %11 in 1 : vector<4x1xf32>, vector<4x32xf32>, vector<4x1xf32> -> vector<4x34xf32>
    %cst_8 = arith.constant 0.0596774183 : f32
    %17 = vector.broadcast %cst_8 : f32 to vector<4x34xf32>
    %18 = arith.mulf %16, %17 : vector<4x34xf32>
    %cst_9 = arith.constant 0.707106769 : f32
    %19 = vector.broadcast %cst_9 : f32 to vector<4x34xf32>
    %20 = arith.mulf %18, %19 : vector<4x34xf32>
    %21 = math.absf %20 : vector<4x34xf32>
    %cst_10 = arith.constant 0.327591091 : f32
    %22 = vector.broadcast %cst_10 : f32 to vector<4x34xf32>
    %23 = arith.mulf %22, %21 : vector<4x34xf32>
    %cst_11 = arith.constant 1.000000e+00 : f32
    %24 = vector.broadcast %cst_11 : f32 to vector<4x34xf32>
    %25 = arith.addf %24, %23 : vector<4x34xf32>
    %cst_12 = arith.constant 1.000000e+00 : f32
    %26 = vector.broadcast %cst_12 : f32 to vector<4x34xf32>
    %27 = arith.divf %26, %25 : vector<4x34xf32>
    %cst_13 = arith.constant 1.06140542 : f32
    %28 = vector.broadcast %cst_13 : f32 to vector<4x34xf32>
    %29 = arith.mulf %28, %27 : vector<4x34xf32>
    %cst_14 = arith.constant -1.45315206 : f32
    %30 = vector.broadcast %cst_14 : f32 to vector<4x34xf32>
    %31 = arith.addf %29, %30 : vector<4x34xf32>
    %32 = arith.mulf %31, %27 : vector<4x34xf32>
    %cst_15 = arith.constant 1.42141378 : f32
    %33 = vector.broadcast %cst_15 : f32 to vector<4x34xf32>
    %34 = arith.addf %32, %33 : vector<4x34xf32>
    %35 = arith.mulf %34, %27 : vector<4x34xf32>
    %cst_16 = arith.constant -0.284496725 : f32
    %36 = vector.broadcast %cst_16 : f32 to vector<4x34xf32>
    %37 = arith.addf %35, %36 : vector<4x34xf32>
    %38 = arith.mulf %37, %27 : vector<4x34xf32>
    %cst_17 = arith.constant 0.254829586 : f32
    %39 = vector.broadcast %cst_17 : f32 to vector<4x34xf32>
    %40 = arith.addf %38, %39 : vector<4x34xf32>
    %41 = arith.mulf %40, %27 : vector<4x34xf32>
    %cst_18 = arith.constant 0.000000e+00 : f32
    %42 = vector.broadcast %cst_18 : f32 to vector<4x34xf32>
    %43 = arith.subf %42, %21 : vector<4x34xf32>
    %44 = arith.mulf %43, %21 : vector<4x34xf32>
    %45 = math.exp %44 : vector<4x34xf32>
    %46 = arith.mulf %41, %45 : vector<4x34xf32>
    %cst_19 = arith.constant 1.000000e+00 : f32
    %47 = vector.broadcast %cst_19 : f32 to vector<4x34xf32>
    %48 = arith.subf %47, %46 : vector<4x34xf32>
    %cst_20 = arith.constant 0.000000e+00 : f32
    %49 = vector.broadcast %cst_20 : f32 to vector<4x34xf32>
    %50 = arith.cmpf olt, %20, %49 : vector<4x34xf32>
    %cst_21 = arith.constant 0.000000e+00 : f32
    %51 = vector.broadcast %cst_21 : f32 to vector<4x34xf32>
    %52 = arith.subf %51, %48 : vector<4x34xf32>
    %53 = arith.select %50, %52, %48 : vector<4x34xi1>, vector<4x34xf32>
    %cst_22 = arith.constant 1.000000e+00 : f32
    %54 = vector.broadcast %cst_22 : f32 to vector<4x34xf32>
    %55 = arith.addf %54, %53 : vector<4x34xf32>
    %cst_23 = arith.constant 5.000000e-01 : f32
    %56 = vector.broadcast %cst_23 : f32 to vector<4x34xf32>
    %57 = arith.mulf %56, %55 : vector<4x34xf32>
    %cst_24 = arith.constant 5.000000e-01 : f32
    %58 = vector.broadcast %cst_24 : f32 to vector<4x34xf32>
    %59 = arith.subf %57, %58 : vector<4x34xf32>
    %cst_25 = arith.constant 6.299800e+01 : f32
    %60 = vector.broadcast %cst_25 : f32 to vector<4x34xf32>
    %61 = arith.mulf %60, %59 : vector<4x34xf32>
    %62 = math.floor %61 : vector<4x34xf32>
    %63 = arith.subf %61, %62 : vector<4x34xf32>
    %cst_26 = arith.constant 5.000000e-01 : f32
    %64 = vector.broadcast %cst_26 : f32 to vector<4x34xf32>
    %65 = arith.addf %61, %64 : vector<4x34xf32>
    %66 = math.floor %65 : vector<4x34xf32>
    %cst_27 = arith.constant 5.000000e-01 : f32
    %67 = vector.broadcast %cst_27 : f32 to vector<4x34xf32>
    %68 = arith.mulf %62, %67 : vector<4x34xf32>
    %69 = math.floor %68 : vector<4x34xf32>
    %cst_28 = arith.constant 2.000000e+00 : f32
    %70 = vector.broadcast %cst_28 : f32 to vector<4x34xf32>
    %71 = arith.mulf %70, %69 : vector<4x34xf32>
    %72 = arith.subf %62, %71 : vector<4x34xf32>
    %cst_29 = arith.constant 0.000000e+00 : f32
    %73 = vector.broadcast %cst_29 : f32 to vector<4x34xf32>
    %74 = arith.cmpf oeq, %72, %73 : vector<4x34xf32>
    %cst_30 = arith.constant 1.000000e+00 : f32
    %75 = vector.broadcast %cst_30 : f32 to vector<4x34xf32>
    %76 = arith.addf %62, %75 : vector<4x34xf32>
    %77 = arith.select %74, %62, %76 : vector<4x34xi1>, vector<4x34xf32>
    %cst_31 = arith.constant 5.000000e-01 : f32
    %78 = vector.broadcast %cst_31 : f32 to vector<4x34xf32>
    %79 = arith.cmpf oeq, %63, %78 : vector<4x34xf32>
    %80 = arith.select %79, %77, %66 : vector<4x34xi1>, vector<4x34xf32>
    %cst_32 = arith.constant 0.0158735197 : f32
    %81 = vector.broadcast %cst_32 : f32 to vector<4x34xf32>
    %82 = arith.mulf %80, %81 : vector<4x34xf32>
    %cst_33 = arith.constant 5.000000e-01 : f32
    %83 = vector.broadcast %cst_33 : f32 to vector<4x34xf32>
    %84 = arith.addf %82, %83 : vector<4x34xf32>
    %cst_34 = arith.constant 9.99999974E-5 : f32
    %cst_35 = arith.constant 0.999899983 : f32
    %85 = vector.broadcast %cst_34 : f32 to vector<4x34xf32>
    %86 = arith.maximumf %85, %84 : vector<4x34xf32>
    %87 = vector.broadcast %cst_35 : f32 to vector<4x34xf32>
    %88 = arith.minimumf %87, %86 : vector<4x34xf32>
    %cst_36 = arith.constant 5.000000e-01 : f32
    %89 = vector.broadcast %cst_36 : f32 to vector<4x34xf32>
    %90 = arith.subf %88, %89 : vector<4x34xf32>
    %91 = arith.mulf %90, %90 : vector<4x34xf32>
    %cst_37 = arith.constant -39.6968307 : f32
    %92 = vector.broadcast %cst_37 : f32 to vector<4x34xf32>
    %93 = arith.mulf %92, %91 : vector<4x34xf32>
    %cst_38 = arith.constant 220.946106 : f32
    %94 = vector.broadcast %cst_38 : f32 to vector<4x34xf32>
    %95 = arith.addf %93, %94 : vector<4x34xf32>
    %96 = arith.mulf %95, %91 : vector<4x34xf32>
    %cst_39 = arith.constant -275.928497 : f32
    %97 = vector.broadcast %cst_39 : f32 to vector<4x34xf32>
    %98 = arith.addf %96, %97 : vector<4x34xf32>
    %99 = arith.mulf %98, %91 : vector<4x34xf32>
    %cst_40 = arith.constant 138.357758 : f32
    %100 = vector.broadcast %cst_40 : f32 to vector<4x34xf32>
    %101 = arith.addf %99, %100 : vector<4x34xf32>
    %102 = arith.mulf %101, %91 : vector<4x34xf32>
    %cst_41 = arith.constant -30.6647987 : f32
    %103 = vector.broadcast %cst_41 : f32 to vector<4x34xf32>
    %104 = arith.addf %102, %103 : vector<4x34xf32>
    %105 = arith.mulf %104, %91 : vector<4x34xf32>
    %cst_42 = arith.constant 2.50662827 : f32
    %106 = vector.broadcast %cst_42 : f32 to vector<4x34xf32>
    %107 = arith.addf %105, %106 : vector<4x34xf32>
    %cst_43 = arith.constant -54.4760971 : f32
    %108 = vector.broadcast %cst_43 : f32 to vector<4x34xf32>
    %109 = arith.mulf %108, %91 : vector<4x34xf32>
    %cst_44 = arith.constant 161.585831 : f32
    %110 = vector.broadcast %cst_44 : f32 to vector<4x34xf32>
    %111 = arith.addf %109, %110 : vector<4x34xf32>
    %112 = arith.mulf %111, %91 : vector<4x34xf32>
    %cst_45 = arith.constant -155.698975 : f32
    %113 = vector.broadcast %cst_45 : f32 to vector<4x34xf32>
    %114 = arith.addf %112, %113 : vector<4x34xf32>
    %115 = arith.mulf %114, %91 : vector<4x34xf32>
    %cst_46 = arith.constant 66.8013153 : f32
    %116 = vector.broadcast %cst_46 : f32 to vector<4x34xf32>
    %117 = arith.addf %115, %116 : vector<4x34xf32>
    %118 = arith.mulf %117, %91 : vector<4x34xf32>
    %cst_47 = arith.constant -13.2806816 : f32
    %119 = vector.broadcast %cst_47 : f32 to vector<4x34xf32>
    %120 = arith.addf %118, %119 : vector<4x34xf32>
    %121 = arith.mulf %120, %91 : vector<4x34xf32>
    %cst_48 = arith.constant 1.000000e+00 : f32
    %122 = vector.broadcast %cst_48 : f32 to vector<4x34xf32>
    %123 = arith.addf %121, %122 : vector<4x34xf32>
    %124 = arith.mulf %90, %107 : vector<4x34xf32>
    %125 = arith.divf %124, %123 : vector<4x34xf32>
    %cst_49 = arith.constant 1.000000e+00 : f32
    %126 = vector.broadcast %cst_49 : f32 to vector<4x34xf32>
    %127 = arith.subf %126, %88 : vector<4x34xf32>
    %128 = arith.minimumf %88, %127 : vector<4x34xf32>
    %129 = math.log %128 : vector<4x34xf32>
    %cst_50 = arith.constant -2.000000e+00 : f32
    %130 = vector.broadcast %cst_50 : f32 to vector<4x34xf32>
    %131 = arith.mulf %130, %129 : vector<4x34xf32>
    %132 = math.sqrt %131 : vector<4x34xf32>
    %cst_51 = arith.constant -0.0077848942 : f32
    %133 = vector.broadcast %cst_51 : f32 to vector<4x34xf32>
    %134 = arith.mulf %133, %132 : vector<4x34xf32>
    %cst_52 = arith.constant -0.322396457 : f32
    %135 = vector.broadcast %cst_52 : f32 to vector<4x34xf32>
    %136 = arith.addf %134, %135 : vector<4x34xf32>
    %137 = arith.mulf %136, %132 : vector<4x34xf32>
    %cst_53 = arith.constant -2.40075827 : f32
    %138 = vector.broadcast %cst_53 : f32 to vector<4x34xf32>
    %139 = arith.addf %137, %138 : vector<4x34xf32>
    %140 = arith.mulf %139, %132 : vector<4x34xf32>
    %cst_54 = arith.constant -2.54973245 : f32
    %141 = vector.broadcast %cst_54 : f32 to vector<4x34xf32>
    %142 = arith.addf %140, %141 : vector<4x34xf32>
    %143 = arith.mulf %142, %132 : vector<4x34xf32>
    %cst_55 = arith.constant 4.37466431 : f32
    %144 = vector.broadcast %cst_55 : f32 to vector<4x34xf32>
    %145 = arith.addf %143, %144 : vector<4x34xf32>
    %146 = arith.mulf %145, %132 : vector<4x34xf32>
    %cst_56 = arith.constant 2.938164 : f32
    %147 = vector.broadcast %cst_56 : f32 to vector<4x34xf32>
    %148 = arith.addf %146, %147 : vector<4x34xf32>
    %cst_57 = arith.constant 0.00778469583 : f32
    %149 = vector.broadcast %cst_57 : f32 to vector<4x34xf32>
    %150 = arith.mulf %149, %132 : vector<4x34xf32>
    %cst_58 = arith.constant 0.322467119 : f32
    %151 = vector.broadcast %cst_58 : f32 to vector<4x34xf32>
    %152 = arith.addf %150, %151 : vector<4x34xf32>
    %153 = arith.mulf %152, %132 : vector<4x34xf32>
    %cst_59 = arith.constant 2.44513416 : f32
    %154 = vector.broadcast %cst_59 : f32 to vector<4x34xf32>
    %155 = arith.addf %153, %154 : vector<4x34xf32>
    %156 = arith.mulf %155, %132 : vector<4x34xf32>
    %cst_60 = arith.constant 3.7544086 : f32
    %157 = vector.broadcast %cst_60 : f32 to vector<4x34xf32>
    %158 = arith.addf %156, %157 : vector<4x34xf32>
    %159 = arith.mulf %158, %132 : vector<4x34xf32>
    %cst_61 = arith.constant 1.000000e+00 : f32
    %160 = vector.broadcast %cst_61 : f32 to vector<4x34xf32>
    %161 = arith.addf %159, %160 : vector<4x34xf32>
    %162 = arith.divf %148, %161 : vector<4x34xf32>
    %cst_62 = arith.constant 5.000000e-01 : f32
    %163 = vector.broadcast %cst_62 : f32 to vector<4x34xf32>
    %164 = arith.cmpf ogt, %88, %163 : vector<4x34xf32>
    %cst_63 = arith.constant 0.000000e+00 : f32
    %165 = vector.broadcast %cst_63 : f32 to vector<4x34xf32>
    %166 = arith.subf %165, %162 : vector<4x34xf32>
    %167 = arith.select %164, %166, %162 : vector<4x34xi1>, vector<4x34xf32>
    %cst_64 = arith.constant 2.425000e-02 : f32
    %168 = vector.broadcast %cst_64 : f32 to vector<4x34xf32>
    %169 = arith.cmpf olt, %88, %168 : vector<4x34xf32>
    %cst_65 = arith.constant 9.757500e-01 : f32
    %170 = vector.broadcast %cst_65 : f32 to vector<4x34xf32>
    %171 = arith.cmpf ogt, %88, %170 : vector<4x34xf32>
    %172 = arith.ori %169, %171 : vector<4x34xi1>
    %173 = arith.select %172, %167, %125 : vector<4x34xi1>, vector<4x34xf32>
    %cst_66 = arith.constant 16.7567558 : f32
    %174 = vector.broadcast %cst_66 : f32 to vector<4x34xf32>
    %175 = arith.mulf %174, %173 : vector<4x34xf32>
    %176 = vector.extract_strided_slice %2 {offsets = [0, 9], sizes = [8, 28], strides = [1, 1]} : vector<8x512xf32> to vector<8x28xf32>
    %177 = vector.extract_strided_slice %2 {offsets = [0, 37], sizes = [8, 1], strides = [1, 1]} : vector<8x512xf32> to vector<8x1xf32>
    %cst_67 = arith.constant 0.000000e+00 : f32
    %178 = vector.broadcast %cst_67 : f32 to vector<4x3xf32>
    %179 = tpu.concatenate %178, %175, %178 in 1 : vector<4x3xf32>, vector<4x34xf32>, vector<4x3xf32> -> vector<4x40xf32>
    %180 = vector.extract_strided_slice %179 {offsets = [0, 0], sizes = [4, 34], strides = [1, 1]} : vector<4x40xf32> to vector<4x34xf32>
    %181 = vector.extract_strided_slice %179 {offsets = [0, 1], sizes = [4, 34], strides = [1, 1]} : vector<4x40xf32> to vector<4x34xf32>
    %182 = vector.extract_strided_slice %179 {offsets = [0, 2], sizes = [4, 34], strides = [1, 1]} : vector<4x40xf32> to vector<4x34xf32>
    %183 = vector.extract_strided_slice %179 {offsets = [0, 3], sizes = [4, 34], strides = [1, 1]} : vector<4x40xf32> to vector<4x34xf32>
    %184 = vector.extract_strided_slice %179 {offsets = [0, 4], sizes = [4, 34], strides = [1, 1]} : vector<4x40xf32> to vector<4x34xf32>
    %185 = vector.extract_strided_slice %179 {offsets = [0, 5], sizes = [4, 34], strides = [1, 1]} : vector<4x40xf32> to vector<4x34xf32>
    %186 = vector.extract_strided_slice %179 {offsets = [0, 6], sizes = [4, 34], strides = [1, 1]} : vector<4x40xf32> to vector<4x34xf32>
    %187 = tpu.concatenate %180, %181, %182, %183, %184, %185, %186 in 0 : vector<4x34xf32>, vector<4x34xf32>, vector<4x34xf32>, vector<4x34xf32>, vector<4x34xf32>, vector<4x34xf32>, vector<4x34xf32> -> vector<28x34xf32>
    %cst_68 = arith.constant dense<0.000000e+00> : vector<8x34xf32>
    %188 = tpu.matmul %176, %187, %cst_68 {dimension_numbers = #tpu.dot_dimension_numbers<[1], [0], [0], [1], [0, 0, 1, 1], [], []>} : vector<8x28xf32>, vector<28x34xf32>, vector<8x34xf32> -> vector<8x34xf32>
    %189 = vector.broadcast %177 : vector<8x1xf32> to vector<8x34xf32>
    %190 = arith.addf %188, %189 : vector<8x34xf32>
    %191 = vector.extract_strided_slice %2 {offsets = [0, 38], sizes = [8, 1], strides = [1, 1]} : vector<8x512xf32> to vector<8x1xf32>
    %192 = vector.extract_strided_slice %2 {offsets = [0, 39], sizes = [8, 1], strides = [1, 1]} : vector<8x512xf32> to vector<8x1xf32>
    %193 = vector.broadcast %191 : vector<8x1xf32> to vector<8x34xf32>
    %194 = arith.mulf %193, %190 : vector<8x34xf32>
    %cst_69 = arith.constant 0.159154937 : f32
    %195 = vector.broadcast %cst_69 : f32 to vector<8x34xf32>
    %196 = arith.mulf %194, %195 : vector<8x34xf32>
    %cst_70 = arith.constant 5.000000e-01 : f32
    %197 = vector.broadcast %cst_70 : f32 to vector<8x34xf32>
    %198 = arith.addf %196, %197 : vector<8x34xf32>
    %199 = math.floor %198 : vector<8x34xf32>
    %cst_71 = arith.constant 6.281250e+00 : f32
    %200 = vector.broadcast %cst_71 : f32 to vector<8x34xf32>
    %201 = arith.mulf %199, %200 : vector<8x34xf32>
    %202 = arith.subf %194, %201 : vector<8x34xf32>
    %cst_72 = arith.constant 0.00193530717 : f32
    %203 = vector.broadcast %cst_72 : f32 to vector<8x34xf32>
    %204 = arith.mulf %199, %203 : vector<8x34xf32>
    %205 = arith.subf %202, %204 : vector<8x34xf32>
    %cst_73 = arith.constant 1.57079637 : f32
    %206 = vector.broadcast %cst_73 : f32 to vector<8x34xf32>
    %207 = arith.cmpf ogt, %205, %206 : vector<8x34xf32>
    %cst_74 = arith.constant 3.14159274 : f32
    %208 = vector.broadcast %cst_74 : f32 to vector<8x34xf32>
    %209 = arith.subf %208, %205 : vector<8x34xf32>
    %210 = arith.select %207, %209, %205 : vector<8x34xi1>, vector<8x34xf32>
    %cst_75 = arith.constant -1.57079637 : f32
    %211 = vector.broadcast %cst_75 : f32 to vector<8x34xf32>
    %212 = arith.cmpf olt, %210, %211 : vector<8x34xf32>
    %cst_76 = arith.constant -3.14159274 : f32
    %213 = vector.broadcast %cst_76 : f32 to vector<8x34xf32>
    %214 = arith.subf %213, %210 : vector<8x34xf32>
    %215 = arith.select %212, %214, %210 : vector<8x34xi1>, vector<8x34xf32>
    %216 = arith.mulf %215, %215 : vector<8x34xf32>
    %cst_77 = arith.constant 2.50521079E-8 : f32
    %217 = vector.broadcast %cst_77 : f32 to vector<8x34xf32>
    %218 = arith.mulf %216, %217 : vector<8x34xf32>
    %cst_78 = arith.constant 2.75573188E-6 : f32
    %219 = vector.broadcast %cst_78 : f32 to vector<8x34xf32>
    %220 = arith.subf %219, %218 : vector<8x34xf32>
    %221 = arith.mulf %216, %220 : vector<8x34xf32>
    %cst_79 = arith.constant -1.98412701E-4 : f32
    %222 = vector.broadcast %cst_79 : f32 to vector<8x34xf32>
    %223 = arith.addf %222, %221 : vector<8x34xf32>
    %224 = arith.mulf %216, %223 : vector<8x34xf32>
    %cst_80 = arith.constant 0.00833333377 : f32
    %225 = vector.broadcast %cst_80 : f32 to vector<8x34xf32>
    %226 = arith.addf %225, %224 : vector<8x34xf32>
    %227 = arith.mulf %216, %226 : vector<8x34xf32>
    %cst_81 = arith.constant -0.166666672 : f32
    %228 = vector.broadcast %cst_81 : f32 to vector<8x34xf32>
    %229 = arith.addf %228, %227 : vector<8x34xf32>
    %230 = arith.mulf %216, %229 : vector<8x34xf32>
    %cst_82 = arith.constant 1.000000e+00 : f32
    %231 = vector.broadcast %cst_82 : f32 to vector<8x34xf32>
    %232 = arith.addf %231, %230 : vector<8x34xf32>
    %233 = arith.mulf %215, %232 : vector<8x34xf32>
    %234 = arith.mulf %233, %233 : vector<8x34xf32>
    %235 = vector.broadcast %192 : vector<8x1xf32> to vector<8x34xf32>
    %236 = arith.mulf %235, %234 : vector<8x34xf32>
    %237 = arith.addf %190, %236 : vector<8x34xf32>
    %238 = vector.extract_strided_slice %2 {offsets = [0, 40], sizes = [8, 16], strides = [1, 1]} : vector<8x512xf32> to vector<8x16xf32>
    %239 = vector.extract_strided_slice %2 {offsets = [0, 56], sizes = [8, 1], strides = [1, 1]} : vector<8x512xf32> to vector<8x1xf32>
    %240 = vector.extract_strided_slice %237 {offsets = [0, 0], sizes = [8, 33], strides = [1, 1]} : vector<8x34xf32> to vector<8x33xf32>
    %241 = vector.extract_strided_slice %237 {offsets = [0, 1], sizes = [8, 33], strides = [1, 1]} : vector<8x34xf32> to vector<8x33xf32>
    %242 = tpu.concatenate %240, %241 in 0 : vector<8x33xf32>, vector<8x33xf32> -> vector<16x33xf32>
    %cst_83 = arith.constant dense<0.000000e+00> : vector<8x33xf32>
    %243 = tpu.matmul %238, %242, %cst_83 {dimension_numbers = #tpu.dot_dimension_numbers<[1], [0], [0], [1], [0, 0, 1, 1], [], []>} : vector<8x16xf32>, vector<16x33xf32>, vector<8x33xf32> -> vector<8x33xf32>
    %244 = vector.broadcast %239 : vector<8x1xf32> to vector<8x33xf32>
    %245 = arith.addf %243, %244 : vector<8x33xf32>
    %246 = vector.extract_strided_slice %2 {offsets = [0, 57], sizes = [8, 1], strides = [1, 1]} : vector<8x512xf32> to vector<8x1xf32>
    %247 = vector.extract_strided_slice %2 {offsets = [0, 58], sizes = [8, 1], strides = [1, 1]} : vector<8x512xf32> to vector<8x1xf32>
    %248 = vector.broadcast %246 : vector<8x1xf32> to vector<8x33xf32>
    %249 = arith.mulf %248, %245 : vector<8x33xf32>
    %cst_84 = arith.constant 0.159154937 : f32
    %250 = vector.broadcast %cst_84 : f32 to vector<8x33xf32>
    %251 = arith.mulf %249, %250 : vector<8x33xf32>
    %cst_85 = arith.constant 5.000000e-01 : f32
    %252 = vector.broadcast %cst_85 : f32 to vector<8x33xf32>
    %253 = arith.addf %251, %252 : vector<8x33xf32>
    %254 = math.floor %253 : vector<8x33xf32>
    %cst_86 = arith.constant 6.281250e+00 : f32
    %255 = vector.broadcast %cst_86 : f32 to vector<8x33xf32>
    %256 = arith.mulf %254, %255 : vector<8x33xf32>
    %257 = arith.subf %249, %256 : vector<8x33xf32>
    %cst_87 = arith.constant 0.00193530717 : f32
    %258 = vector.broadcast %cst_87 : f32 to vector<8x33xf32>
    %259 = arith.mulf %254, %258 : vector<8x33xf32>
    %260 = arith.subf %257, %259 : vector<8x33xf32>
    %cst_88 = arith.constant 1.57079637 : f32
    %261 = vector.broadcast %cst_88 : f32 to vector<8x33xf32>
    %262 = arith.cmpf ogt, %260, %261 : vector<8x33xf32>
    %cst_89 = arith.constant 3.14159274 : f32
    %263 = vector.broadcast %cst_89 : f32 to vector<8x33xf32>
    %264 = arith.subf %263, %260 : vector<8x33xf32>
    %265 = arith.select %262, %264, %260 : vector<8x33xi1>, vector<8x33xf32>
    %cst_90 = arith.constant -1.57079637 : f32
    %266 = vector.broadcast %cst_90 : f32 to vector<8x33xf32>
    %267 = arith.cmpf olt, %265, %266 : vector<8x33xf32>
    %cst_91 = arith.constant -3.14159274 : f32
    %268 = vector.broadcast %cst_91 : f32 to vector<8x33xf32>
    %269 = arith.subf %268, %265 : vector<8x33xf32>
    %270 = arith.select %267, %269, %265 : vector<8x33xi1>, vector<8x33xf32>
    %271 = arith.mulf %270, %270 : vector<8x33xf32>
    %cst_92 = arith.constant 2.50521079E-8 : f32
    %272 = vector.broadcast %cst_92 : f32 to vector<8x33xf32>
    %273 = arith.mulf %271, %272 : vector<8x33xf32>
    %cst_93 = arith.constant 2.75573188E-6 : f32
    %274 = vector.broadcast %cst_93 : f32 to vector<8x33xf32>
    %275 = arith.subf %274, %273 : vector<8x33xf32>
    %276 = arith.mulf %271, %275 : vector<8x33xf32>
    %cst_94 = arith.constant -1.98412701E-4 : f32
    %277 = vector.broadcast %cst_94 : f32 to vector<8x33xf32>
    %278 = arith.addf %277, %276 : vector<8x33xf32>
    %279 = arith.mulf %271, %278 : vector<8x33xf32>
    %cst_95 = arith.constant 0.00833333377 : f32
    %280 = vector.broadcast %cst_95 : f32 to vector<8x33xf32>
    %281 = arith.addf %280, %279 : vector<8x33xf32>
    %282 = arith.mulf %271, %281 : vector<8x33xf32>
    %cst_96 = arith.constant -0.166666672 : f32
    %283 = vector.broadcast %cst_96 : f32 to vector<8x33xf32>
    %284 = arith.addf %283, %282 : vector<8x33xf32>
    %285 = arith.mulf %271, %284 : vector<8x33xf32>
    %cst_97 = arith.constant 1.000000e+00 : f32
    %286 = vector.broadcast %cst_97 : f32 to vector<8x33xf32>
    %287 = arith.addf %286, %285 : vector<8x33xf32>
    %288 = arith.mulf %270, %287 : vector<8x33xf32>
    %289 = arith.mulf %288, %288 : vector<8x33xf32>
    %290 = vector.broadcast %247 : vector<8x1xf32> to vector<8x33xf32>
    %291 = arith.mulf %290, %289 : vector<8x33xf32>
    %292 = arith.addf %245, %291 : vector<8x33xf32>
    %293 = vector.extract_strided_slice %2 {offsets = [0, 59], sizes = [8, 56], strides = [1, 1]} : vector<8x512xf32> to vector<8x56xf32>
    %294 = vector.extract_strided_slice %2 {offsets = [0, 115], sizes = [8, 1], strides = [1, 1]} : vector<8x512xf32> to vector<8x1xf32>
    %cst_98 = arith.constant 0.000000e+00 : f32
    %295 = vector.broadcast %cst_98 : f32 to vector<8x3xf32>
    %296 = tpu.concatenate %295, %292, %295 in 1 : vector<8x3xf32>, vector<8x33xf32>, vector<8x3xf32> -> vector<8x39xf32>
    %297 = vector.extract_strided_slice %296 {offsets = [0, 0], sizes = [8, 33], strides = [1, 1]} : vector<8x39xf32> to vector<8x33xf32>
    %298 = vector.extract_strided_slice %296 {offsets = [0, 1], sizes = [8, 33], strides = [1, 1]} : vector<8x39xf32> to vector<8x33xf32>
    %299 = vector.extract_strided_slice %296 {offsets = [0, 2], sizes = [8, 33], strides = [1, 1]} : vector<8x39xf32> to vector<8x33xf32>
    %300 = vector.extract_strided_slice %296 {offsets = [0, 3], sizes = [8, 33], strides = [1, 1]} : vector<8x39xf32> to vector<8x33xf32>
    %301 = vector.extract_strided_slice %296 {offsets = [0, 4], sizes = [8, 33], strides = [1, 1]} : vector<8x39xf32> to vector<8x33xf32>
    %302 = vector.extract_strided_slice %296 {offsets = [0, 5], sizes = [8, 33], strides = [1, 1]} : vector<8x39xf32> to vector<8x33xf32>
    %303 = vector.extract_strided_slice %296 {offsets = [0, 6], sizes = [8, 33], strides = [1, 1]} : vector<8x39xf32> to vector<8x33xf32>
    %304 = tpu.concatenate %297, %298, %299, %300, %301, %302, %303 in 0 : vector<8x33xf32>, vector<8x33xf32>, vector<8x33xf32>, vector<8x33xf32>, vector<8x33xf32>, vector<8x33xf32>, vector<8x33xf32> -> vector<56x33xf32>
    %cst_99 = arith.constant dense<0.000000e+00> : vector<8x33xf32>
    %305 = tpu.matmul %293, %304, %cst_99 {dimension_numbers = #tpu.dot_dimension_numbers<[1], [0], [0], [1], [0, 0, 1, 1], [], []>} : vector<8x56xf32>, vector<56x33xf32>, vector<8x33xf32> -> vector<8x33xf32>
    %306 = vector.broadcast %294 : vector<8x1xf32> to vector<8x33xf32>
    %307 = arith.addf %305, %306 : vector<8x33xf32>
    %308 = vector.extract_strided_slice %2 {offsets = [0, 116], sizes = [8, 1], strides = [1, 1]} : vector<8x512xf32> to vector<8x1xf32>
    %309 = vector.extract_strided_slice %2 {offsets = [0, 117], sizes = [8, 1], strides = [1, 1]} : vector<8x512xf32> to vector<8x1xf32>
    %310 = vector.broadcast %308 : vector<8x1xf32> to vector<8x33xf32>
    %311 = arith.mulf %310, %307 : vector<8x33xf32>
    %cst_100 = arith.constant 0.159154937 : f32
    %312 = vector.broadcast %cst_100 : f32 to vector<8x33xf32>
    %313 = arith.mulf %311, %312 : vector<8x33xf32>
    %cst_101 = arith.constant 5.000000e-01 : f32
    %314 = vector.broadcast %cst_101 : f32 to vector<8x33xf32>
    %315 = arith.addf %313, %314 : vector<8x33xf32>
    %316 = math.floor %315 : vector<8x33xf32>
    %cst_102 = arith.constant 6.281250e+00 : f32
    %317 = vector.broadcast %cst_102 : f32 to vector<8x33xf32>
    %318 = arith.mulf %316, %317 : vector<8x33xf32>
    %319 = arith.subf %311, %318 : vector<8x33xf32>
    %cst_103 = arith.constant 0.00193530717 : f32
    %320 = vector.broadcast %cst_103 : f32 to vector<8x33xf32>
    %321 = arith.mulf %316, %320 : vector<8x33xf32>
    %322 = arith.subf %319, %321 : vector<8x33xf32>
    %cst_104 = arith.constant 1.57079637 : f32
    %323 = vector.broadcast %cst_104 : f32 to vector<8x33xf32>
    %324 = arith.cmpf ogt, %322, %323 : vector<8x33xf32>
    %cst_105 = arith.constant 3.14159274 : f32
    %325 = vector.broadcast %cst_105 : f32 to vector<8x33xf32>
    %326 = arith.subf %325, %322 : vector<8x33xf32>
    %327 = arith.select %324, %326, %322 : vector<8x33xi1>, vector<8x33xf32>
    %cst_106 = arith.constant -1.57079637 : f32
    %328 = vector.broadcast %cst_106 : f32 to vector<8x33xf32>
    %329 = arith.cmpf olt, %327, %328 : vector<8x33xf32>
    %cst_107 = arith.constant -3.14159274 : f32
    %330 = vector.broadcast %cst_107 : f32 to vector<8x33xf32>
    %331 = arith.subf %330, %327 : vector<8x33xf32>
    %332 = arith.select %329, %331, %327 : vector<8x33xi1>, vector<8x33xf32>
    %333 = arith.mulf %332, %332 : vector<8x33xf32>
    %cst_108 = arith.constant 2.50521079E-8 : f32
    %334 = vector.broadcast %cst_108 : f32 to vector<8x33xf32>
    %335 = arith.mulf %333, %334 : vector<8x33xf32>
    %cst_109 = arith.constant 2.75573188E-6 : f32
    %336 = vector.broadcast %cst_109 : f32 to vector<8x33xf32>
    %337 = arith.subf %336, %335 : vector<8x33xf32>
    %338 = arith.mulf %333, %337 : vector<8x33xf32>
    %cst_110 = arith.constant -1.98412701E-4 : f32
    %339 = vector.broadcast %cst_110 : f32 to vector<8x33xf32>
    %340 = arith.addf %339, %338 : vector<8x33xf32>
    %341 = arith.mulf %333, %340 : vector<8x33xf32>
    %cst_111 = arith.constant 0.00833333377 : f32
    %342 = vector.broadcast %cst_111 : f32 to vector<8x33xf32>
    %343 = arith.addf %342, %341 : vector<8x33xf32>
    %344 = arith.mulf %333, %343 : vector<8x33xf32>
    %cst_112 = arith.constant -0.166666672 : f32
    %345 = vector.broadcast %cst_112 : f32 to vector<8x33xf32>
    %346 = arith.addf %345, %344 : vector<8x33xf32>
    %347 = arith.mulf %333, %346 : vector<8x33xf32>
    %cst_113 = arith.constant 1.000000e+00 : f32
    %348 = vector.broadcast %cst_113 : f32 to vector<8x33xf32>
    %349 = arith.addf %348, %347 : vector<8x33xf32>
    %350 = arith.mulf %332, %349 : vector<8x33xf32>
    %351 = arith.mulf %350, %350 : vector<8x33xf32>
    %352 = vector.broadcast %309 : vector<8x1xf32> to vector<8x33xf32>
    %353 = arith.mulf %352, %351 : vector<8x33xf32>
    %354 = arith.addf %307, %353 : vector<8x33xf32>
    %355 = vector.extract_strided_slice %2 {offsets = [0, 118], sizes = [8, 8], strides = [1, 1]} : vector<8x512xf32> to vector<8x8xf32>
    %356 = vector.extract_strided_slice %2 {offsets = [0, 126], sizes = [8, 1], strides = [1, 1]} : vector<8x512xf32> to vector<8x1xf32>
    %cst_114 = arith.constant dense<0.000000e+00> : vector<8x33xf32>
    %357 = tpu.matmul %355, %354, %cst_114 {dimension_numbers = #tpu.dot_dimension_numbers<[1], [0], [0], [1], [0, 0, 1, 1], [], []>} : vector<8x8xf32>, vector<8x33xf32>, vector<8x33xf32> -> vector<8x33xf32>
    %358 = vector.broadcast %356 : vector<8x1xf32> to vector<8x33xf32>
    %359 = arith.addf %357, %358 : vector<8x33xf32>
    %360 = arith.addf %245, %359 : vector<8x33xf32>
    %361 = vector.extract_strided_slice %2 {offsets = [0, 127], sizes = [8, 1], strides = [1, 1]} : vector<8x512xf32> to vector<8x1xf32>
    %362 = vector.extract_strided_slice %2 {offsets = [0, 128], sizes = [8, 1], strides = [1, 1]} : vector<8x512xf32> to vector<8x1xf32>
    %363 = vector.broadcast %361 : vector<8x1xf32> to vector<8x33xf32>
    %364 = arith.mulf %363, %360 : vector<8x33xf32>
    %cst_115 = arith.constant 0.159154937 : f32
    %365 = vector.broadcast %cst_115 : f32 to vector<8x33xf32>
    %366 = arith.mulf %364, %365 : vector<8x33xf32>
    %cst_116 = arith.constant 5.000000e-01 : f32
    %367 = vector.broadcast %cst_116 : f32 to vector<8x33xf32>
    %368 = arith.addf %366, %367 : vector<8x33xf32>
    %369 = math.floor %368 : vector<8x33xf32>
    %cst_117 = arith.constant 6.281250e+00 : f32
    %370 = vector.broadcast %cst_117 : f32 to vector<8x33xf32>
    %371 = arith.mulf %369, %370 : vector<8x33xf32>
    %372 = arith.subf %364, %371 : vector<8x33xf32>
    %cst_118 = arith.constant 0.00193530717 : f32
    %373 = vector.broadcast %cst_118 : f32 to vector<8x33xf32>
    %374 = arith.mulf %369, %373 : vector<8x33xf32>
    %375 = arith.subf %372, %374 : vector<8x33xf32>
    %cst_119 = arith.constant 1.57079637 : f32
    %376 = vector.broadcast %cst_119 : f32 to vector<8x33xf32>
    %377 = arith.cmpf ogt, %375, %376 : vector<8x33xf32>
    %cst_120 = arith.constant 3.14159274 : f32
    %378 = vector.broadcast %cst_120 : f32 to vector<8x33xf32>
    %379 = arith.subf %378, %375 : vector<8x33xf32>
    %380 = arith.select %377, %379, %375 : vector<8x33xi1>, vector<8x33xf32>
    %cst_121 = arith.constant -1.57079637 : f32
    %381 = vector.broadcast %cst_121 : f32 to vector<8x33xf32>
    %382 = arith.cmpf olt, %380, %381 : vector<8x33xf32>
    %cst_122 = arith.constant -3.14159274 : f32
    %383 = vector.broadcast %cst_122 : f32 to vector<8x33xf32>
    %384 = arith.subf %383, %380 : vector<8x33xf32>
    %385 = arith.select %382, %384, %380 : vector<8x33xi1>, vector<8x33xf32>
    %386 = arith.mulf %385, %385 : vector<8x33xf32>
    %cst_123 = arith.constant 2.50521079E-8 : f32
    %387 = vector.broadcast %cst_123 : f32 to vector<8x33xf32>
    %388 = arith.mulf %386, %387 : vector<8x33xf32>
    %cst_124 = arith.constant 2.75573188E-6 : f32
    %389 = vector.broadcast %cst_124 : f32 to vector<8x33xf32>
    %390 = arith.subf %389, %388 : vector<8x33xf32>
    %391 = arith.mulf %386, %390 : vector<8x33xf32>
    %cst_125 = arith.constant -1.98412701E-4 : f32
    %392 = vector.broadcast %cst_125 : f32 to vector<8x33xf32>
    %393 = arith.addf %392, %391 : vector<8x33xf32>
    %394 = arith.mulf %386, %393 : vector<8x33xf32>
    %cst_126 = arith.constant 0.00833333377 : f32
    %395 = vector.broadcast %cst_126 : f32 to vector<8x33xf32>
    %396 = arith.addf %395, %394 : vector<8x33xf32>
    %397 = arith.mulf %386, %396 : vector<8x33xf32>
    %cst_127 = arith.constant -0.166666672 : f32
    %398 = vector.broadcast %cst_127 : f32 to vector<8x33xf32>
    %399 = arith.addf %398, %397 : vector<8x33xf32>
    %400 = arith.mulf %386, %399 : vector<8x33xf32>
    %cst_128 = arith.constant 1.000000e+00 : f32
    %401 = vector.broadcast %cst_128 : f32 to vector<8x33xf32>
    %402 = arith.addf %401, %400 : vector<8x33xf32>
    %403 = arith.mulf %385, %402 : vector<8x33xf32>
    %404 = arith.mulf %403, %403 : vector<8x33xf32>
    %405 = vector.broadcast %362 : vector<8x1xf32> to vector<8x33xf32>
    %406 = arith.mulf %405, %404 : vector<8x33xf32>
    %407 = arith.addf %360, %406 : vector<8x33xf32>
    %408 = vector.extract_strided_slice %2 {offsets = [0, 129], sizes = [8, 56], strides = [1, 1]} : vector<8x512xf32> to vector<8x56xf32>
    %409 = vector.extract_strided_slice %2 {offsets = [0, 185], sizes = [8, 1], strides = [1, 1]} : vector<8x512xf32> to vector<8x1xf32>
    %cst_129 = arith.constant 0.000000e+00 : f32
    %410 = vector.broadcast %cst_129 : f32 to vector<8x9xf32>
    %411 = tpu.concatenate %410, %407, %410 in 1 : vector<8x9xf32>, vector<8x33xf32>, vector<8x9xf32> -> vector<8x51xf32>
    %412 = vector.extract_strided_slice %411 {offsets = [0, 0], sizes = [8, 33], strides = [1, 1]} : vector<8x51xf32> to vector<8x33xf32>
    %413 = vector.extract_strided_slice %411 {offsets = [0, 3], sizes = [8, 33], strides = [1, 1]} : vector<8x51xf32> to vector<8x33xf32>
    %414 = vector.extract_strided_slice %411 {offsets = [0, 6], sizes = [8, 33], strides = [1, 1]} : vector<8x51xf32> to vector<8x33xf32>
    %415 = vector.extract_strided_slice %411 {offsets = [0, 9], sizes = [8, 33], strides = [1, 1]} : vector<8x51xf32> to vector<8x33xf32>
    %416 = vector.extract_strided_slice %411 {offsets = [0, 12], sizes = [8, 33], strides = [1, 1]} : vector<8x51xf32> to vector<8x33xf32>
    %417 = vector.extract_strided_slice %411 {offsets = [0, 15], sizes = [8, 33], strides = [1, 1]} : vector<8x51xf32> to vector<8x33xf32>
    %418 = vector.extract_strided_slice %411 {offsets = [0, 18], sizes = [8, 33], strides = [1, 1]} : vector<8x51xf32> to vector<8x33xf32>
    %419 = tpu.concatenate %412, %413, %414, %415, %416, %417, %418 in 0 : vector<8x33xf32>, vector<8x33xf32>, vector<8x33xf32>, vector<8x33xf32>, vector<8x33xf32>, vector<8x33xf32>, vector<8x33xf32> -> vector<56x33xf32>
    %cst_130 = arith.constant dense<0.000000e+00> : vector<8x33xf32>
    %420 = tpu.matmul %408, %419, %cst_130 {dimension_numbers = #tpu.dot_dimension_numbers<[1], [0], [0], [1], [0, 0, 1, 1], [], []>} : vector<8x56xf32>, vector<56x33xf32>, vector<8x33xf32> -> vector<8x33xf32>
    %421 = vector.broadcast %409 : vector<8x1xf32> to vector<8x33xf32>
    %422 = arith.addf %420, %421 : vector<8x33xf32>
    %423 = vector.extract_strided_slice %2 {offsets = [0, 186], sizes = [8, 1], strides = [1, 1]} : vector<8x512xf32> to vector<8x1xf32>
    %424 = vector.extract_strided_slice %2 {offsets = [0, 187], sizes = [8, 1], strides = [1, 1]} : vector<8x512xf32> to vector<8x1xf32>
    %425 = vector.broadcast %423 : vector<8x1xf32> to vector<8x33xf32>
    %426 = arith.mulf %425, %422 : vector<8x33xf32>
    %cst_131 = arith.constant 0.159154937 : f32
    %427 = vector.broadcast %cst_131 : f32 to vector<8x33xf32>
    %428 = arith.mulf %426, %427 : vector<8x33xf32>
    %cst_132 = arith.constant 5.000000e-01 : f32
    %429 = vector.broadcast %cst_132 : f32 to vector<8x33xf32>
    %430 = arith.addf %428, %429 : vector<8x33xf32>
    %431 = math.floor %430 : vector<8x33xf32>
    %cst_133 = arith.constant 6.281250e+00 : f32
    %432 = vector.broadcast %cst_133 : f32 to vector<8x33xf32>
    %433 = arith.mulf %431, %432 : vector<8x33xf32>
    %434 = arith.subf %426, %433 : vector<8x33xf32>
    %cst_134 = arith.constant 0.00193530717 : f32
    %435 = vector.broadcast %cst_134 : f32 to vector<8x33xf32>
    %436 = arith.mulf %431, %435 : vector<8x33xf32>
    %437 = arith.subf %434, %436 : vector<8x33xf32>
    %cst_135 = arith.constant 1.57079637 : f32
    %438 = vector.broadcast %cst_135 : f32 to vector<8x33xf32>
    %439 = arith.cmpf ogt, %437, %438 : vector<8x33xf32>
    %cst_136 = arith.constant 3.14159274 : f32
    %440 = vector.broadcast %cst_136 : f32 to vector<8x33xf32>
    %441 = arith.subf %440, %437 : vector<8x33xf32>
    %442 = arith.select %439, %441, %437 : vector<8x33xi1>, vector<8x33xf32>
    %cst_137 = arith.constant -1.57079637 : f32
    %443 = vector.broadcast %cst_137 : f32 to vector<8x33xf32>
    %444 = arith.cmpf olt, %442, %443 : vector<8x33xf32>
    %cst_138 = arith.constant -3.14159274 : f32
    %445 = vector.broadcast %cst_138 : f32 to vector<8x33xf32>
    %446 = arith.subf %445, %442 : vector<8x33xf32>
    %447 = arith.select %444, %446, %442 : vector<8x33xi1>, vector<8x33xf32>
    %448 = arith.mulf %447, %447 : vector<8x33xf32>
    %cst_139 = arith.constant 2.50521079E-8 : f32
    %449 = vector.broadcast %cst_139 : f32 to vector<8x33xf32>
    %450 = arith.mulf %448, %449 : vector<8x33xf32>
    %cst_140 = arith.constant 2.75573188E-6 : f32
    %451 = vector.broadcast %cst_140 : f32 to vector<8x33xf32>
    %452 = arith.subf %451, %450 : vector<8x33xf32>
    %453 = arith.mulf %448, %452 : vector<8x33xf32>
    %cst_141 = arith.constant -1.98412701E-4 : f32
    %454 = vector.broadcast %cst_141 : f32 to vector<8x33xf32>
    %455 = arith.addf %454, %453 : vector<8x33xf32>
    %456 = arith.mulf %448, %455 : vector<8x33xf32>
    %cst_142 = arith.constant 0.00833333377 : f32
    %457 = vector.broadcast %cst_142 : f32 to vector<8x33xf32>
    %458 = arith.addf %457, %456 : vector<8x33xf32>
    %459 = arith.mulf %448, %458 : vector<8x33xf32>
    %cst_143 = arith.constant -0.166666672 : f32
    %460 = vector.broadcast %cst_143 : f32 to vector<8x33xf32>
    %461 = arith.addf %460, %459 : vector<8x33xf32>
    %462 = arith.mulf %448, %461 : vector<8x33xf32>
    %cst_144 = arith.constant 1.000000e+00 : f32
    %463 = vector.broadcast %cst_144 : f32 to vector<8x33xf32>
    %464 = arith.addf %463, %462 : vector<8x33xf32>
    %465 = arith.mulf %447, %464 : vector<8x33xf32>
    %466 = arith.mulf %465, %465 : vector<8x33xf32>
    %467 = vector.broadcast %424 : vector<8x1xf32> to vector<8x33xf32>
    %468 = arith.mulf %467, %466 : vector<8x33xf32>
    %469 = arith.addf %422, %468 : vector<8x33xf32>
    %470 = vector.extract_strided_slice %2 {offsets = [0, 188], sizes = [8, 8], strides = [1, 1]} : vector<8x512xf32> to vector<8x8xf32>
    %471 = vector.extract_strided_slice %2 {offsets = [0, 196], sizes = [8, 1], strides = [1, 1]} : vector<8x512xf32> to vector<8x1xf32>
    %cst_145 = arith.constant dense<0.000000e+00> : vector<8x33xf32>
    %472 = tpu.matmul %470, %469, %cst_145 {dimension_numbers = #tpu.dot_dimension_numbers<[1], [0], [0], [1], [0, 0, 1, 1], [], []>} : vector<8x8xf32>, vector<8x33xf32>, vector<8x33xf32> -> vector<8x33xf32>
    %473 = vector.broadcast %471 : vector<8x1xf32> to vector<8x33xf32>
    %474 = arith.addf %472, %473 : vector<8x33xf32>
    %475 = arith.addf %360, %474 : vector<8x33xf32>
    %476 = vector.extract_strided_slice %2 {offsets = [0, 197], sizes = [8, 1], strides = [1, 1]} : vector<8x512xf32> to vector<8x1xf32>
    %477 = vector.extract_strided_slice %2 {offsets = [0, 198], sizes = [8, 1], strides = [1, 1]} : vector<8x512xf32> to vector<8x1xf32>
    %478 = vector.broadcast %476 : vector<8x1xf32> to vector<8x33xf32>
    %479 = arith.mulf %478, %475 : vector<8x33xf32>
    %cst_146 = arith.constant 0.159154937 : f32
    %480 = vector.broadcast %cst_146 : f32 to vector<8x33xf32>
    %481 = arith.mulf %479, %480 : vector<8x33xf32>
    %cst_147 = arith.constant 5.000000e-01 : f32
    %482 = vector.broadcast %cst_147 : f32 to vector<8x33xf32>
    %483 = arith.addf %481, %482 : vector<8x33xf32>
    %484 = math.floor %483 : vector<8x33xf32>
    %cst_148 = arith.constant 6.281250e+00 : f32
    %485 = vector.broadcast %cst_148 : f32 to vector<8x33xf32>
    %486 = arith.mulf %484, %485 : vector<8x33xf32>
    %487 = arith.subf %479, %486 : vector<8x33xf32>
    %cst_149 = arith.constant 0.00193530717 : f32
    %488 = vector.broadcast %cst_149 : f32 to vector<8x33xf32>
    %489 = arith.mulf %484, %488 : vector<8x33xf32>
    %490 = arith.subf %487, %489 : vector<8x33xf32>
    %cst_150 = arith.constant 1.57079637 : f32
    %491 = vector.broadcast %cst_150 : f32 to vector<8x33xf32>
    %492 = arith.cmpf ogt, %490, %491 : vector<8x33xf32>
    %cst_151 = arith.constant 3.14159274 : f32
    %493 = vector.broadcast %cst_151 : f32 to vector<8x33xf32>
    %494 = arith.subf %493, %490 : vector<8x33xf32>
    %495 = arith.select %492, %494, %490 : vector<8x33xi1>, vector<8x33xf32>
    %cst_152 = arith.constant -1.57079637 : f32
    %496 = vector.broadcast %cst_152 : f32 to vector<8x33xf32>
    %497 = arith.cmpf olt, %495, %496 : vector<8x33xf32>
    %cst_153 = arith.constant -3.14159274 : f32
    %498 = vector.broadcast %cst_153 : f32 to vector<8x33xf32>
    %499 = arith.subf %498, %495 : vector<8x33xf32>
    %500 = arith.select %497, %499, %495 : vector<8x33xi1>, vector<8x33xf32>
    %501 = arith.mulf %500, %500 : vector<8x33xf32>
    %cst_154 = arith.constant 2.50521079E-8 : f32
    %502 = vector.broadcast %cst_154 : f32 to vector<8x33xf32>
    %503 = arith.mulf %501, %502 : vector<8x33xf32>
    %cst_155 = arith.constant 2.75573188E-6 : f32
    %504 = vector.broadcast %cst_155 : f32 to vector<8x33xf32>
    %505 = arith.subf %504, %503 : vector<8x33xf32>
    %506 = arith.mulf %501, %505 : vector<8x33xf32>
    %cst_156 = arith.constant -1.98412701E-4 : f32
    %507 = vector.broadcast %cst_156 : f32 to vector<8x33xf32>
    %508 = arith.addf %507, %506 : vector<8x33xf32>
    %509 = arith.mulf %501, %508 : vector<8x33xf32>
    %cst_157 = arith.constant 0.00833333377 : f32
    %510 = vector.broadcast %cst_157 : f32 to vector<8x33xf32>
    %511 = arith.addf %510, %509 : vector<8x33xf32>
    %512 = arith.mulf %501, %511 : vector<8x33xf32>
    %cst_158 = arith.constant -0.166666672 : f32
    %513 = vector.broadcast %cst_158 : f32 to vector<8x33xf32>
    %514 = arith.addf %513, %512 : vector<8x33xf32>
    %515 = arith.mulf %501, %514 : vector<8x33xf32>
    %cst_159 = arith.constant 1.000000e+00 : f32
    %516 = vector.broadcast %cst_159 : f32 to vector<8x33xf32>
    %517 = arith.addf %516, %515 : vector<8x33xf32>
    %518 = arith.mulf %500, %517 : vector<8x33xf32>
    %519 = arith.mulf %518, %518 : vector<8x33xf32>
    %520 = vector.broadcast %477 : vector<8x1xf32> to vector<8x33xf32>
    %521 = arith.mulf %520, %519 : vector<8x33xf32>
    %522 = arith.addf %475, %521 : vector<8x33xf32>
    %523 = vector.extract_strided_slice %2 {offsets = [0, 199], sizes = [8, 56], strides = [1, 1]} : vector<8x512xf32> to vector<8x56xf32>
    %524 = vector.extract_strided_slice %2 {offsets = [0, 255], sizes = [8, 1], strides = [1, 1]} : vector<8x512xf32> to vector<8x1xf32>
    %cst_160 = arith.constant 0.000000e+00 : f32
    %525 = vector.broadcast %cst_160 : f32 to vector<8x27xf32>
    %526 = tpu.concatenate %525, %522, %525 in 1 : vector<8x27xf32>, vector<8x33xf32>, vector<8x27xf32> -> vector<8x87xf32>
    %527 = vector.extract_strided_slice %526 {offsets = [0, 0], sizes = [8, 33], strides = [1, 1]} : vector<8x87xf32> to vector<8x33xf32>
    %528 = vector.extract_strided_slice %526 {offsets = [0, 9], sizes = [8, 33], strides = [1, 1]} : vector<8x87xf32> to vector<8x33xf32>
    %529 = vector.extract_strided_slice %526 {offsets = [0, 18], sizes = [8, 33], strides = [1, 1]} : vector<8x87xf32> to vector<8x33xf32>
    %530 = vector.extract_strided_slice %526 {offsets = [0, 27], sizes = [8, 33], strides = [1, 1]} : vector<8x87xf32> to vector<8x33xf32>
    %531 = vector.extract_strided_slice %526 {offsets = [0, 36], sizes = [8, 33], strides = [1, 1]} : vector<8x87xf32> to vector<8x33xf32>
    %532 = vector.extract_strided_slice %526 {offsets = [0, 45], sizes = [8, 33], strides = [1, 1]} : vector<8x87xf32> to vector<8x33xf32>
    %533 = vector.extract_strided_slice %526 {offsets = [0, 54], sizes = [8, 33], strides = [1, 1]} : vector<8x87xf32> to vector<8x33xf32>
    %534 = tpu.concatenate %527, %528, %529, %530, %531, %532, %533 in 0 : vector<8x33xf32>, vector<8x33xf32>, vector<8x33xf32>, vector<8x33xf32>, vector<8x33xf32>, vector<8x33xf32>, vector<8x33xf32> -> vector<56x33xf32>
    %cst_161 = arith.constant dense<0.000000e+00> : vector<8x33xf32>
    %535 = tpu.matmul %523, %534, %cst_161 {dimension_numbers = #tpu.dot_dimension_numbers<[1], [0], [0], [1], [0, 0, 1, 1], [], []>} : vector<8x56xf32>, vector<56x33xf32>, vector<8x33xf32> -> vector<8x33xf32>
    %536 = vector.broadcast %524 : vector<8x1xf32> to vector<8x33xf32>
    %537 = arith.addf %535, %536 : vector<8x33xf32>
    %538 = vector.extract_strided_slice %2 {offsets = [0, 256], sizes = [8, 1], strides = [1, 1]} : vector<8x512xf32> to vector<8x1xf32>
    %539 = vector.extract_strided_slice %2 {offsets = [0, 257], sizes = [8, 1], strides = [1, 1]} : vector<8x512xf32> to vector<8x1xf32>
    %540 = vector.broadcast %538 : vector<8x1xf32> to vector<8x33xf32>
    %541 = arith.mulf %540, %537 : vector<8x33xf32>
    %cst_162 = arith.constant 0.159154937 : f32
    %542 = vector.broadcast %cst_162 : f32 to vector<8x33xf32>
    %543 = arith.mulf %541, %542 : vector<8x33xf32>
    %cst_163 = arith.constant 5.000000e-01 : f32
    %544 = vector.broadcast %cst_163 : f32 to vector<8x33xf32>
    %545 = arith.addf %543, %544 : vector<8x33xf32>
    %546 = math.floor %545 : vector<8x33xf32>
    %cst_164 = arith.constant 6.281250e+00 : f32
    %547 = vector.broadcast %cst_164 : f32 to vector<8x33xf32>
    %548 = arith.mulf %546, %547 : vector<8x33xf32>
    %549 = arith.subf %541, %548 : vector<8x33xf32>
    %cst_165 = arith.constant 0.00193530717 : f32
    %550 = vector.broadcast %cst_165 : f32 to vector<8x33xf32>
    %551 = arith.mulf %546, %550 : vector<8x33xf32>
    %552 = arith.subf %549, %551 : vector<8x33xf32>
    %cst_166 = arith.constant 1.57079637 : f32
    %553 = vector.broadcast %cst_166 : f32 to vector<8x33xf32>
    %554 = arith.cmpf ogt, %552, %553 : vector<8x33xf32>
    %cst_167 = arith.constant 3.14159274 : f32
    %555 = vector.broadcast %cst_167 : f32 to vector<8x33xf32>
    %556 = arith.subf %555, %552 : vector<8x33xf32>
    %557 = arith.select %554, %556, %552 : vector<8x33xi1>, vector<8x33xf32>
    %cst_168 = arith.constant -1.57079637 : f32
    %558 = vector.broadcast %cst_168 : f32 to vector<8x33xf32>
    %559 = arith.cmpf olt, %557, %558 : vector<8x33xf32>
    %cst_169 = arith.constant -3.14159274 : f32
    %560 = vector.broadcast %cst_169 : f32 to vector<8x33xf32>
    %561 = arith.subf %560, %557 : vector<8x33xf32>
    %562 = arith.select %559, %561, %557 : vector<8x33xi1>, vector<8x33xf32>
    %563 = arith.mulf %562, %562 : vector<8x33xf32>
    %cst_170 = arith.constant 2.50521079E-8 : f32
    %564 = vector.broadcast %cst_170 : f32 to vector<8x33xf32>
    %565 = arith.mulf %563, %564 : vector<8x33xf32>
    %cst_171 = arith.constant 2.75573188E-6 : f32
    %566 = vector.broadcast %cst_171 : f32 to vector<8x33xf32>
    %567 = arith.subf %566, %565 : vector<8x33xf32>
    %568 = arith.mulf %563, %567 : vector<8x33xf32>
    %cst_172 = arith.constant -1.98412701E-4 : f32
    %569 = vector.broadcast %cst_172 : f32 to vector<8x33xf32>
    %570 = arith.addf %569, %568 : vector<8x33xf32>
    %571 = arith.mulf %563, %570 : vector<8x33xf32>
    %cst_173 = arith.constant 0.00833333377 : f32
    %572 = vector.broadcast %cst_173 : f32 to vector<8x33xf32>
    %573 = arith.addf %572, %571 : vector<8x33xf32>
    %574 = arith.mulf %563, %573 : vector<8x33xf32>
    %cst_174 = arith.constant -0.166666672 : f32
    %575 = vector.broadcast %cst_174 : f32 to vector<8x33xf32>
    %576 = arith.addf %575, %574 : vector<8x33xf32>
    %577 = arith.mulf %563, %576 : vector<8x33xf32>
    %cst_175 = arith.constant 1.000000e+00 : f32
    %578 = vector.broadcast %cst_175 : f32 to vector<8x33xf32>
    %579 = arith.addf %578, %577 : vector<8x33xf32>
    %580 = arith.mulf %562, %579 : vector<8x33xf32>
    %581 = arith.mulf %580, %580 : vector<8x33xf32>
    %582 = vector.broadcast %539 : vector<8x1xf32> to vector<8x33xf32>
    %583 = arith.mulf %582, %581 : vector<8x33xf32>
    %584 = arith.addf %537, %583 : vector<8x33xf32>
    %585 = vector.extract_strided_slice %2 {offsets = [0, 258], sizes = [8, 8], strides = [1, 1]} : vector<8x512xf32> to vector<8x8xf32>
    %586 = vector.extract_strided_slice %2 {offsets = [0, 266], sizes = [8, 1], strides = [1, 1]} : vector<8x512xf32> to vector<8x1xf32>
    %cst_176 = arith.constant dense<0.000000e+00> : vector<8x33xf32>
    %587 = tpu.matmul %585, %584, %cst_176 {dimension_numbers = #tpu.dot_dimension_numbers<[1], [0], [0], [1], [0, 0, 1, 1], [], []>} : vector<8x8xf32>, vector<8x33xf32>, vector<8x33xf32> -> vector<8x33xf32>
    %588 = vector.broadcast %586 : vector<8x1xf32> to vector<8x33xf32>
    %589 = arith.addf %587, %588 : vector<8x33xf32>
    %590 = arith.addf %475, %589 : vector<8x33xf32>
    %591 = vector.extract_strided_slice %2 {offsets = [0, 267], sizes = [8, 1], strides = [1, 1]} : vector<8x512xf32> to vector<8x1xf32>
    %592 = vector.extract_strided_slice %2 {offsets = [0, 268], sizes = [8, 1], strides = [1, 1]} : vector<8x512xf32> to vector<8x1xf32>
    %593 = vector.broadcast %591 : vector<8x1xf32> to vector<8x33xf32>
    %594 = arith.mulf %593, %590 : vector<8x33xf32>
    %cst_177 = arith.constant 0.159154937 : f32
    %595 = vector.broadcast %cst_177 : f32 to vector<8x33xf32>
    %596 = arith.mulf %594, %595 : vector<8x33xf32>
    %cst_178 = arith.constant 5.000000e-01 : f32
    %597 = vector.broadcast %cst_178 : f32 to vector<8x33xf32>
    %598 = arith.addf %596, %597 : vector<8x33xf32>
    %599 = math.floor %598 : vector<8x33xf32>
    %cst_179 = arith.constant 6.281250e+00 : f32
    %600 = vector.broadcast %cst_179 : f32 to vector<8x33xf32>
    %601 = arith.mulf %599, %600 : vector<8x33xf32>
    %602 = arith.subf %594, %601 : vector<8x33xf32>
    %cst_180 = arith.constant 0.00193530717 : f32
    %603 = vector.broadcast %cst_180 : f32 to vector<8x33xf32>
    %604 = arith.mulf %599, %603 : vector<8x33xf32>
    %605 = arith.subf %602, %604 : vector<8x33xf32>
    %cst_181 = arith.constant 1.57079637 : f32
    %606 = vector.broadcast %cst_181 : f32 to vector<8x33xf32>
    %607 = arith.cmpf ogt, %605, %606 : vector<8x33xf32>
    %cst_182 = arith.constant 3.14159274 : f32
    %608 = vector.broadcast %cst_182 : f32 to vector<8x33xf32>
    %609 = arith.subf %608, %605 : vector<8x33xf32>
    %610 = arith.select %607, %609, %605 : vector<8x33xi1>, vector<8x33xf32>
    %cst_183 = arith.constant -1.57079637 : f32
    %611 = vector.broadcast %cst_183 : f32 to vector<8x33xf32>
    %612 = arith.cmpf olt, %610, %611 : vector<8x33xf32>
    %cst_184 = arith.constant -3.14159274 : f32
    %613 = vector.broadcast %cst_184 : f32 to vector<8x33xf32>
    %614 = arith.subf %613, %610 : vector<8x33xf32>
    %615 = arith.select %612, %614, %610 : vector<8x33xi1>, vector<8x33xf32>
    %616 = arith.mulf %615, %615 : vector<8x33xf32>
    %cst_185 = arith.constant 2.50521079E-8 : f32
    %617 = vector.broadcast %cst_185 : f32 to vector<8x33xf32>
    %618 = arith.mulf %616, %617 : vector<8x33xf32>
    %cst_186 = arith.constant 2.75573188E-6 : f32
    %619 = vector.broadcast %cst_186 : f32 to vector<8x33xf32>
    %620 = arith.subf %619, %618 : vector<8x33xf32>
    %621 = arith.mulf %616, %620 : vector<8x33xf32>
    %cst_187 = arith.constant -1.98412701E-4 : f32
    %622 = vector.broadcast %cst_187 : f32 to vector<8x33xf32>
    %623 = arith.addf %622, %621 : vector<8x33xf32>
    %624 = arith.mulf %616, %623 : vector<8x33xf32>
    %cst_188 = arith.constant 0.00833333377 : f32
    %625 = vector.broadcast %cst_188 : f32 to vector<8x33xf32>
    %626 = arith.addf %625, %624 : vector<8x33xf32>
    %627 = arith.mulf %616, %626 : vector<8x33xf32>
    %cst_189 = arith.constant -0.166666672 : f32
    %628 = vector.broadcast %cst_189 : f32 to vector<8x33xf32>
    %629 = arith.addf %628, %627 : vector<8x33xf32>
    %630 = arith.mulf %616, %629 : vector<8x33xf32>
    %cst_190 = arith.constant 1.000000e+00 : f32
    %631 = vector.broadcast %cst_190 : f32 to vector<8x33xf32>
    %632 = arith.addf %631, %630 : vector<8x33xf32>
    %633 = arith.mulf %615, %632 : vector<8x33xf32>
    %634 = arith.mulf %633, %633 : vector<8x33xf32>
    %635 = vector.broadcast %592 : vector<8x1xf32> to vector<8x33xf32>
    %636 = arith.mulf %635, %634 : vector<8x33xf32>
    %637 = arith.addf %590, %636 : vector<8x33xf32>
    %638 = vector.extract_strided_slice %2 {offsets = [0, 269], sizes = [4, 16], strides = [1, 1]} : vector<8x512xf32> to vector<4x16xf32>
    %639 = vector.extract_strided_slice %2 {offsets = [0, 285], sizes = [4, 1], strides = [1, 1]} : vector<8x512xf32> to vector<4x1xf32>
    %640 = vector.extract_strided_slice %637 {offsets = [0, 0], sizes = [8, 32], strides = [1, 1]} : vector<8x33xf32> to vector<8x32xf32>
    %641 = vector.extract_strided_slice %637 {offsets = [0, 1], sizes = [8, 32], strides = [1, 1]} : vector<8x33xf32> to vector<8x32xf32>
    %642 = tpu.concatenate %640, %641 in 0 : vector<8x32xf32>, vector<8x32xf32> -> vector<16x32xf32>
    %cst_191 = arith.constant dense<0.000000e+00> : vector<4x32xf32>
    %643 = tpu.matmul %638, %642, %cst_191 {dimension_numbers = #tpu.dot_dimension_numbers<[1], [0], [0], [1], [0, 0, 1, 1], [], []>} : vector<4x16xf32>, vector<16x32xf32>, vector<4x32xf32> -> vector<4x32xf32>
    %644 = vector.broadcast %639 : vector<4x1xf32> to vector<4x32xf32>
    %645 = arith.addf %643, %644 : vector<4x32xf32>
    %646 = vector.extract_strided_slice %2 {offsets = [0, 286], sizes = [4, 1], strides = [1, 1]} : vector<8x512xf32> to vector<4x1xf32>
    %647 = vector.extract_strided_slice %2 {offsets = [0, 287], sizes = [4, 1], strides = [1, 1]} : vector<8x512xf32> to vector<4x1xf32>
    %648 = vector.broadcast %646 : vector<4x1xf32> to vector<4x32xf32>
    %649 = arith.mulf %648, %645 : vector<4x32xf32>
    %cst_192 = arith.constant 0.159154937 : f32
    %650 = vector.broadcast %cst_192 : f32 to vector<4x32xf32>
    %651 = arith.mulf %649, %650 : vector<4x32xf32>
    %cst_193 = arith.constant 5.000000e-01 : f32
    %652 = vector.broadcast %cst_193 : f32 to vector<4x32xf32>
    %653 = arith.addf %651, %652 : vector<4x32xf32>
    %654 = math.floor %653 : vector<4x32xf32>
    %cst_194 = arith.constant 6.281250e+00 : f32
    %655 = vector.broadcast %cst_194 : f32 to vector<4x32xf32>
    %656 = arith.mulf %654, %655 : vector<4x32xf32>
    %657 = arith.subf %649, %656 : vector<4x32xf32>
    %cst_195 = arith.constant 0.00193530717 : f32
    %658 = vector.broadcast %cst_195 : f32 to vector<4x32xf32>
    %659 = arith.mulf %654, %658 : vector<4x32xf32>
    %660 = arith.subf %657, %659 : vector<4x32xf32>
    %cst_196 = arith.constant 1.57079637 : f32
    %661 = vector.broadcast %cst_196 : f32 to vector<4x32xf32>
    %662 = arith.cmpf ogt, %660, %661 : vector<4x32xf32>
    %cst_197 = arith.constant 3.14159274 : f32
    %663 = vector.broadcast %cst_197 : f32 to vector<4x32xf32>
    %664 = arith.subf %663, %660 : vector<4x32xf32>
    %665 = arith.select %662, %664, %660 : vector<4x32xi1>, vector<4x32xf32>
    %cst_198 = arith.constant -1.57079637 : f32
    %666 = vector.broadcast %cst_198 : f32 to vector<4x32xf32>
    %667 = arith.cmpf olt, %665, %666 : vector<4x32xf32>
    %cst_199 = arith.constant -3.14159274 : f32
    %668 = vector.broadcast %cst_199 : f32 to vector<4x32xf32>
    %669 = arith.subf %668, %665 : vector<4x32xf32>
    %670 = arith.select %667, %669, %665 : vector<4x32xi1>, vector<4x32xf32>
    %671 = arith.mulf %670, %670 : vector<4x32xf32>
    %cst_200 = arith.constant 2.50521079E-8 : f32
    %672 = vector.broadcast %cst_200 : f32 to vector<4x32xf32>
    %673 = arith.mulf %671, %672 : vector<4x32xf32>
    %cst_201 = arith.constant 2.75573188E-6 : f32
    %674 = vector.broadcast %cst_201 : f32 to vector<4x32xf32>
    %675 = arith.subf %674, %673 : vector<4x32xf32>
    %676 = arith.mulf %671, %675 : vector<4x32xf32>
    %cst_202 = arith.constant -1.98412701E-4 : f32
    %677 = vector.broadcast %cst_202 : f32 to vector<4x32xf32>
    %678 = arith.addf %677, %676 : vector<4x32xf32>
    %679 = arith.mulf %671, %678 : vector<4x32xf32>
    %cst_203 = arith.constant 0.00833333377 : f32
    %680 = vector.broadcast %cst_203 : f32 to vector<4x32xf32>
    %681 = arith.addf %680, %679 : vector<4x32xf32>
    %682 = arith.mulf %671, %681 : vector<4x32xf32>
    %cst_204 = arith.constant -0.166666672 : f32
    %683 = vector.broadcast %cst_204 : f32 to vector<4x32xf32>
    %684 = arith.addf %683, %682 : vector<4x32xf32>
    %685 = arith.mulf %671, %684 : vector<4x32xf32>
    %cst_205 = arith.constant 1.000000e+00 : f32
    %686 = vector.broadcast %cst_205 : f32 to vector<4x32xf32>
    %687 = arith.addf %686, %685 : vector<4x32xf32>
    %688 = arith.mulf %670, %687 : vector<4x32xf32>
    %689 = arith.mulf %688, %688 : vector<4x32xf32>
    %690 = vector.broadcast %647 : vector<4x1xf32> to vector<4x32xf32>
    %691 = arith.mulf %690, %689 : vector<4x32xf32>
    %692 = arith.addf %645, %691 : vector<4x32xf32>
    %693 = vector.extract_strided_slice %2 {offsets = [0, 288], sizes = [4, 28], strides = [1, 1]} : vector<8x512xf32> to vector<4x28xf32>
    %694 = vector.extract_strided_slice %2 {offsets = [0, 316], sizes = [4, 1], strides = [1, 1]} : vector<8x512xf32> to vector<4x1xf32>
    %cst_206 = arith.constant 0.000000e+00 : f32
    %695 = vector.broadcast %cst_206 : f32 to vector<4x3xf32>
    %696 = tpu.concatenate %695, %692, %695 in 1 : vector<4x3xf32>, vector<4x32xf32>, vector<4x3xf32> -> vector<4x38xf32>
    %697 = vector.extract_strided_slice %696 {offsets = [0, 0], sizes = [4, 32], strides = [1, 1]} : vector<4x38xf32> to vector<4x32xf32>
    %698 = vector.extract_strided_slice %696 {offsets = [0, 1], sizes = [4, 32], strides = [1, 1]} : vector<4x38xf32> to vector<4x32xf32>
    %699 = vector.extract_strided_slice %696 {offsets = [0, 2], sizes = [4, 32], strides = [1, 1]} : vector<4x38xf32> to vector<4x32xf32>
    %700 = vector.extract_strided_slice %696 {offsets = [0, 3], sizes = [4, 32], strides = [1, 1]} : vector<4x38xf32> to vector<4x32xf32>
    %701 = vector.extract_strided_slice %696 {offsets = [0, 4], sizes = [4, 32], strides = [1, 1]} : vector<4x38xf32> to vector<4x32xf32>
    %702 = vector.extract_strided_slice %696 {offsets = [0, 5], sizes = [4, 32], strides = [1, 1]} : vector<4x38xf32> to vector<4x32xf32>
    %703 = vector.extract_strided_slice %696 {offsets = [0, 6], sizes = [4, 32], strides = [1, 1]} : vector<4x38xf32> to vector<4x32xf32>
    %704 = tpu.concatenate %697, %698, %699, %700, %701, %702, %703 in 0 : vector<4x32xf32>, vector<4x32xf32>, vector<4x32xf32>, vector<4x32xf32>, vector<4x32xf32>, vector<4x32xf32>, vector<4x32xf32> -> vector<28x32xf32>
    %cst_207 = arith.constant dense<0.000000e+00> : vector<4x32xf32>
    %705 = tpu.matmul %693, %704, %cst_207 {dimension_numbers = #tpu.dot_dimension_numbers<[1], [0], [0], [1], [0, 0, 1, 1], [], []>} : vector<4x28xf32>, vector<28x32xf32>, vector<4x32xf32> -> vector<4x32xf32>
    %706 = vector.broadcast %694 : vector<4x1xf32> to vector<4x32xf32>
    %707 = arith.addf %705, %706 : vector<4x32xf32>
    %708 = vector.extract_strided_slice %2 {offsets = [0, 317], sizes = [4, 1], strides = [1, 1]} : vector<8x512xf32> to vector<4x1xf32>
    %709 = vector.extract_strided_slice %2 {offsets = [0, 318], sizes = [4, 1], strides = [1, 1]} : vector<8x512xf32> to vector<4x1xf32>
    %710 = vector.broadcast %708 : vector<4x1xf32> to vector<4x32xf32>
    %711 = arith.mulf %710, %707 : vector<4x32xf32>
    %cst_208 = arith.constant 0.159154937 : f32
    %712 = vector.broadcast %cst_208 : f32 to vector<4x32xf32>
    %713 = arith.mulf %711, %712 : vector<4x32xf32>
    %cst_209 = arith.constant 5.000000e-01 : f32
    %714 = vector.broadcast %cst_209 : f32 to vector<4x32xf32>
    %715 = arith.addf %713, %714 : vector<4x32xf32>
    %716 = math.floor %715 : vector<4x32xf32>
    %cst_210 = arith.constant 6.281250e+00 : f32
    %717 = vector.broadcast %cst_210 : f32 to vector<4x32xf32>
    %718 = arith.mulf %716, %717 : vector<4x32xf32>
    %719 = arith.subf %711, %718 : vector<4x32xf32>
    %cst_211 = arith.constant 0.00193530717 : f32
    %720 = vector.broadcast %cst_211 : f32 to vector<4x32xf32>
    %721 = arith.mulf %716, %720 : vector<4x32xf32>
    %722 = arith.subf %719, %721 : vector<4x32xf32>
    %cst_212 = arith.constant 1.57079637 : f32
    %723 = vector.broadcast %cst_212 : f32 to vector<4x32xf32>
    %724 = arith.cmpf ogt, %722, %723 : vector<4x32xf32>
    %cst_213 = arith.constant 3.14159274 : f32
    %725 = vector.broadcast %cst_213 : f32 to vector<4x32xf32>
    %726 = arith.subf %725, %722 : vector<4x32xf32>
    %727 = arith.select %724, %726, %722 : vector<4x32xi1>, vector<4x32xf32>
    %cst_214 = arith.constant -1.57079637 : f32
    %728 = vector.broadcast %cst_214 : f32 to vector<4x32xf32>
    %729 = arith.cmpf olt, %727, %728 : vector<4x32xf32>
    %cst_215 = arith.constant -3.14159274 : f32
    %730 = vector.broadcast %cst_215 : f32 to vector<4x32xf32>
    %731 = arith.subf %730, %727 : vector<4x32xf32>
    %732 = arith.select %729, %731, %727 : vector<4x32xi1>, vector<4x32xf32>
    %733 = arith.mulf %732, %732 : vector<4x32xf32>
    %cst_216 = arith.constant 2.50521079E-8 : f32
    %734 = vector.broadcast %cst_216 : f32 to vector<4x32xf32>
    %735 = arith.mulf %733, %734 : vector<4x32xf32>
    %cst_217 = arith.constant 2.75573188E-6 : f32
    %736 = vector.broadcast %cst_217 : f32 to vector<4x32xf32>
    %737 = arith.subf %736, %735 : vector<4x32xf32>
    %738 = arith.mulf %733, %737 : vector<4x32xf32>
    %cst_218 = arith.constant -1.98412701E-4 : f32
    %739 = vector.broadcast %cst_218 : f32 to vector<4x32xf32>
    %740 = arith.addf %739, %738 : vector<4x32xf32>
    %741 = arith.mulf %733, %740 : vector<4x32xf32>
    %cst_219 = arith.constant 0.00833333377 : f32
    %742 = vector.broadcast %cst_219 : f32 to vector<4x32xf32>
    %743 = arith.addf %742, %741 : vector<4x32xf32>
    %744 = arith.mulf %733, %743 : vector<4x32xf32>
    %cst_220 = arith.constant -0.166666672 : f32
    %745 = vector.broadcast %cst_220 : f32 to vector<4x32xf32>
    %746 = arith.addf %745, %744 : vector<4x32xf32>
    %747 = arith.mulf %733, %746 : vector<4x32xf32>
    %cst_221 = arith.constant 1.000000e+00 : f32
    %748 = vector.broadcast %cst_221 : f32 to vector<4x32xf32>
    %749 = arith.addf %748, %747 : vector<4x32xf32>
    %750 = arith.mulf %732, %749 : vector<4x32xf32>
    %751 = arith.mulf %750, %750 : vector<4x32xf32>
    %752 = vector.broadcast %709 : vector<4x1xf32> to vector<4x32xf32>
    %753 = arith.mulf %752, %751 : vector<4x32xf32>
    %754 = arith.addf %707, %753 : vector<4x32xf32>
    %755 = vector.extract_strided_slice %2 {offsets = [0, 319], sizes = [4, 4], strides = [1, 1]} : vector<8x512xf32> to vector<4x4xf32>
    %756 = vector.extract_strided_slice %2 {offsets = [0, 323], sizes = [4, 1], strides = [1, 1]} : vector<8x512xf32> to vector<4x1xf32>
    %cst_222 = arith.constant dense<0.000000e+00> : vector<4x32xf32>
    %757 = tpu.matmul %755, %754, %cst_222 {dimension_numbers = #tpu.dot_dimension_numbers<[1], [0], [0], [1], [0, 0, 1, 1], [], []>} : vector<4x4xf32>, vector<4x32xf32>, vector<4x32xf32> -> vector<4x32xf32>
    %758 = vector.broadcast %756 : vector<4x1xf32> to vector<4x32xf32>
    %759 = arith.addf %757, %758 : vector<4x32xf32>
    %760 = arith.addf %645, %759 : vector<4x32xf32>
    %761 = vector.extract_strided_slice %2 {offsets = [0, 324], sizes = [4, 1], strides = [1, 1]} : vector<8x512xf32> to vector<4x1xf32>
    %762 = vector.extract_strided_slice %2 {offsets = [0, 325], sizes = [4, 1], strides = [1, 1]} : vector<8x512xf32> to vector<4x1xf32>
    %763 = vector.broadcast %761 : vector<4x1xf32> to vector<4x32xf32>
    %764 = arith.mulf %763, %760 : vector<4x32xf32>
    %cst_223 = arith.constant 0.159154937 : f32
    %765 = vector.broadcast %cst_223 : f32 to vector<4x32xf32>
    %766 = arith.mulf %764, %765 : vector<4x32xf32>
    %cst_224 = arith.constant 5.000000e-01 : f32
    %767 = vector.broadcast %cst_224 : f32 to vector<4x32xf32>
    %768 = arith.addf %766, %767 : vector<4x32xf32>
    %769 = math.floor %768 : vector<4x32xf32>
    %cst_225 = arith.constant 6.281250e+00 : f32
    %770 = vector.broadcast %cst_225 : f32 to vector<4x32xf32>
    %771 = arith.mulf %769, %770 : vector<4x32xf32>
    %772 = arith.subf %764, %771 : vector<4x32xf32>
    %cst_226 = arith.constant 0.00193530717 : f32
    %773 = vector.broadcast %cst_226 : f32 to vector<4x32xf32>
    %774 = arith.mulf %769, %773 : vector<4x32xf32>
    %775 = arith.subf %772, %774 : vector<4x32xf32>
    %cst_227 = arith.constant 1.57079637 : f32
    %776 = vector.broadcast %cst_227 : f32 to vector<4x32xf32>
    %777 = arith.cmpf ogt, %775, %776 : vector<4x32xf32>
    %cst_228 = arith.constant 3.14159274 : f32
    %778 = vector.broadcast %cst_228 : f32 to vector<4x32xf32>
    %779 = arith.subf %778, %775 : vector<4x32xf32>
    %780 = arith.select %777, %779, %775 : vector<4x32xi1>, vector<4x32xf32>
    %cst_229 = arith.constant -1.57079637 : f32
    %781 = vector.broadcast %cst_229 : f32 to vector<4x32xf32>
    %782 = arith.cmpf olt, %780, %781 : vector<4x32xf32>
    %cst_230 = arith.constant -3.14159274 : f32
    %783 = vector.broadcast %cst_230 : f32 to vector<4x32xf32>
    %784 = arith.subf %783, %780 : vector<4x32xf32>
    %785 = arith.select %782, %784, %780 : vector<4x32xi1>, vector<4x32xf32>
    %786 = arith.mulf %785, %785 : vector<4x32xf32>
    %cst_231 = arith.constant 2.50521079E-8 : f32
    %787 = vector.broadcast %cst_231 : f32 to vector<4x32xf32>
    %788 = arith.mulf %786, %787 : vector<4x32xf32>
    %cst_232 = arith.constant 2.75573188E-6 : f32
    %789 = vector.broadcast %cst_232 : f32 to vector<4x32xf32>
    %790 = arith.subf %789, %788 : vector<4x32xf32>
    %791 = arith.mulf %786, %790 : vector<4x32xf32>
    %cst_233 = arith.constant -1.98412701E-4 : f32
    %792 = vector.broadcast %cst_233 : f32 to vector<4x32xf32>
    %793 = arith.addf %792, %791 : vector<4x32xf32>
    %794 = arith.mulf %786, %793 : vector<4x32xf32>
    %cst_234 = arith.constant 0.00833333377 : f32
    %795 = vector.broadcast %cst_234 : f32 to vector<4x32xf32>
    %796 = arith.addf %795, %794 : vector<4x32xf32>
    %797 = arith.mulf %786, %796 : vector<4x32xf32>
    %cst_235 = arith.constant -0.166666672 : f32
    %798 = vector.broadcast %cst_235 : f32 to vector<4x32xf32>
    %799 = arith.addf %798, %797 : vector<4x32xf32>
    %800 = arith.mulf %786, %799 : vector<4x32xf32>
    %cst_236 = arith.constant 1.000000e+00 : f32
    %801 = vector.broadcast %cst_236 : f32 to vector<4x32xf32>
    %802 = arith.addf %801, %800 : vector<4x32xf32>
    %803 = arith.mulf %785, %802 : vector<4x32xf32>
    %804 = arith.mulf %803, %803 : vector<4x32xf32>
    %805 = vector.broadcast %762 : vector<4x1xf32> to vector<4x32xf32>
    %806 = arith.mulf %805, %804 : vector<4x32xf32>
    %807 = arith.addf %760, %806 : vector<4x32xf32>
    %808 = vector.extract_strided_slice %2 {offsets = [0, 326], sizes = [4, 28], strides = [1, 1]} : vector<8x512xf32> to vector<4x28xf32>
    %809 = vector.extract_strided_slice %2 {offsets = [0, 354], sizes = [4, 1], strides = [1, 1]} : vector<8x512xf32> to vector<4x1xf32>
    %cst_237 = arith.constant 0.000000e+00 : f32
    %810 = vector.broadcast %cst_237 : f32 to vector<4x9xf32>
    %811 = tpu.concatenate %810, %807, %810 in 1 : vector<4x9xf32>, vector<4x32xf32>, vector<4x9xf32> -> vector<4x50xf32>
    %812 = vector.extract_strided_slice %811 {offsets = [0, 0], sizes = [4, 32], strides = [1, 1]} : vector<4x50xf32> to vector<4x32xf32>
    %813 = vector.extract_strided_slice %811 {offsets = [0, 3], sizes = [4, 32], strides = [1, 1]} : vector<4x50xf32> to vector<4x32xf32>
    %814 = vector.extract_strided_slice %811 {offsets = [0, 6], sizes = [4, 32], strides = [1, 1]} : vector<4x50xf32> to vector<4x32xf32>
    %815 = vector.extract_strided_slice %811 {offsets = [0, 9], sizes = [4, 32], strides = [1, 1]} : vector<4x50xf32> to vector<4x32xf32>
    %816 = vector.extract_strided_slice %811 {offsets = [0, 12], sizes = [4, 32], strides = [1, 1]} : vector<4x50xf32> to vector<4x32xf32>
    %817 = vector.extract_strided_slice %811 {offsets = [0, 15], sizes = [4, 32], strides = [1, 1]} : vector<4x50xf32> to vector<4x32xf32>
    %818 = vector.extract_strided_slice %811 {offsets = [0, 18], sizes = [4, 32], strides = [1, 1]} : vector<4x50xf32> to vector<4x32xf32>
    %819 = tpu.concatenate %812, %813, %814, %815, %816, %817, %818 in 0 : vector<4x32xf32>, vector<4x32xf32>, vector<4x32xf32>, vector<4x32xf32>, vector<4x32xf32>, vector<4x32xf32>, vector<4x32xf32> -> vector<28x32xf32>
    %cst_238 = arith.constant dense<0.000000e+00> : vector<4x32xf32>
    %820 = tpu.matmul %808, %819, %cst_238 {dimension_numbers = #tpu.dot_dimension_numbers<[1], [0], [0], [1], [0, 0, 1, 1], [], []>} : vector<4x28xf32>, vector<28x32xf32>, vector<4x32xf32> -> vector<4x32xf32>
    %821 = vector.broadcast %809 : vector<4x1xf32> to vector<4x32xf32>
    %822 = arith.addf %820, %821 : vector<4x32xf32>
    %823 = vector.extract_strided_slice %2 {offsets = [0, 355], sizes = [4, 1], strides = [1, 1]} : vector<8x512xf32> to vector<4x1xf32>
    %824 = vector.extract_strided_slice %2 {offsets = [0, 356], sizes = [4, 1], strides = [1, 1]} : vector<8x512xf32> to vector<4x1xf32>
    %825 = vector.broadcast %823 : vector<4x1xf32> to vector<4x32xf32>
    %826 = arith.mulf %825, %822 : vector<4x32xf32>
    %cst_239 = arith.constant 0.159154937 : f32
    %827 = vector.broadcast %cst_239 : f32 to vector<4x32xf32>
    %828 = arith.mulf %826, %827 : vector<4x32xf32>
    %cst_240 = arith.constant 5.000000e-01 : f32
    %829 = vector.broadcast %cst_240 : f32 to vector<4x32xf32>
    %830 = arith.addf %828, %829 : vector<4x32xf32>
    %831 = math.floor %830 : vector<4x32xf32>
    %cst_241 = arith.constant 6.281250e+00 : f32
    %832 = vector.broadcast %cst_241 : f32 to vector<4x32xf32>
    %833 = arith.mulf %831, %832 : vector<4x32xf32>
    %834 = arith.subf %826, %833 : vector<4x32xf32>
    %cst_242 = arith.constant 0.00193530717 : f32
    %835 = vector.broadcast %cst_242 : f32 to vector<4x32xf32>
    %836 = arith.mulf %831, %835 : vector<4x32xf32>
    %837 = arith.subf %834, %836 : vector<4x32xf32>
    %cst_243 = arith.constant 1.57079637 : f32
    %838 = vector.broadcast %cst_243 : f32 to vector<4x32xf32>
    %839 = arith.cmpf ogt, %837, %838 : vector<4x32xf32>
    %cst_244 = arith.constant 3.14159274 : f32
    %840 = vector.broadcast %cst_244 : f32 to vector<4x32xf32>
    %841 = arith.subf %840, %837 : vector<4x32xf32>
    %842 = arith.select %839, %841, %837 : vector<4x32xi1>, vector<4x32xf32>
    %cst_245 = arith.constant -1.57079637 : f32
    %843 = vector.broadcast %cst_245 : f32 to vector<4x32xf32>
    %844 = arith.cmpf olt, %842, %843 : vector<4x32xf32>
    %cst_246 = arith.constant -3.14159274 : f32
    %845 = vector.broadcast %cst_246 : f32 to vector<4x32xf32>
    %846 = arith.subf %845, %842 : vector<4x32xf32>
    %847 = arith.select %844, %846, %842 : vector<4x32xi1>, vector<4x32xf32>
    %848 = arith.mulf %847, %847 : vector<4x32xf32>
    %cst_247 = arith.constant 2.50521079E-8 : f32
    %849 = vector.broadcast %cst_247 : f32 to vector<4x32xf32>
    %850 = arith.mulf %848, %849 : vector<4x32xf32>
    %cst_248 = arith.constant 2.75573188E-6 : f32
    %851 = vector.broadcast %cst_248 : f32 to vector<4x32xf32>
    %852 = arith.subf %851, %850 : vector<4x32xf32>
    %853 = arith.mulf %848, %852 : vector<4x32xf32>
    %cst_249 = arith.constant -1.98412701E-4 : f32
    %854 = vector.broadcast %cst_249 : f32 to vector<4x32xf32>
    %855 = arith.addf %854, %853 : vector<4x32xf32>
    %856 = arith.mulf %848, %855 : vector<4x32xf32>
    %cst_250 = arith.constant 0.00833333377 : f32
    %857 = vector.broadcast %cst_250 : f32 to vector<4x32xf32>
    %858 = arith.addf %857, %856 : vector<4x32xf32>
    %859 = arith.mulf %848, %858 : vector<4x32xf32>
    %cst_251 = arith.constant -0.166666672 : f32
    %860 = vector.broadcast %cst_251 : f32 to vector<4x32xf32>
    %861 = arith.addf %860, %859 : vector<4x32xf32>
    %862 = arith.mulf %848, %861 : vector<4x32xf32>
    %cst_252 = arith.constant 1.000000e+00 : f32
    %863 = vector.broadcast %cst_252 : f32 to vector<4x32xf32>
    %864 = arith.addf %863, %862 : vector<4x32xf32>
    %865 = arith.mulf %847, %864 : vector<4x32xf32>
    %866 = arith.mulf %865, %865 : vector<4x32xf32>
    %867 = vector.broadcast %824 : vector<4x1xf32> to vector<4x32xf32>
    %868 = arith.mulf %867, %866 : vector<4x32xf32>
    %869 = arith.addf %822, %868 : vector<4x32xf32>
    %870 = vector.extract_strided_slice %2 {offsets = [0, 357], sizes = [4, 4], strides = [1, 1]} : vector<8x512xf32> to vector<4x4xf32>
    %871 = vector.extract_strided_slice %2 {offsets = [0, 361], sizes = [4, 1], strides = [1, 1]} : vector<8x512xf32> to vector<4x1xf32>
    %cst_253 = arith.constant dense<0.000000e+00> : vector<4x32xf32>
    %872 = tpu.matmul %870, %869, %cst_253 {dimension_numbers = #tpu.dot_dimension_numbers<[1], [0], [0], [1], [0, 0, 1, 1], [], []>} : vector<4x4xf32>, vector<4x32xf32>, vector<4x32xf32> -> vector<4x32xf32>
    %873 = vector.broadcast %871 : vector<4x1xf32> to vector<4x32xf32>
    %874 = arith.addf %872, %873 : vector<4x32xf32>
    %875 = arith.addf %760, %874 : vector<4x32xf32>
    %876 = vector.extract_strided_slice %2 {offsets = [0, 362], sizes = [4, 1], strides = [1, 1]} : vector<8x512xf32> to vector<4x1xf32>
    %877 = vector.extract_strided_slice %2 {offsets = [0, 363], sizes = [4, 1], strides = [1, 1]} : vector<8x512xf32> to vector<4x1xf32>
    %878 = vector.broadcast %876 : vector<4x1xf32> to vector<4x32xf32>
    %879 = arith.mulf %878, %875 : vector<4x32xf32>
    %cst_254 = arith.constant 0.159154937 : f32
    %880 = vector.broadcast %cst_254 : f32 to vector<4x32xf32>
    %881 = arith.mulf %879, %880 : vector<4x32xf32>
    %cst_255 = arith.constant 5.000000e-01 : f32
    %882 = vector.broadcast %cst_255 : f32 to vector<4x32xf32>
    %883 = arith.addf %881, %882 : vector<4x32xf32>
    %884 = math.floor %883 : vector<4x32xf32>
    %cst_256 = arith.constant 6.281250e+00 : f32
    %885 = vector.broadcast %cst_256 : f32 to vector<4x32xf32>
    %886 = arith.mulf %884, %885 : vector<4x32xf32>
    %887 = arith.subf %879, %886 : vector<4x32xf32>
    %cst_257 = arith.constant 0.00193530717 : f32
    %888 = vector.broadcast %cst_257 : f32 to vector<4x32xf32>
    %889 = arith.mulf %884, %888 : vector<4x32xf32>
    %890 = arith.subf %887, %889 : vector<4x32xf32>
    %cst_258 = arith.constant 1.57079637 : f32
    %891 = vector.broadcast %cst_258 : f32 to vector<4x32xf32>
    %892 = arith.cmpf ogt, %890, %891 : vector<4x32xf32>
    %cst_259 = arith.constant 3.14159274 : f32
    %893 = vector.broadcast %cst_259 : f32 to vector<4x32xf32>
    %894 = arith.subf %893, %890 : vector<4x32xf32>
    %895 = arith.select %892, %894, %890 : vector<4x32xi1>, vector<4x32xf32>
    %cst_260 = arith.constant -1.57079637 : f32
    %896 = vector.broadcast %cst_260 : f32 to vector<4x32xf32>
    %897 = arith.cmpf olt, %895, %896 : vector<4x32xf32>
    %cst_261 = arith.constant -3.14159274 : f32
    %898 = vector.broadcast %cst_261 : f32 to vector<4x32xf32>
    %899 = arith.subf %898, %895 : vector<4x32xf32>
    %900 = arith.select %897, %899, %895 : vector<4x32xi1>, vector<4x32xf32>
    %901 = arith.mulf %900, %900 : vector<4x32xf32>
    %cst_262 = arith.constant 2.50521079E-8 : f32
    %902 = vector.broadcast %cst_262 : f32 to vector<4x32xf32>
    %903 = arith.mulf %901, %902 : vector<4x32xf32>
    %cst_263 = arith.constant 2.75573188E-6 : f32
    %904 = vector.broadcast %cst_263 : f32 to vector<4x32xf32>
    %905 = arith.subf %904, %903 : vector<4x32xf32>
    %906 = arith.mulf %901, %905 : vector<4x32xf32>
    %cst_264 = arith.constant -1.98412701E-4 : f32
    %907 = vector.broadcast %cst_264 : f32 to vector<4x32xf32>
    %908 = arith.addf %907, %906 : vector<4x32xf32>
    %909 = arith.mulf %901, %908 : vector<4x32xf32>
    %cst_265 = arith.constant 0.00833333377 : f32
    %910 = vector.broadcast %cst_265 : f32 to vector<4x32xf32>
    %911 = arith.addf %910, %909 : vector<4x32xf32>
    %912 = arith.mulf %901, %911 : vector<4x32xf32>
    %cst_266 = arith.constant -0.166666672 : f32
    %913 = vector.broadcast %cst_266 : f32 to vector<4x32xf32>
    %914 = arith.addf %913, %912 : vector<4x32xf32>
    %915 = arith.mulf %901, %914 : vector<4x32xf32>
    %cst_267 = arith.constant 1.000000e+00 : f32
    %916 = vector.broadcast %cst_267 : f32 to vector<4x32xf32>
    %917 = arith.addf %916, %915 : vector<4x32xf32>
    %918 = arith.mulf %900, %917 : vector<4x32xf32>
    %919 = arith.mulf %918, %918 : vector<4x32xf32>
    %920 = vector.broadcast %877 : vector<4x1xf32> to vector<4x32xf32>
    %921 = arith.mulf %920, %919 : vector<4x32xf32>
    %922 = arith.addf %875, %921 : vector<4x32xf32>
    %923 = vector.extract_strided_slice %2 {offsets = [0, 364], sizes = [4, 28], strides = [1, 1]} : vector<8x512xf32> to vector<4x28xf32>
    %924 = vector.extract_strided_slice %2 {offsets = [0, 392], sizes = [4, 1], strides = [1, 1]} : vector<8x512xf32> to vector<4x1xf32>
    %cst_268 = arith.constant 0.000000e+00 : f32
    %925 = vector.broadcast %cst_268 : f32 to vector<4x27xf32>
    %926 = tpu.concatenate %925, %922, %925 in 1 : vector<4x27xf32>, vector<4x32xf32>, vector<4x27xf32> -> vector<4x86xf32>
    %927 = vector.extract_strided_slice %926 {offsets = [0, 0], sizes = [4, 32], strides = [1, 1]} : vector<4x86xf32> to vector<4x32xf32>
    %928 = vector.extract_strided_slice %926 {offsets = [0, 9], sizes = [4, 32], strides = [1, 1]} : vector<4x86xf32> to vector<4x32xf32>
    %929 = vector.extract_strided_slice %926 {offsets = [0, 18], sizes = [4, 32], strides = [1, 1]} : vector<4x86xf32> to vector<4x32xf32>
    %930 = vector.extract_strided_slice %926 {offsets = [0, 27], sizes = [4, 32], strides = [1, 1]} : vector<4x86xf32> to vector<4x32xf32>
    %931 = vector.extract_strided_slice %926 {offsets = [0, 36], sizes = [4, 32], strides = [1, 1]} : vector<4x86xf32> to vector<4x32xf32>
    %932 = vector.extract_strided_slice %926 {offsets = [0, 45], sizes = [4, 32], strides = [1, 1]} : vector<4x86xf32> to vector<4x32xf32>
    %933 = vector.extract_strided_slice %926 {offsets = [0, 54], sizes = [4, 32], strides = [1, 1]} : vector<4x86xf32> to vector<4x32xf32>
    %934 = tpu.concatenate %927, %928, %929, %930, %931, %932, %933 in 0 : vector<4x32xf32>, vector<4x32xf32>, vector<4x32xf32>, vector<4x32xf32>, vector<4x32xf32>, vector<4x32xf32>, vector<4x32xf32> -> vector<28x32xf32>
    %cst_269 = arith.constant dense<0.000000e+00> : vector<4x32xf32>
    %935 = tpu.matmul %923, %934, %cst_269 {dimension_numbers = #tpu.dot_dimension_numbers<[1], [0], [0], [1], [0, 0, 1, 1], [], []>} : vector<4x28xf32>, vector<28x32xf32>, vector<4x32xf32> -> vector<4x32xf32>
    %936 = vector.broadcast %924 : vector<4x1xf32> to vector<4x32xf32>
    %937 = arith.addf %935, %936 : vector<4x32xf32>
    %938 = vector.extract_strided_slice %2 {offsets = [0, 393], sizes = [4, 1], strides = [1, 1]} : vector<8x512xf32> to vector<4x1xf32>
    %939 = vector.extract_strided_slice %2 {offsets = [0, 394], sizes = [4, 1], strides = [1, 1]} : vector<8x512xf32> to vector<4x1xf32>
    %940 = vector.broadcast %938 : vector<4x1xf32> to vector<4x32xf32>
    %941 = arith.mulf %940, %937 : vector<4x32xf32>
    %cst_270 = arith.constant 0.159154937 : f32
    %942 = vector.broadcast %cst_270 : f32 to vector<4x32xf32>
    %943 = arith.mulf %941, %942 : vector<4x32xf32>
    %cst_271 = arith.constant 5.000000e-01 : f32
    %944 = vector.broadcast %cst_271 : f32 to vector<4x32xf32>
    %945 = arith.addf %943, %944 : vector<4x32xf32>
    %946 = math.floor %945 : vector<4x32xf32>
    %cst_272 = arith.constant 6.281250e+00 : f32
    %947 = vector.broadcast %cst_272 : f32 to vector<4x32xf32>
    %948 = arith.mulf %946, %947 : vector<4x32xf32>
    %949 = arith.subf %941, %948 : vector<4x32xf32>
    %cst_273 = arith.constant 0.00193530717 : f32
    %950 = vector.broadcast %cst_273 : f32 to vector<4x32xf32>
    %951 = arith.mulf %946, %950 : vector<4x32xf32>
    %952 = arith.subf %949, %951 : vector<4x32xf32>
    %cst_274 = arith.constant 1.57079637 : f32
    %953 = vector.broadcast %cst_274 : f32 to vector<4x32xf32>
    %954 = arith.cmpf ogt, %952, %953 : vector<4x32xf32>
    %cst_275 = arith.constant 3.14159274 : f32
    %955 = vector.broadcast %cst_275 : f32 to vector<4x32xf32>
    %956 = arith.subf %955, %952 : vector<4x32xf32>
    %957 = arith.select %954, %956, %952 : vector<4x32xi1>, vector<4x32xf32>
    %cst_276 = arith.constant -1.57079637 : f32
    %958 = vector.broadcast %cst_276 : f32 to vector<4x32xf32>
    %959 = arith.cmpf olt, %957, %958 : vector<4x32xf32>
    %cst_277 = arith.constant -3.14159274 : f32
    %960 = vector.broadcast %cst_277 : f32 to vector<4x32xf32>
    %961 = arith.subf %960, %957 : vector<4x32xf32>
    %962 = arith.select %959, %961, %957 : vector<4x32xi1>, vector<4x32xf32>
    %963 = arith.mulf %962, %962 : vector<4x32xf32>
    %cst_278 = arith.constant 2.50521079E-8 : f32
    %964 = vector.broadcast %cst_278 : f32 to vector<4x32xf32>
    %965 = arith.mulf %963, %964 : vector<4x32xf32>
    %cst_279 = arith.constant 2.75573188E-6 : f32
    %966 = vector.broadcast %cst_279 : f32 to vector<4x32xf32>
    %967 = arith.subf %966, %965 : vector<4x32xf32>
    %968 = arith.mulf %963, %967 : vector<4x32xf32>
    %cst_280 = arith.constant -1.98412701E-4 : f32
    %969 = vector.broadcast %cst_280 : f32 to vector<4x32xf32>
    %970 = arith.addf %969, %968 : vector<4x32xf32>
    %971 = arith.mulf %963, %970 : vector<4x32xf32>
    %cst_281 = arith.constant 0.00833333377 : f32
    %972 = vector.broadcast %cst_281 : f32 to vector<4x32xf32>
    %973 = arith.addf %972, %971 : vector<4x32xf32>
    %974 = arith.mulf %963, %973 : vector<4x32xf32>
    %cst_282 = arith.constant -0.166666672 : f32
    %975 = vector.broadcast %cst_282 : f32 to vector<4x32xf32>
    %976 = arith.addf %975, %974 : vector<4x32xf32>
    %977 = arith.mulf %963, %976 : vector<4x32xf32>
    %cst_283 = arith.constant 1.000000e+00 : f32
    %978 = vector.broadcast %cst_283 : f32 to vector<4x32xf32>
    %979 = arith.addf %978, %977 : vector<4x32xf32>
    %980 = arith.mulf %962, %979 : vector<4x32xf32>
    %981 = arith.mulf %980, %980 : vector<4x32xf32>
    %982 = vector.broadcast %939 : vector<4x1xf32> to vector<4x32xf32>
    %983 = arith.mulf %982, %981 : vector<4x32xf32>
    %984 = arith.addf %937, %983 : vector<4x32xf32>
    %985 = vector.extract_strided_slice %2 {offsets = [0, 395], sizes = [4, 4], strides = [1, 1]} : vector<8x512xf32> to vector<4x4xf32>
    %986 = vector.extract_strided_slice %2 {offsets = [0, 399], sizes = [4, 1], strides = [1, 1]} : vector<8x512xf32> to vector<4x1xf32>
    %cst_284 = arith.constant dense<0.000000e+00> : vector<4x32xf32>
    %987 = tpu.matmul %985, %984, %cst_284 {dimension_numbers = #tpu.dot_dimension_numbers<[1], [0], [0], [1], [0, 0, 1, 1], [], []>} : vector<4x4xf32>, vector<4x32xf32>, vector<4x32xf32> -> vector<4x32xf32>
    %988 = vector.broadcast %986 : vector<4x1xf32> to vector<4x32xf32>
    %989 = arith.addf %987, %988 : vector<4x32xf32>
    %990 = arith.addf %875, %989 : vector<4x32xf32>
    %991 = vector.extract_strided_slice %2 {offsets = [0, 400], sizes = [4, 1], strides = [1, 1]} : vector<8x512xf32> to vector<4x1xf32>
    %992 = vector.extract_strided_slice %2 {offsets = [0, 401], sizes = [4, 1], strides = [1, 1]} : vector<8x512xf32> to vector<4x1xf32>
    %993 = vector.broadcast %991 : vector<4x1xf32> to vector<4x32xf32>
    %994 = arith.mulf %993, %990 : vector<4x32xf32>
    %cst_285 = arith.constant 0.159154937 : f32
    %995 = vector.broadcast %cst_285 : f32 to vector<4x32xf32>
    %996 = arith.mulf %994, %995 : vector<4x32xf32>
    %cst_286 = arith.constant 5.000000e-01 : f32
    %997 = vector.broadcast %cst_286 : f32 to vector<4x32xf32>
    %998 = arith.addf %996, %997 : vector<4x32xf32>
    %999 = math.floor %998 : vector<4x32xf32>
    %cst_287 = arith.constant 6.281250e+00 : f32
    %1000 = vector.broadcast %cst_287 : f32 to vector<4x32xf32>
    %1001 = arith.mulf %999, %1000 : vector<4x32xf32>
    %1002 = arith.subf %994, %1001 : vector<4x32xf32>
    %cst_288 = arith.constant 0.00193530717 : f32
    %1003 = vector.broadcast %cst_288 : f32 to vector<4x32xf32>
    %1004 = arith.mulf %999, %1003 : vector<4x32xf32>
    %1005 = arith.subf %1002, %1004 : vector<4x32xf32>
    %cst_289 = arith.constant 1.57079637 : f32
    %1006 = vector.broadcast %cst_289 : f32 to vector<4x32xf32>
    %1007 = arith.cmpf ogt, %1005, %1006 : vector<4x32xf32>
    %cst_290 = arith.constant 3.14159274 : f32
    %1008 = vector.broadcast %cst_290 : f32 to vector<4x32xf32>
    %1009 = arith.subf %1008, %1005 : vector<4x32xf32>
    %1010 = arith.select %1007, %1009, %1005 : vector<4x32xi1>, vector<4x32xf32>
    %cst_291 = arith.constant -1.57079637 : f32
    %1011 = vector.broadcast %cst_291 : f32 to vector<4x32xf32>
    %1012 = arith.cmpf olt, %1010, %1011 : vector<4x32xf32>
    %cst_292 = arith.constant -3.14159274 : f32
    %1013 = vector.broadcast %cst_292 : f32 to vector<4x32xf32>
    %1014 = arith.subf %1013, %1010 : vector<4x32xf32>
    %1015 = arith.select %1012, %1014, %1010 : vector<4x32xi1>, vector<4x32xf32>
    %1016 = arith.mulf %1015, %1015 : vector<4x32xf32>
    %cst_293 = arith.constant 2.50521079E-8 : f32
    %1017 = vector.broadcast %cst_293 : f32 to vector<4x32xf32>
    %1018 = arith.mulf %1016, %1017 : vector<4x32xf32>
    %cst_294 = arith.constant 2.75573188E-6 : f32
    %1019 = vector.broadcast %cst_294 : f32 to vector<4x32xf32>
    %1020 = arith.subf %1019, %1018 : vector<4x32xf32>
    %1021 = arith.mulf %1016, %1020 : vector<4x32xf32>
    %cst_295 = arith.constant -1.98412701E-4 : f32
    %1022 = vector.broadcast %cst_295 : f32 to vector<4x32xf32>
    %1023 = arith.addf %1022, %1021 : vector<4x32xf32>
    %1024 = arith.mulf %1016, %1023 : vector<4x32xf32>
    %cst_296 = arith.constant 0.00833333377 : f32
    %1025 = vector.broadcast %cst_296 : f32 to vector<4x32xf32>
    %1026 = arith.addf %1025, %1024 : vector<4x32xf32>
    %1027 = arith.mulf %1016, %1026 : vector<4x32xf32>
    %cst_297 = arith.constant -0.166666672 : f32
    %1028 = vector.broadcast %cst_297 : f32 to vector<4x32xf32>
    %1029 = arith.addf %1028, %1027 : vector<4x32xf32>
    %1030 = arith.mulf %1016, %1029 : vector<4x32xf32>
    %cst_298 = arith.constant 1.000000e+00 : f32
    %1031 = vector.broadcast %cst_298 : f32 to vector<4x32xf32>
    %1032 = arith.addf %1031, %1030 : vector<4x32xf32>
    %1033 = arith.mulf %1015, %1032 : vector<4x32xf32>
    %1034 = arith.mulf %1033, %1033 : vector<4x32xf32>
    %1035 = vector.broadcast %992 : vector<4x1xf32> to vector<4x32xf32>
    %1036 = arith.mulf %1035, %1034 : vector<4x32xf32>
    %1037 = arith.addf %990, %1036 : vector<4x32xf32>
    %1038 = vector.extract_strided_slice %2 {offsets = [0, 402], sizes = [8, 28], strides = [1, 1]} : vector<8x512xf32> to vector<8x28xf32>
    %cst_299 = arith.constant 0.000000e+00 : f32
    %1039 = vector.broadcast %cst_299 : f32 to vector<4x3xf32>
    %1040 = tpu.concatenate %1039, %1037, %1039 in 1 : vector<4x3xf32>, vector<4x32xf32>, vector<4x3xf32> -> vector<4x38xf32>
    %1041 = vector.extract_strided_slice %1040 {offsets = [0, 0], sizes = [4, 32], strides = [1, 1]} : vector<4x38xf32> to vector<4x32xf32>
    %1042 = vector.extract_strided_slice %1040 {offsets = [0, 1], sizes = [4, 32], strides = [1, 1]} : vector<4x38xf32> to vector<4x32xf32>
    %1043 = vector.extract_strided_slice %1040 {offsets = [0, 2], sizes = [4, 32], strides = [1, 1]} : vector<4x38xf32> to vector<4x32xf32>
    %1044 = vector.extract_strided_slice %1040 {offsets = [0, 3], sizes = [4, 32], strides = [1, 1]} : vector<4x38xf32> to vector<4x32xf32>
    %1045 = vector.extract_strided_slice %1040 {offsets = [0, 4], sizes = [4, 32], strides = [1, 1]} : vector<4x38xf32> to vector<4x32xf32>
    %1046 = vector.extract_strided_slice %1040 {offsets = [0, 5], sizes = [4, 32], strides = [1, 1]} : vector<4x38xf32> to vector<4x32xf32>
    %1047 = vector.extract_strided_slice %1040 {offsets = [0, 6], sizes = [4, 32], strides = [1, 1]} : vector<4x38xf32> to vector<4x32xf32>
    %1048 = tpu.concatenate %1041, %1042, %1043, %1044, %1045, %1046, %1047 in 0 : vector<4x32xf32>, vector<4x32xf32>, vector<4x32xf32>, vector<4x32xf32>, vector<4x32xf32>, vector<4x32xf32>, vector<4x32xf32> -> vector<28x32xf32>
    %cst_300 = arith.constant dense<0.000000e+00> : vector<8x32xf32>
    %1049 = tpu.matmul %1038, %1048, %cst_300 {dimension_numbers = #tpu.dot_dimension_numbers<[1], [0], [0], [1], [0, 0, 1, 1], [], []>} : vector<8x28xf32>, vector<28x32xf32>, vector<8x32xf32> -> vector<8x32xf32>
    %1050 = arith.subf %10, %1049 : vector<8x32xf32>
    %1051 = arith.mulf %1050, %1050 : vector<8x32xf32>
    %cst_301 = arith.constant dense<0.000000e+00> : vector<8xf32>
    %1052 = vector.multi_reduction <add>, %1051, %cst_301 [1] : vector<8x32xf32> to vector<8xf32>
    %1053 = vector.shape_cast %1052 : vector<8xf32> to vector<8x1xf32>
    %cst_302 = arith.constant dense<0.000000e+00> : vector<1xf32>
    %1054 = vector.multi_reduction <add>, %1053, %cst_302 [0] : vector<8x1xf32> to vector<1xf32>
    %1055 = vector.shape_cast %1054 : vector<1xf32> to vector<1x1xf32>
    %1056 = vector.extract_strided_slice %1049 {offsets = [0, 0], sizes = [2, 32], strides = [1, 1]} : vector<8x32xf32> to vector<2x32xf32>
    %1057 = vector.extract_strided_slice %1049 {offsets = [2, 0], sizes = [2, 32], strides = [1, 1]} : vector<8x32xf32> to vector<2x32xf32>
    %1058 = vector.extract_strided_slice %1049 {offsets = [4, 0], sizes = [2, 32], strides = [1, 1]} : vector<8x32xf32> to vector<2x32xf32>
    %1059 = vector.extract_strided_slice %1049 {offsets = [6, 0], sizes = [2, 32], strides = [1, 1]} : vector<8x32xf32> to vector<2x32xf32>
    %1060 = tpu.concatenate %1056, %1057, %1058, %1059 in 1 : vector<2x32xf32>, vector<2x32xf32>, vector<2x32xf32>, vector<2x32xf32> -> vector<2x128xf32>
    %cst_303 = arith.constant dense<0.000000e+00> : vector<2x128xf32>
    %1061 = tpu.matmul %1060, %4, %cst_303 {dimension_numbers = #tpu.dot_dimension_numbers<[1], [0], [0], [1], [0, 0, 1, 1], [], []>} : vector<2x128xf32>, vector<128x128xf32>, vector<2x128xf32> -> vector<2x128xf32>
    %1062 = arith.subf %1, %1061 : vector<2x128xf32>
    %1063 = arith.mulf %1062, %1062 : vector<2x128xf32>
    %cst_304 = arith.constant dense<0.000000e+00> : vector<2xf32>
    %1064 = vector.multi_reduction <add>, %1063, %cst_304 [1] : vector<2x128xf32> to vector<2xf32>
    %1065 = vector.shape_cast %1064 : vector<2xf32> to vector<2x1xf32>
    %cst_305 = arith.constant dense<0.000000e+00> : vector<1xf32>
    %1066 = vector.multi_reduction <add>, %1065, %cst_305 [0] : vector<2x1xf32> to vector<1xf32>
    %1067 = vector.shape_cast %1066 : vector<1xf32> to vector<1x1xf32>
    %cst_306 = arith.constant -5.000000e-01 : f32
    %cst_307 = arith.constant 5.000000e-01 : f32
    %1068 = vector.broadcast %cst_306 : f32 to vector<2x128xf32>
    %1069 = arith.maximumf %1068, %1061 : vector<2x128xf32>
    %1070 = vector.broadcast %cst_307 : f32 to vector<2x128xf32>
    %1071 = arith.minimumf %1070, %1069 : vector<2x128xf32>
    %c0_308 = arith.constant 0 : index
    %c0_309 = arith.constant 0 : index
    %c0_310 = arith.constant 0 : index
    %1072 = vector.load %arg4[%c0_308, %c0_309, %c0_310] : memref<1x2x128xf32, #tpu.memory_space<vmem>>, vector<1x2x128xf32>
    %1073 = vector.shape_cast %1072 : vector<1x2x128xf32> to vector<2x128xf32>
    %1074 = vector.shape_cast %1071 : vector<2x128xf32> to vector<1x2x128xf32>
    tpu.vector_store %arg4[%c0_308, %c0_309, %c0_310], %1074 {strides = array<i32>} : memref<1x2x128xf32, #tpu.memory_space<vmem>>, vector<1x2x128xf32>,
    %1075 = tpu.iota {dimensions = array<i32: 1>} : vector<1x128xi32>
    %c0_i32 = arith.constant 0 : i32
    %1076 = vector.broadcast %c0_i32 : i32 to vector<1x128xi32>
    %1077 = arith.cmpi eq, %1075, %1076 : vector<1x128xi32>
    %1078 = arith.extui %1077 : vector<1x128xi1> to vector<1x128xi32>
    %1079 = arith.sitofp %1078 : vector<1x128xi32> to vector<1x128xf32>
    %1080 = vector.broadcast %1067 : vector<1x1xf32> to vector<1x128xf32>
    %1081 = arith.mulf %1080, %1079 : vector<1x128xf32>
    %c1_i32 = arith.constant 1 : i32
    %1082 = vector.broadcast %c1_i32 : i32 to vector<1x128xi32>
    %1083 = arith.cmpi eq, %1075, %1082 : vector<1x128xi32>
    %1084 = arith.extui %1083 : vector<1x128xi1> to vector<1x128xi32>
    %1085 = arith.sitofp %1084 : vector<1x128xi32> to vector<1x128xf32>
    %1086 = vector.broadcast %1055 : vector<1x1xf32> to vector<1x128xf32>
    %1087 = arith.mulf %1086, %1085 : vector<1x128xf32>
    %1088 = arith.addf %1081, %1087 : vector<1x128xf32>
    %c0_311 = arith.constant 0 : index
    %c0_312 = arith.constant 0 : index
    %c0_313 = arith.constant 0 : index
    %1089 = vector.load %arg5[%c0_311, %c0_312, %c0_313] : memref<1x1x128xf32, #tpu.memory_space<vmem>>, vector<1x1x128xf32>
    %1090 = vector.shape_cast %1089 : vector<1x1x128xf32> to vector<1x128xf32>
    %1091 = vector.shape_cast %1088 : vector<1x128xf32> to vector<1x1x128xf32>
    tpu.vector_store %arg5[%c0_311, %c0_312, %c0_313], %1091 {strides = array<i32>} : memref<1x1x128xf32, #tpu.memory_space<vmem>>, vector<1x1x128xf32>,
    return
  }
  func.func @transform_0(%arg0: i32) -> (i32, i32, i32) {
    %c0_i32 = arith.constant 0 : i32
    %c0_i32_0 = arith.constant 0 : i32
    %c0_i32_1 = arith.constant 0 : i32
    return %arg0, %c0_i32, %c0_i32_0 : i32, i32, i32
  }
  func.func @transform_1(%arg0: i32) -> (i32, i32) {
    %c0_i32 = arith.constant 0 : i32
    %c0_i32_0 = arith.constant 0 : i32
    %c0_i32_1 = arith.constant 0 : i32
    return %c0_i32, %c0_i32_0 : i32, i32
  }
  func.func @transform_2(%arg0: i32) -> (i32, i32) {
    %c0_i32 = arith.constant 0 : i32
    %c0_i32_0 = arith.constant 0 : i32
    %c0_i32_1 = arith.constant 0 : i32
    return %c0_i32, %c0_i32_0 : i32, i32
  }
  func.func @transform_3(%arg0: i32) -> (i32, i32, i32) {
    %c0_i32 = arith.constant 0 : i32
    %c0_i32_0 = arith.constant 0 : i32
    %c0_i32_1 = arith.constant 0 : i32
    return %arg0, %c0_i32, %c0_i32_0 : i32, i32, i32
  }
  func.func @transform_4(%arg0: i32) -> (i32, i32, i32) {
    %c0_i32 = arith.constant 0 : i32
    %c0_i32_0 = arith.constant 0 : i32
    %c0_i32_1 = arith.constant 0 : i32
    return %arg0, %c0_i32, %c0_i32_0 : i32, i32, i32
  }
}

</mosaic_0001>

<llo_original>
// kernel: forward.1
$region0: #{forward.1}
  #allocation0 [shape = 'u32[]', space=smem, size = 0x4, offset = 0x4, fixed_abs, tag = 'smem constant byte address 0x4 - core index']
  #allocation1 [shape = 'u32[72,128]{1,0:T(1,128)}', space=vmem, size = 0x9000, scoped, tag = 'internal scratch']
  %s0 = inlined_call_operand.hbm [shape: f32[2,2,128], index: 0, kind: input, shape index: {}]
  %s1 = inlined_call_operand.hbm [shape: f32[128,256], index: 1, kind: input, shape index: {}]
  %s2 = inlined_call_operand.hbm [shape: f32[8,512], index: 2, kind: input, shape index: {}]
  %s3 = inlined_call_operand.hbm [shape: f32[2,2,128], index: 3, kind: output, shape index: {0}]
  %s4 = inlined_call_operand.vmem [shape: f32[2,1,128], index: 4, kind: output, shape index: {1}]
  %5 = xla_tuple %s3, %s4
  %s6 = sld [smem:[#allocation0]]
  $region65: #{forward.1} parent=0
    _
  %s8 = ssub.s32 1, %s6
  %s9 = scalar_select 0, %s8, %s6
  $region1: #{forward.1} parent=0
    #allocation2 [shape = 'u8[2048]{0}', space=vmem, size = 0x800, scoped, tag = 'input window, operand 0']
    #allocation3 [shape = 's32[2]{0}', space=sflag, size = 0x8, scoped, tag = 'scoped memory for forward.1']
    #allocation4 [shape = 's32[2]{0}', space=sflag, size = 0x8, scoped, tag = 'scoped memory for forward.1']
    #allocation5 [shape = 'u8[131072]{0}', space=vmem, size = 0x20000, scoped, tag = 'input window, operand 1, single buffered']
    #allocation6 [shape = 's32[1]{0}', space=sflag, size = 0x4, scoped, tag = 'scoped memory for forward.1']
    #allocation7 [shape = 'u8[16384]{0}', space=vmem, size = 0x4000, scoped, tag = 'input window, operand 2, single buffered']
    #allocation8 [shape = 'u8[2048]{0}', space=vmem, size = 0x800, scoped, tag = 'output window, operand 0']
    %10 = vsyncpa [#allocation3], 0
    %s11 = scalar_lea.sflag [#allocation3], 1
    %12 = vsyncpa %s11, 0
    %13 = vsyncpa [#allocation6], 0
    %14 = vsyncpa [#allocation4], 0
    %s15 = scalar_lea.sflag [#allocation4], 1
    %16 = vsyncpa %s15, 0
    loop: start=0, step=1, limit=4
    $region2: #{forward.1} parent=1 // loop_pre_header
      _
    $region3: #{forward.1} parent=1 // loop_header
      %s18 = sphi 0, %s22
      %p19 = scmp.ge.s32.totalorder %s18, 4
      %s28 = sphi 0, %s30
      %s31 = sphi 0, %s28
      %s32 = sphi 0, %s31
      %s48 = sphi 0, %s32
      %s52 = sphi 0, %s52
      %s54 = sphi 0, %s52
      %s55 = sphi 0, %s54
      %s69 = sphi 0, %s55
      %s73 = sphi 0, %s73
      %s75 = sphi 0, %s73
      %s76 = sphi 0, %s75
      %s90 = sphi 0, %s76
      %s96 = sphi 0, %s98
      %s99 = sphi 0, %s96
      %s100 = sphi 0, %s99
      %s116 = sphi 0, %s100
      %s122 = sphi 0, %s124
      %s125 = sphi 0, %s122
      %s126 = sphi 0, %s125
      %s142 = sphi 0, %s126
    $region4: #{forward.1} parent=1 // loop_header_branch
      %21 = sbr.rel (%p19) target = $region8
    $region5: #{forward.1} parent=1 // loop_body
      %s23 = ssub.s32 %s18, 1
      %s24 = ssub.s32 %s18, 2
      %s25 = sadd.s32 %s18, 1
      %s26 = ssub.s32 %s18, %s25
      %p27 = scmp.eq.s32.totalorder %s26, 0
      %s29 = sadd.s32 %s28, 1
      %s30 = scalar_select %p27, %s28, %s29
      %p33 = pneg %p27
      %p34 = scmp.eq.s32.totalorder %s18, 1
      %p35 = por %p33, %p34
      %p36 = scmp.ne.s32.totalorder %s28, %s31
      %p37 = scmp.eq.s32.totalorder %s18, 0
      %p38 = por %p36, %p37
      %p39 = scmp.ne.s32.totalorder %s28, %s31
      %p40 = scmp.eq.s32.totalorder %s23, 1
      %p41 = por %p39, %p40
      %p42 = scmp.ne.s32.totalorder %s31, %s32
      %p43 = scmp.eq.s32.totalorder %s23, 0
      %p44 = por %p42, %p43
      %p45 = scmp.ne.s32.totalorder %s31, %s32
      %p46 = scmp.eq.s32.totalorder %s24, 1
      %p47 = por %p45, %p46
      %p49 = scmp.ne.s32.totalorder %s32, %s48
      %p50 = scmp.eq.s32.totalorder %s24, 0
      %p51 = por %p49, %p50
      %s53 = sadd.s32 %s52, 1
      %p56 = scmp.eq.s32.totalorder %s18, 1
      %p57 = scmp.ne.s32.totalorder %s52, %s54
      %p58 = scmp.eq.s32.totalorder %s18, 0
      %p59 = por %p57, %p58
      %p60 = scmp.ne.s32.totalorder %s52, %s54
      %p61 = scmp.eq.s32.totalorder %s23, 1
      %p62 = por %p60, %p61
      %p63 = scmp.ne.s32.totalorder %s54, %s55
      %p64 = scmp.eq.s32.totalorder %s23, 0
      %p65 = por %p63, %p64
      %p66 = scmp.ne.s32.totalorder %s54, %s55
      %p67 = scmp.eq.s32.totalorder %s24, 1
      %p68 = por %p66, %p67
      %p70 = scmp.ne.s32.totalorder %s55, %s69
      %p71 = scmp.eq.s32.totalorder %s24, 0
      %p72 = por %p70, %p71
      %s74 = sadd.s32 %s73, 1
      %p77 = scmp.eq.s32.totalorder %s18, 1
      %p78 = scmp.ne.s32.totalorder %s73, %s75
      %p79 = scmp.eq.s32.totalorder %s18, 0
      %p80 = por %p78, %p79
      %p81 = scmp.ne.s32.totalorder %s73, %s75
      %p82 = scmp.eq.s32.totalorder %s23, 1
      %p83 = por %p81, %p82
      %p84 = scmp.ne.s32.totalorder %s75, %s76
      %p85 = scmp.eq.s32.totalorder %s23, 0
      %p86 = por %p84, %p85
      %p87 = scmp.ne.s32.totalorder %s75, %s76
      %p88 = scmp.eq.s32.totalorder %s24, 1
      %p89 = por %p87, %p88
      %p91 = scmp.ne.s32.totalorder %s76, %s90
      %p92 = scmp.eq.s32.totalorder %s24, 0
      %p93 = por %p91, %p92
      %s94 = ssub.s32 %s18, %s25
      %p95 = scmp.eq.s32.totalorder %s94, 0
      %s97 = sadd.s32 %s96, 1
      %s98 = scalar_select %p95, %s96, %s97
      %p101 = pneg %p95
      %p102 = scmp.eq.s32.totalorder %s18, 1
      %p103 = por %p101, %p102
      %p104 = scmp.ne.s32.totalorder %s96, %s99
      %p105 = scmp.eq.s32.totalorder %s18, 0
      %p106 = por %p104, %p105
      %p107 = scmp.ne.s32.totalorder %s96, %s99
      %p108 = scmp.eq.s32.totalorder %s23, 1
      %p109 = por %p107, %p108
      %p110 = scmp.ne.s32.totalorder %s99, %s100
      %p111 = scmp.eq.s32.totalorder %s23, 0
      %p112 = por %p110, %p111
      %p113 = scmp.ne.s32.totalorder %s99, %s100
      %p114 = scmp.eq.s32.totalorder %s24, 1
      %p115 = por %p113, %p114
      %p117 = scmp.ne.s32.totalorder %s100, %s116
      %p118 = scmp.eq.s32.totalorder %s24, 0
      %p119 = por %p117, %p118
      %s120 = ssub.s32 %s18, %s25
      %p121 = scmp.eq.s32.totalorder %s120, 0
      %s123 = sadd.s32 %s122, 1
      %s124 = scalar_select %p121, %s122, %s123
      %p127 = pneg %p121
      %p128 = scmp.eq.s32.totalorder %s18, 1
      %p129 = por %p127, %p128
      %p130 = scmp.ne.s32.totalorder %s122, %s125
      %p131 = scmp.eq.s32.totalorder %s18, 0
      %p132 = por %p130, %p131
      %p133 = scmp.ne.s32.totalorder %s122, %s125
      %p134 = scmp.eq.s32.totalorder %s23, 1
      %p135 = por %p133, %p134
      %p136 = scmp.ne.s32.totalorder %s125, %s126
      %p137 = scmp.eq.s32.totalorder %s23, 0
      %p138 = por %p136, %p137
      %p139 = scmp.ne.s32.totalorder %s125, %s126
      %p140 = scmp.eq.s32.totalorder %s24, 1
      %p141 = por %p139, %p140
      %p143 = scmp.ne.s32.totalorder %s126, %s142
      %p144 = scmp.eq.s32.totalorder %s24, 0
      %p145 = por %p143, %p144
      %p146 = scmp.le.s32.totalorder 1, %s18
      %p147 = scmp.lt.s32.totalorder %s18, 3
      %p148 = pnand %p146, %p147
      %p149 = pneg %p148
      // Predicated region
      $region9: #{forward.1} parent=5 // pred_check
        _
      $region10: #{forward.1} parent=5 // pred_check_branch
        %151 = sbr.rel (%p148) target = $region12
      $region11: #{forward.1} parent=5 // pred_region
        %s152 = ssub.s32 %s18, 1
        // Predicated region
        $region13: #{forward.1} parent=11 // pred_check
          %p153 = pneg %p65
        $region14: #{forward.1} parent=11 // pred_check_branch
          %155 = sbr.rel (%p153) target = $region16
        $region15: #{forward.1} parent=11 // pred_region
          %157 = vsyncadd [#allocation6], 0
          %s158 = sshll.u32 %s1, 4
          %s159 = int_to_ptr.hbm [resolvable:$true] %s158
          %s160 = sshll.u32 [#allocation5], 4
          %s161 = int_to_ptr.vmem [resolvable:$true] %s160
          %166 = dma.hbm_to_vmem [thread:$0]  %s159, 4096, %s161, [#allocation6], 256, 256, 16
        $region16: #{forward.1} parent=11 // pred_fallthru
          _
        // Predicated region
        $region17: #{forward.1} parent=11 // pred_check
          %p167 = pneg %p86
        $region18: #{forward.1} parent=11 // pred_check_branch
          %169 = sbr.rel (%p167) target = $region20
        $region19: #{forward.1} parent=11 // pred_region
          %171 = vsyncadd [#allocation6], 0
          %s173 = sshll.u32 %s2, 4
          %s174 = int_to_ptr.hbm [resolvable:$true] %s173
          %s175 = sshll.u32 [#allocation7], 4
          %s176 = int_to_ptr.vmem [resolvable:$true] %s175
          %178 = dma.hbm_to_vmem [thread:$0]  %s174, 512, %s176, [#allocation6]
        $region20: #{forward.1} parent=11 // pred_fallthru
          _
      $region12: #{forward.1} parent=5 // pred_fallthru
        _
      %p179 = scmp.lt.s32.totalorder %s18, 2
      // Predicated region
      $region21: #{forward.1} parent=5 // pred_check
        %p180 = pneg %p179
      $region22: #{forward.1} parent=5 // pred_check_branch
        %182 = sbr.rel (%p180) target = $region24
      $region23: #{forward.1} parent=5 // pred_region
        // Predicated region
        $region25: #{forward.1} parent=23 // pred_check
          %p183 = pneg %p38
        $region26: #{forward.1} parent=23 // pred_check_branch
          %185 = sbr.rel (%p183) target = $region28
        $region27: #{forward.1} parent=23 // pred_region
          %s186 = sand.u32 %s28, 1
          %s187 = scalar_lea.sflag [#allocation3], %s186
          %s188 = sand.u32 %s28, 1
          %s189 = smul.addr %s188, 2
          %s190 = scalar_lea.vmem [#allocation2], %s189
          %192 = vsyncadd %s187, 0
          %s193 = smul.addr %s18, 2
          %s194 = scalar_lea.hbm %s0, %s193
          %s196 = sshll.u32 %s194, 4
          %s197 = int_to_ptr.hbm [resolvable:$true] %s196
          %s198 = sshll.u32 %s190, 4
          %s199 = int_to_ptr.vmem [resolvable:$true] %s198
          %201 = dma.hbm_to_vmem [thread:$0]  %s197, 32, %s199, %s187
        $region28: #{forward.1} parent=23 // pred_fallthru
          _
      $region24: #{forward.1} parent=5 // pred_fallthru
        _
      %p202 = scmp.le.s32.totalorder 1, %s18
      %p203 = scmp.lt.s32.totalorder %s18, 3
      %p204 = pnand %p202, %p203
      %p205 = pneg %p204
      // Predicated region
      $region29: #{forward.1} parent=5 // pred_check
        _
      $region30: #{forward.1} parent=5 // pred_check_branch
        %207 = sbr.rel (%p204) target = $region32
      $region31: #{forward.1} parent=5 // pred_region
        %s208 = ssub.s32 %s18, 1
        %s209 = sand.u32 %s31, 1
        %s210 = scalar_lea.sflag [#allocation3], %s209
        %s211 = sand.u32 %s31, 1
        %s212 = smul.addr %s211, 2
        %s213 = scalar_lea.vmem [#allocation2], %s212
        // Predicated region
        $region33: #{forward.1} parent=31 // pred_check
          %p214 = pneg %p44
        $region34: #{forward.1} parent=31 // pred_check_branch
          %216 = sbr.rel (%p214) target = $region36
        $region35: #{forward.1} parent=31 // pred_region
          %218 = dma.done %s210, 32
        $region36: #{forward.1} parent=31 // pred_fallthru
          _
        // Predicated region
        $region37: #{forward.1} parent=31 // pred_check
          %p219 = pneg %p65
        $region38: #{forward.1} parent=31 // pred_check_branch
          %221 = sbr.rel (%p219) target = $region40
        $region39: #{forward.1} parent=31 // pred_region
          %223 = dma.done [#allocation6], 4096
        $region40: #{forward.1} parent=31 // pred_fallthru
          _
        // Predicated region
        $region41: #{forward.1} parent=31 // pred_check
          %p224 = pneg %p86
        $region42: #{forward.1} parent=31 // pred_check_branch
          %226 = sbr.rel (%p224) target = $region44
        $region43: #{forward.1} parent=31 // pred_region
          %228 = dma.done [#allocation6], 512
        $region44: #{forward.1} parent=31 // pred_fallthru
          _
        %s229 = sand.u32 %s31, 1
        %s230 = scalar_lea.sflag [#allocation3], %s229
        %s231 = sand.u32 %s31, 1
        %s232 = smul.addr %s231, 2
        %s233 = scalar_lea.vmem [#allocation2], %s232
        %p234 = pneg %p44
        %p235 = pneg %p41
        %p236 = pneg %p65
        %p237 = pneg %p62
        %p238 = pneg %p86
        %p239 = pneg %p83
        %p240 = pneg %p112
        %p241 = pneg %p109
        %s242 = sand.u32 %s99, 1
        %s243 = scalar_lea.sflag [#allocation4], %s242
        %s244 = sand.u32 %s99, 1
        %s245 = smul.addr %s244, 2
        %s246 = scalar_lea.vmem [#allocation8], %s245
        %p247 = pneg %p138
        %p248 = pneg %p135
        %p249 = scmp.lt.s32.totalorder %s23, 1
        %s250 = scalar_select %p249, %s23, 1
        %s251 = scalar_lea.vmem %s4, %s250
        %p252 = scmp.lt.s32.totalorder %s23, 1
        %s253 = scalar_select %p252, %s23, 1
        %s254 = scalar_lea.vmem %s4, %s253
        %v255 = vld [vmem:[%s213] sm:$0x3]
        %v256 = vld [vmem:[#allocation7] sm:$0xff]
        %v257 = vld [vmem:[#allocation7 + $0x8] sm:$0xff]
        %v258 = vld [vmem:[#allocation7 + $0x10] sm:$0xff]
        %v259 = vld [vmem:[#allocation7 + $0x18] sm:$0xff]
        %v260 = vld [vmem:[#allocation5] sm:$0xff]
        %v261 = vld [vmem:[#allocation5 + $0x10] sm:$0xff]
        %v262 = vld [vmem:[#allocation5 + $0x20] sm:$0xff]
        %v263 = vld [vmem:[#allocation5 + $0x30] sm:$0xff]
        %v264 = vld [vmem:[#allocation5 + $0x40] sm:$0xff]
        %v265 = vld [vmem:[#allocation5 + $0x50] sm:$0xff]
        %v266 = vld [vmem:[#allocation5 + $0x60] sm:$0xff]
        %v267 = vld [vmem:[#allocation5 + $0x70] sm:$0xff]
        %v268 = vld [vmem:[#allocation5 + $0x80] sm:$0xff]
        %v269 = vld [vmem:[#allocation5 + $0x90] sm:$0xff]
        %v270 = vld [vmem:[#allocation5 + $0xa0] sm:$0xff]
        %v271 = vld [vmem:[#allocation5 + $0xb0] sm:$0xff]
        %v272 = vld [vmem:[#allocation5 + $0xc0] sm:$0xff]
        %v273 = vld [vmem:[#allocation5 + $0xd0] sm:$0xff]
        %v274 = vld [vmem:[#allocation5 + $0xe0] sm:$0xff]
        %v275 = vld [vmem:[#allocation5 + $0xf0] sm:$0xff]
        %v276 = vld [vmem:[#allocation5 + $0x8] sm:$0xff]
        %v277 = vld [vmem:[#allocation5 + $0x18] sm:$0xff]
        %v278 = vld [vmem:[#allocation5 + $0x28] sm:$0xff]
        %v279 = vld [vmem:[#allocation5 + $0x38] sm:$0xff]
        %v280 = vld [vmem:[#allocation5 + $0x48] sm:$0xff]
        %v281 = vld [vmem:[#allocation5 + $0x58] sm:$0xff]
        %v282 = vld [vmem:[#allocation5 + $0x68] sm:$0xff]
        %v283 = vld [vmem:[#allocation5 + $0x78] sm:$0xff]
        %v284 = vld [vmem:[#allocation5 + $0x88] sm:$0xff]
        %v285 = vld [vmem:[#allocation5 + $0x98] sm:$0xff]
        %v286 = vld [vmem:[#allocation5 + $0xa8] sm:$0xff]
        %v287 = vld [vmem:[#allocation5 + $0xb8] sm:$0xff]
        %v288 = vld [vmem:[#allocation5 + $0xc8] sm:$0xff]
        %v289 = vld [vmem:[#allocation5 + $0xd8] sm:$0xff]
        %v290 = vld [vmem:[#allocation5 + $0xe8] sm:$0xff]
        %v291 = vld [vmem:[#allocation5 + $0xf8] sm:$0xff]
        %292 = vmatpush.msra.mxu0 %v275
        %293 = vmatpush.msra.mxu0 %v274
        %294 = vmatpush.msra.mxu0 %v273
        %295 = vmatpush.msra.mxu0 %v272
        %296 = vmatpush.msra.mxu0 %v271
        %297 = vmatpush.msra.mxu0 %v270
        %298 = vmatpush.msra.mxu0 %v269
        %299 = vmatpush.msra.mxu0 %v268
        %300 = vmatpush.msra.mxu0 %v267
        %301 = vmatpush.msra.mxu0 %v266
        %302 = vmatpush.msra.mxu0 %v265
        %303 = vmatpush.msra.mxu0 %v264
        %304 = vmatpush.msra.mxu0 %v263
        %305 = vmatpush.msra.mxu0 %v262
        %306 = vmatpush.msra.mxu0 %v261
        %307 = vmatpush.msra.mxu0 %v260
        %308 = vmatmul.f32.gmra.mxu0 %v255
        %v309 = vpop.f32.mrf.mxu0
        %v310 = vadd.f32 0.0, %v309
        %311 = vdwg.mxu0
        %v313 = vrot.slane %v310, 6
        %314 = vrot.lane.b32.xlu0 %v313, 96
        %v315 = vpop.permute.xlu0 %314
        %v317 = vrot.slane %v310, 4
        %318 = vrot.lane.b32.xlu0 %v317, 64
        %v319 = vpop.permute.xlu0 %318
        %v321 = vrot.slane %v310, 2
        %322 = vrot.lane.b32.xlu0 %v321, 32
        %v323 = vpop.permute.xlu0 %322
        %vm325 = vcmask 1041408
        %v326 = vsel %vm325, %v310, %v315
        %vm327 = vcmask 1043456
        %v328 = vsel %vm327, %v326, %v319
        %vm329 = vcmask 1045504
        %v330 = vsel %vm329, %v328, %v323
        %332 = vset.pattern.permute.xlu0 8
        %333 = vperm.xlu0 %332, %v256
        %v334 = vpop.permute.xlu0 %333
        %vm336 = vcmask 64512
        %v337 = vsel %vm336, %v256, 0
        %339 = vmatpush.msra.mxu0 0.0
        %340 = vmatpush.msra.mxu0 0.0
        %341 = vmatpush.msra.mxu0 0.0
        %342 = vmatpush.msra.mxu0 0.0
        %343 = vmatpush.msra.mxu0 0.0
        %344 = vmatpush.msra.mxu0 0.0
        %345 = vmatpush.msra.mxu0 0.0
        %346 = vmatpush.msra.mxu0 0.0
        %347 = vmatpush.msra.mxu0 0.0
        %348 = vmatpush.msra.mxu0 0.0
        %349 = vmatpush.msra.mxu0 0.0
        %350 = vmatpush.msra.mxu0 0.0
        %351 = vmatpush.msra.mxu0 0.0
        %352 = vmatpush.msra.mxu0 0.0
        %353 = vmatpush.msra.mxu0 0.0
        %354 = vmatpush.msra.mxu0 %v330
        %355 = vmatmul.f32.gmra.mxu0 %v337
        %v356 = vpop.f32.mrf.mxu0
        %v357 = vadd.f32 %v334, %v356
        %358 = vdwg.mxu0
        %359 = vrot.lane.b32.xlu0 %v256, 120
        %v360 = vpop.permute.xlu0 %359
        %363 = vrot.lane.b32.xlu0 %v357, 1
        %v364 = vpop.permute.xlu0 %363
        %366 = vrot.lane.b32.xlu0 %v256, 25
        %v367 = vpop.permute.xlu0 %366
        %vm369 = vcmask 7168
        %v370 = vsel %vm369, %v360, %v364
        %vm371 = vcmask 269312
        %v372 = vsel %vm371, %v370, %v367
        %v373 = vmul.f32 %v372, 0.05967742
        %v374 = vmul.f32 %v373, 0.70710677
        %v375 = vand.u32 2147483647, %v374
        %v376 = vmul.f32 %v375, 0.3275911
        %v377 = vadd.f32 %v376, 1.0
        %v378 = vrcp.pop %v377
        %v379 = vmul.f32 %v377, %v378
        %v380 = vsub.f32 1.0, %v379
        %v381 = vmul.f32 %v378, %v380
        %v382 = vadd.f32 %v378, %v381
        %vm383 = vweird.f32 %v377
        %vm384 = vweird.f32 %v378
        %vm385 = vmor %vm383, %vm384
        %v386 = vsel %vm385, %v378, %v382
        %v387 = vand.u32 2147483647, %v377
        %vm388 = vcmp.eq.f32.partialorder %v387, 8.507059e+37
        %v389 = vand.u32 %v377, 2147483648
        %v390 = vor.u32 1.1754944e-38, %v389
        %v391 = vsel %vm388, %v390, %v386
        %v392 = vmul.f32 1.0, %v391
        %v393 = vmul.f32 %v392, 1.0614054
        %v394 = vadd.f32 %v393, -1.4531521
        %v395 = vmul.f32 %v394, %v392
        %v396 = vadd.f32 %v395, 1.4214138
        %v397 = vmul.f32 %v396, %v392
        %v398 = vadd.f32 %v397, -0.28449672
        %v399 = vmul.f32 %v398, %v392
        %v400 = vadd.f32 %v399, 0.2548296
        %v401 = vmul.f32 %v400, %v392
        %v402 = vsub.f32 0.0, %v375
        %v403 = vmul.f32 %v402, %v375
        %v404 = vmul.f32 %v403, 1.442695
        %v405 = vpow.pop %v404
        %v406 = vmul.f32 %v401, %v405
        %v407 = vsub.f32 1.0, %v406
        %vm408 = vcmp.lt.f32.partialorder %v374, 0.0
        %v409 = vsub.f32 0.0, %v407
        %v410 = vsel %vm408, %v409, %v407
        %v411 = vadd.f32 %v410, 1.0
        %v412 = vmul.f32 %v411, 0.5
        %v413 = vsub.f32 %v412, 0.5
        %v414 = vmul.f32 %v413, 62.998
        %v415 = vfloor.f32 %v414
        %v416 = vsub.f32 %v414, %v415
        %v417 = vadd.f32 %v414, 0.5
        %v418 = vfloor.f32 %v417
        %v419 = vmul.f32 %v415, 0.5
        %v420 = vfloor.f32 %v419
        %v421 = vmul.f32 %v420, 2.0
        %v422 = vsub.f32 %v415, %v421
        %vm423 = vcmp.eq.f32.partialorder %v422, 0.0
        %v424 = vadd.f32 %v415, 1.0
        %v425 = vsel %vm423, %v415, %v424
        %vm426 = vcmp.eq.f32.partialorder %v416, 0.5
        %v427 = vsel %vm426, %v425, %v418
        %v428 = vmul.f32 %v427, 0.01587352
        %v429 = vadd.f32 %v428, 0.5
        %v430 = vmax.f32 %v429, 0.0001
        %v431 = vmin.f32 %v430, 0.9999
        %v432 = vsub.f32 %v431, 0.5
        %v433 = vmul.f32 %v432, %v432
        %v434 = vmul.f32 %v433, -39.69683
        %v435 = vadd.f32 %v434, 220.9461
        %v436 = vmul.f32 %v435, %v433
        %v437 = vadd.f32 %v436, -275.9285
        %v438 = vmul.f32 %v437, %v433
        %v439 = vadd.f32 %v438, 138.35776
        %v440 = vmul.f32 %v439, %v433
        %v441 = vadd.f32 %v440, -30.664799
        %v442 = vmul.f32 %v441, %v433
        %v443 = vadd.f32 %v442, 2.5066283
        %v444 = vmul.f32 %v433, -54.476097
        %v445 = vadd.f32 %v444, 161.58583
        %v446 = vmul.f32 %v445, %v433
        %v447 = vadd.f32 %v446, -155.69897
        %v448 = vmul.f32 %v447, %v433
        %v449 = vadd.f32 %v448, 66.801315
        %v450 = vmul.f32 %v449, %v433
        %v451 = vadd.f32 %v450, -13.280682
        %v452 = vmul.f32 %v451, %v433
        %v453 = vadd.f32 %v452, 1.0
        %v454 = vmul.f32 %v432, %v443
        %v455 = vrcp.pop %v453
        %v456 = vmul.f32 %v453, %v455
        %v457 = vsub.f32 1.0, %v456
        %v458 = vmul.f32 %v455, %v457
        %v459 = vadd.f32 %v455, %v458
        %vm460 = vweird.f32 %v453
        %vm461 = vweird.f32 %v455
        %vm462 = vmor %vm460, %vm461
        %v463 = vsel %vm462, %v455, %v459
        %v464 = vand.u32 2147483647, %v453
        %vm465 = vcmp.eq.f32.partialorder %v464, 8.507059e+37
        %v466 = vand.u32 %v453, 2147483648
        %v467 = vor.u32 1.1754944e-38, %v466
        %v468 = vsel %vm465, %v467, %v463
        %v469 = vmul.f32 %v454, %v468
        %v470 = vsub.f32 1.0, %v431
        %v471 = vmin.f32 %v431, %v470
        %v472 = vlog2.pop %v471
        %v473 = vmul.f32 %v472, 0.6931472
        %v474 = vmul.f32 %v473, -2.0
        %v475 = vrsqrt.pop %v474
        %v476 = vmul.f32 %v475, %v474
        %v477 = vmul.f32 %v476, %v475
        %v478 = vmul.f32 0.5, %v477
        %v479 = vsub.f32 1.5, %v478
        %v480 = vmul.f32 %v475, %v479
        %v481 = vmul.f32 %v474, %v480
        %vm482 = vcmp.eq.f32.partialorder %v474, inf
        %v483 = vsel %vm482, %v474, %v481
        %vm484 = vcmp.eq.f32.partialorder %v474, 0.0
        %v485 = vand.u32 %v474, 2147483648
        %v486 = vsel %vm484, %v485, %v483
        %v487 = vmul.f32 %v486, -0.007784894
        %v488 = vadd.f32 %v487, -0.32239646
        %v489 = vmul.f32 %v488, %v486
        %v490 = vadd.f32 %v489, -2.4007583
        %v491 = vmul.f32 %v490, %v486
        %v492 = vadd.f32 %v491, -2.5497324
        %v493 = vmul.f32 %v492, %v486
        %v494 = vadd.f32 %v493, 4.3746643
        %v495 = vmul.f32 %v494, %v486
        %v496 = vadd.f32 %v495, 2.938164
        %v497 = vmul.f32 %v486, 0.007784696
        %v498 = vadd.f32 %v497, 0.32246712
        %v499 = vmul.f32 %v498, %v486
        %v500 = vadd.f32 %v499, 2.4451342
        %v501 = vmul.f32 %v500, %v486
        %v502 = vadd.f32 %v501, 3.7544086
        %v503 = vmul.f32 %v502, %v486
        %v504 = vadd.f32 %v503, 1.0
        %v505 = vrcp.pop %v504
        %v506 = vmul.f32 %v504, %v505
        %v507 = vsub.f32 1.0, %v506
        %v508 = vmul.f32 %v505, %v507
        %v509 = vadd.f32 %v505, %v508
        %vm510 = vweird.f32 %v504
        %vm511 = vweird.f32 %v505
        %vm512 = vmor %vm510, %vm511
        %v513 = vsel %vm512, %v505, %v509
        %v514 = vand.u32 2147483647, %v504
        %vm515 = vcmp.eq.f32.partialorder %v514, 8.507059e+37
        %v516 = vand.u32 %v504, 2147483648
        %v517 = vor.u32 1.1754944e-38, %v516
        %v518 = vsel %vm515, %v517, %v513
        %v519 = vmul.f32 %v496, %v518
        %vm520 = vcmp.gt.f32.partialorder %v431, 0.5
        %v521 = vsub.f32 0.0, %v519
        %v522 = vsel %vm520, %v521, %v519
        %vm523 = vcmp.lt.f32.partialorder %v431, 0.02425
        %vm524 = vcmp.gt.f32.partialorder %v431, 0.97575
        %vm525 = vmor %vm523, %vm524
        %v526 = vsel %vm525, %v522, %v469
        %v527 = vmul.f32 %v526, 16.756756
        %529 = vrot.lane.b32.xlu0 %v527, 3
        %v530 = vpop.permute.xlu0 %529
        %vm532 = vcmask 23552
        %v533 = vsel %vm532, 0.0, %v530
        %vm534 = vcmask 302080
        %v535 = vsel %vm534, %v533, 0.0
        %v537 = vrot.slane %v535, 4
        %538 = vrot.lane.b32.xlu0 %v537, 127
        %v539 = vpop.permute.xlu0 %538
        %541 = vrot.lane.b32.xlu0 %v535, 126
        %v542 = vpop.permute.xlu0 %541
        %544 = vrot.lane.b32.xlu0 %v537, 125
        %v545 = vpop.permute.xlu0 %544
        %547 = vrot.lane.b32.xlu0 %v535, 124
        %v548 = vpop.permute.xlu0 %547
        %550 = vrot.lane.b32.xlu0 %v537, 123
        %v551 = vpop.permute.xlu0 %550
        %553 = vrot.lane.b32.xlu0 %v535, 122
        %v554 = vpop.permute.xlu0 %553
        %v555 = vsel %vm327, %v535, %v539
        %v556 = vsel %vm327, %v542, %v545
        %v557 = vsel %vm327, %v548, %v551
        %558 = vset.pattern.permute.xlu0 37
        %559 = vperm.xlu0 %558, %v256
        %v560 = vpop.permute.xlu0 %559
        %562 = vrot.lane.b32.xlu0 %v256, 119
        %v563 = vpop.permute.xlu0 %562
        %vm564 = vcmask 228352
        %v565 = vsel %vm564, %v563, 0
        %v567 = vsel %vm327, %v554, 0
        %569 = vmatpush.msra.mxu0 0.0
        %570 = vmatpush.msra.mxu0 0.0
        %571 = vmatpush.msra.mxu0 0.0
        %572 = vmatpush.msra.mxu0 0.0
        %573 = vmatpush.msra.mxu0 0.0
        %574 = vmatpush.msra.mxu0 0.0
        %575 = vmatpush.msra.mxu0 0.0
        %576 = vmatpush.msra.mxu0 0.0
        %577 = vmatpush.msra.mxu0 0.0
        %578 = vmatpush.msra.mxu0 0.0
        %579 = vmatpush.msra.mxu0 0.0
        %580 = vmatpush.msra.mxu0 0.0
        %581 = vmatpush.msra.mxu0 %v567
        %582 = vmatpush.msra.mxu0 %v557
        %583 = vmatpush.msra.mxu0 %v556
        %584 = vmatpush.msra.mxu0 %v555
        %585 = vmatmul.f32.gmra.mxu0 %v565
        %v586 = vpop.f32.mrf.mxu0
        %v587 = vadd.f32 %v560, %v586
        %588 = vdwg.mxu0
        %589 = vset.pattern.permute.xlu0 38
        %590 = vperm.xlu0 %589, %v256
        %v591 = vpop.permute.xlu0 %590
        %v593 = vmul.f32 %v591, %v587
        %v594 = vmul.f32 %v593, 0.15915494
        %v595 = vadd.f32 %v594, 0.5
        %v596 = vfloor.f32 %v595
        %v597 = vmul.f32 %v596, 6.28125
        %v598 = vsub.f32 %v593, %v597
        %v599 = vmul.f32 %v596, 0.0019353072
        %v600 = vsub.f32 %v598, %v599
        %vm601 = vcmp.gt.f32.partialorder %v600, 1.5707964
        %v602 = vsub.f32 3.1415927, %v600
        %v603 = vsel %vm601, %v602, %v600
        %vm604 = vcmp.lt.f32.partialorder %v603, -1.5707964
        %v605 = vsub.f32 -3.1415927, %v603
        %v606 = vsel %vm604, %v605, %v603
        %v607 = vmul.f32 %v606, %v606
        %v608 = vmul.f32 %v607, 2.5052108e-08
        %v609 = vsub.f32 2.7557319e-06, %v608
        %v610 = vmul.f32 %v607, %v609
        %v611 = vadd.f32 %v610, -0.0001984127
        %v612 = vmul.f32 %v607, %v611
        %v613 = vadd.f32 %v612, 0.008333334
        %v614 = vmul.f32 %v607, %v613
        %v615 = vadd.f32 %v614, -0.16666667
        %v616 = vmul.f32 %v607, %v615
        %v617 = vadd.f32 %v616, 1.0
        %v618 = vmul.f32 %v606, %v617
        %v619 = vmul.f32 %v618, %v618
        %620 = vset.pattern.permute.xlu0 39
        %621 = vperm.xlu0 %620, %v256
        %v622 = vpop.permute.xlu0 %621
        %v624 = vmul.f32 %v622, %v619
        %v625 = vadd.f32 %v587, %v624
        %627 = vrot.lane.b32.xlu0 %v625, 127
        %v628 = vpop.permute.xlu0 %627
        %630 = vset.pattern.permute.xlu0 56
        %631 = vperm.xlu0 %630, %v256
        %v632 = vpop.permute.xlu0 %631
        %634 = vrot.lane.b32.xlu0 %v256, 88
        %v635 = vpop.permute.xlu0 %634
        %vm636 = vcmask 130048
        %v637 = vsel %vm636, %v635, 0
        %639 = vmatpush.msra.mxu0 0.0
        %640 = vmatpush.msra.mxu0 0.0
        %641 = vmatpush.msra.mxu0 0.0
        %642 = vmatpush.msra.mxu0 0.0
        %643 = vmatpush.msra.mxu0 0.0
        %644 = vmatpush.msra.mxu0 0.0
        %645 = vmatpush.msra.mxu0 0.0
        %646 = vmatpush.msra.mxu0 0.0
        %647 = vmatpush.msra.mxu0 0.0
        %648 = vmatpush.msra.mxu0 0.0
        %649 = vmatpush.msra.mxu0 0.0
        %650 = vmatpush.msra.mxu0 0.0
        %651 = vmatpush.msra.mxu0 0.0
        %652 = vmatpush.msra.mxu0 0.0
        %653 = vmatpush.msra.mxu0 %v628
        %654 = vmatpush.msra.mxu0 %v625
        %655 = vmatmul.f32.gmra.mxu0 %v637
        %v656 = vpop.f32.mrf.mxu0
        %v657 = vadd.f32 %v632, %v656
        %658 = vdwg.mxu0
        %659 = vset.pattern.permute.xlu0 57
        %660 = vperm.xlu0 %659, %v256
        %v661 = vpop.permute.xlu0 %660
        %v663 = vmul.f32 %v661, %v657
        %v664 = vmul.f32 %v663, 0.15915494
        %v665 = vadd.f32 %v664, 0.5
        %v666 = vfloor.f32 %v665
        %v667 = vmul.f32 %v666, 6.28125
        %v668 = vsub.f32 %v663, %v667
        %v669 = vmul.f32 %v666, 0.0019353072
        %v670 = vsub.f32 %v668, %v669
        %vm671 = vcmp.gt.f32.partialorder %v670, 1.5707964
        %v672 = vsub.f32 3.1415927, %v670
        %v673 = vsel %vm671, %v672, %v670
        %vm674 = vcmp.lt.f32.partialorder %v673, -1.5707964
        %v675 = vsub.f32 -3.1415927, %v673
        %v676 = vsel %vm674, %v675, %v673
        %v677 = vmul.f32 %v676, %v676
        %v678 = vmul.f32 %v677, 2.5052108e-08
        %v679 = vsub.f32 2.7557319e-06, %v678
        %v680 = vmul.f32 %v677, %v679
        %v681 = vadd.f32 %v680, -0.0001984127
        %v682 = vmul.f32 %v677, %v681
        %v683 = vadd.f32 %v682, 0.008333334
        %v684 = vmul.f32 %v677, %v683
        %v685 = vadd.f32 %v684, -0.16666667
        %v686 = vmul.f32 %v677, %v685
        %v687 = vadd.f32 %v686, 1.0
        %v688 = vmul.f32 %v676, %v687
        %v689 = vmul.f32 %v688, %v688
        %690 = vset.pattern.permute.xlu0 58
        %691 = vperm.xlu0 %690, %v256
        %v692 = vpop.permute.xlu0 %691
        %v694 = vmul.f32 %v692, %v689
        %v695 = vadd.f32 %v657, %v694
        %697 = vrot.lane.b32.xlu0 %v695, 3
        %v698 = vpop.permute.xlu0 %697
        %v700 = vsel %vm532, 0.0, %v698
        %vm701 = vcmask 293888
        %v702 = vsel %vm701, %v700, 0.0
        %704 = vrot.lane.b32.xlu0 %v702, 127
        %v705 = vpop.permute.xlu0 %704
        %707 = vrot.lane.b32.xlu0 %v702, 126
        %v708 = vpop.permute.xlu0 %707
        %710 = vrot.lane.b32.xlu0 %v702, 125
        %v711 = vpop.permute.xlu0 %710
        %713 = vrot.lane.b32.xlu0 %v702, 124
        %v714 = vpop.permute.xlu0 %713
        %716 = vrot.lane.b32.xlu0 %v702, 123
        %v717 = vpop.permute.xlu0 %716
        %719 = vrot.lane.b32.xlu0 %v702, 122
        %v720 = vpop.permute.xlu0 %719
        %722 = vset.pattern.permute.xlu0 115
        %723 = vperm.xlu0 %722, %v256
        %v724 = vpop.permute.xlu0 %723
        %726 = vrot.lane.b32.xlu0 %v256, 69
        %v727 = vpop.permute.xlu0 %726
        %vm728 = vcmask 457728
        %v729 = vsel %vm728, %v727, 0
        %731 = vmatpush.msra.mxu0 0.0
        %732 = vmatpush.msra.mxu0 0.0
        %733 = vmatpush.msra.mxu0 0.0
        %734 = vmatpush.msra.mxu0 0.0
        %735 = vmatpush.msra.mxu0 0.0
        %736 = vmatpush.msra.mxu0 0.0
        %737 = vmatpush.msra.mxu0 0.0
        %738 = vmatpush.msra.mxu0 0.0
        %739 = vmatpush.msra.mxu0 0.0
        %740 = vmatpush.msra.mxu0 %v720
        %741 = vmatpush.msra.mxu0 %v717
        %742 = vmatpush.msra.mxu0 %v714
        %743 = vmatpush.msra.mxu0 %v711
        %744 = vmatpush.msra.mxu0 %v708
        %745 = vmatpush.msra.mxu0 %v705
        %746 = vmatpush.msra.mxu0 %v702
        %747 = vmatmul.f32.gmra.mxu0 %v729
        %v748 = vpop.f32.mrf.mxu0
        %v749 = vadd.f32 %v724, %v748
        %750 = vdwg.mxu0
        %751 = vset.pattern.permute.xlu0 116
        %752 = vperm.xlu0 %751, %v256
        %v753 = vpop.permute.xlu0 %752
        %v755 = vmul.f32 %v753, %v749
        %v756 = vmul.f32 %v755, 0.15915494
        %v757 = vadd.f32 %v756, 0.5
        %v758 = vfloor.f32 %v757
        %v759 = vmul.f32 %v758, 6.28125
        %v760 = vsub.f32 %v755, %v759
        %v761 = vmul.f32 %v758, 0.0019353072
        %v762 = vsub.f32 %v760, %v761
        %vm763 = vcmp.gt.f32.partialorder %v762, 1.5707964
        %v764 = vsub.f32 3.1415927, %v762
        %v765 = vsel %vm763, %v764, %v762
        %vm766 = vcmp.lt.f32.partialorder %v765, -1.5707964
        %v767 = vsub.f32 -3.1415927, %v765
        %v768 = vsel %vm766, %v767, %v765
        %v769 = vmul.f32 %v768, %v768
        %v770 = vmul.f32 %v769, 2.5052108e-08
        %v771 = vsub.f32 2.7557319e-06, %v770
        %v772 = vmul.f32 %v769, %v771
        %v773 = vadd.f32 %v772, -0.0001984127
        %v774 = vmul.f32 %v769, %v773
        %v775 = vadd.f32 %v774, 0.008333334
        %v776 = vmul.f32 %v769, %v775
        %v777 = vadd.f32 %v776, -0.16666667
        %v778 = vmul.f32 %v769, %v777
        %v779 = vadd.f32 %v778, 1.0
        %v780 = vmul.f32 %v768, %v779
        %v781 = vmul.f32 %v780, %v780
        %782 = vset.pattern.permute.xlu0 117
        %783 = vperm.xlu0 %782, %v256
        %v784 = vpop.permute.xlu0 %783
        %v786 = vmul.f32 %v784, %v781
        %v787 = vadd.f32 %v749, %v786
        %788 = vset.pattern.permute.xlu0 126
        %789 = vperm.xlu0 %788, %v256
        %v790 = vpop.permute.xlu0 %789
        %792 = vrot.lane.b32.xlu0 %v256, 10
        %v793 = vpop.permute.xlu0 %792
        %v794 = vsel %vm336, %v793, 0
        %796 = vmatpush.msra.mxu0 0.0
        %797 = vmatpush.msra.mxu0 0.0
        %798 = vmatpush.msra.mxu0 0.0
        %799 = vmatpush.msra.mxu0 0.0
        %800 = vmatpush.msra.mxu0 0.0
        %801 = vmatpush.msra.mxu0 0.0
        %802 = vmatpush.msra.mxu0 0.0
        %803 = vmatpush.msra.mxu0 0.0
        %804 = vmatpush.msra.mxu0 0.0
        %805 = vmatpush.msra.mxu0 0.0
        %806 = vmatpush.msra.mxu0 0.0
        %807 = vmatpush.msra.mxu0 0.0
        %808 = vmatpush.msra.mxu0 0.0
        %809 = vmatpush.msra.mxu0 0.0
        %810 = vmatpush.msra.mxu0 0.0
        %811 = vmatpush.msra.mxu0 %v787
        %812 = vmatmul.f32.gmra.mxu0 %v794
        %v813 = vpop.f32.mrf.mxu0
        %v814 = vadd.f32 %v790, %v813
        %815 = vdwg.mxu0
        %v816 = vadd.f32 %v657, %v814
        %817 = vset.pattern.permute.xlu0 127
        %818 = vperm.xlu0 %817, %v256
        %v819 = vpop.permute.xlu0 %818
        %v821 = vmul.f32 %v819, %v816
        %v822 = vmul.f32 %v821, 0.15915494
        %v823 = vadd.f32 %v822, 0.5
        %v824 = vfloor.f32 %v823
        %v825 = vmul.f32 %v824, 6.28125
        %v826 = vsub.f32 %v821, %v825
        %v827 = vmul.f32 %v824, 0.0019353072
        %v828 = vsub.f32 %v826, %v827
        %vm829 = vcmp.gt.f32.partialorder %v828, 1.5707964
        %v830 = vsub.f32 3.1415927, %v828
        %v831 = vsel %vm829, %v830, %v828
        %vm832 = vcmp.lt.f32.partialorder %v831, -1.5707964
        %v833 = vsub.f32 -3.1415927, %v831
        %v834 = vsel %vm832, %v833, %v831
        %v835 = vmul.f32 %v834, %v834
        %v836 = vmul.f32 %v835, 2.5052108e-08
        %v837 = vsub.f32 2.7557319e-06, %v836
        %v838 = vmul.f32 %v835, %v837
        %v839 = vadd.f32 %v838, -0.0001984127
        %v840 = vmul.f32 %v835, %v839
        %v841 = vadd.f32 %v840, 0.008333334
        %v842 = vmul.f32 %v835, %v841
        %v843 = vadd.f32 %v842, -0.16666667
        %v844 = vmul.f32 %v835, %v843
        %v845 = vadd.f32 %v844, 1.0
        %v846 = vmul.f32 %v834, %v845
        %v847 = vmul.f32 %v846, %v846
        %849 = vset.pattern.permute.xlu0 0
        %850 = vperm.xlu0 %849, %v257
        %v851 = vpop.permute.xlu0 %850
        %v853 = vmul.f32 %v851, %v847
        %v854 = vadd.f32 %v816, %v853
        %856 = vrot.lane.b32.xlu0 %v854, 9
        %v857 = vpop.permute.xlu0 %856
        %vm859 = vcmask 72704
        %v860 = vsel %vm859, 0.0, %v857
        %vm861 = vcmask 343040
        %v862 = vsel %vm861, %v860, 0.0
        %864 = vrot.lane.b32.xlu0 %v862, 125
        %v865 = vpop.permute.xlu0 %864
        %867 = vrot.lane.b32.xlu0 %v862, 122
        %v868 = vpop.permute.xlu0 %867
        %870 = vrot.lane.b32.xlu0 %v862, 119
        %v871 = vpop.permute.xlu0 %870
        %873 = vrot.lane.b32.xlu0 %v862, 116
        %v874 = vpop.permute.xlu0 %873
        %876 = vrot.lane.b32.xlu0 %v862, 113
        %v877 = vpop.permute.xlu0 %876
        %879 = vrot.lane.b32.xlu0 %v862, 110
        %v880 = vpop.permute.xlu0 %879
        %882 = vset.pattern.permute.xlu0 57
        %883 = vperm.xlu0 %882, %v257
        %v884 = vpop.permute.xlu0 %883
        %886 = vrot.lane.b32.xlu0 %v257, 127
        %v887 = vpop.permute.xlu0 %886
        %v888 = vsel %vm728, %v887, 0
        %890 = vmatpush.msra.mxu0 0.0
        %891 = vmatpush.msra.mxu0 0.0
        %892 = vmatpush.msra.mxu0 0.0
        %893 = vmatpush.msra.mxu0 0.0
        %894 = vmatpush.msra.mxu0 0.0
        %895 = vmatpush.msra.mxu0 0.0
        %896 = vmatpush.msra.mxu0 0.0
        %897 = vmatpush.msra.mxu0 0.0
        %898 = vmatpush.msra.mxu0 0.0
        %899 = vmatpush.msra.mxu0 %v880
        %900 = vmatpush.msra.mxu0 %v877
        %901 = vmatpush.msra.mxu0 %v874
        %902 = vmatpush.msra.mxu0 %v871
        %903 = vmatpush.msra.mxu0 %v868
        %904 = vmatpush.msra.mxu0 %v865
        %905 = vmatpush.msra.mxu0 %v862
        %906 = vmatmul.f32.gmra.mxu0 %v888
        %v907 = vpop.f32.mrf.mxu0
        %v908 = vadd.f32 %v884, %v907
        %909 = vdwg.mxu0
        %910 = vset.pattern.permute.xlu0 58
        %911 = vperm.xlu0 %910, %v257
        %v912 = vpop.permute.xlu0 %911
        %v914 = vmul.f32 %v912, %v908
        %v915 = vmul.f32 %v914, 0.15915494
        %v916 = vadd.f32 %v915, 0.5
        %v917 = vfloor.f32 %v916
        %v918 = vmul.f32 %v917, 6.28125
        %v919 = vsub.f32 %v914, %v918
        %v920 = vmul.f32 %v917, 0.0019353072
        %v921 = vsub.f32 %v919, %v920
        %vm922 = vcmp.gt.f32.partialorder %v921, 1.5707964
        %v923 = vsub.f32 3.1415927, %v921
        %v924 = vsel %vm922, %v923, %v921
        %vm925 = vcmp.lt.f32.partialorder %v924, -1.5707964
        %v926 = vsub.f32 -3.1415927, %v924
        %v927 = vsel %vm925, %v926, %v924
        %v928 = vmul.f32 %v927, %v927
        %v929 = vmul.f32 %v928, 2.5052108e-08
        %v930 = vsub.f32 2.7557319e-06, %v929
        %v931 = vmul.f32 %v928, %v930
        %v932 = vadd.f32 %v931, -0.0001984127
        %v933 = vmul.f32 %v928, %v932
        %v934 = vadd.f32 %v933, 0.008333334
        %v935 = vmul.f32 %v928, %v934
        %v936 = vadd.f32 %v935, -0.16666667
        %v937 = vmul.f32 %v928, %v936
        %v938 = vadd.f32 %v937, 1.0
        %v939 = vmul.f32 %v927, %v938
        %v940 = vmul.f32 %v939, %v939
        %941 = vset.pattern.permute.xlu0 59
        %942 = vperm.xlu0 %941, %v257
        %v943 = vpop.permute.xlu0 %942
        %v945 = vmul.f32 %v943, %v940
        %v946 = vadd.f32 %v908, %v945
        %947 = vset.pattern.permute.xlu0 68
        %948 = vperm.xlu0 %947, %v257
        %v949 = vpop.permute.xlu0 %948
        %951 = vrot.lane.b32.xlu0 %v257, 68
        %v952 = vpop.permute.xlu0 %951
        %v953 = vsel %vm336, %v952, 0
        %955 = vmatpush.msra.mxu0 0.0
        %956 = vmatpush.msra.mxu0 0.0
        %957 = vmatpush.msra.mxu0 0.0
        %958 = vmatpush.msra.mxu0 0.0
        %959 = vmatpush.msra.mxu0 0.0
        %960 = vmatpush.msra.mxu0 0.0
        %961 = vmatpush.msra.mxu0 0.0
        %962 = vmatpush.msra.mxu0 0.0
        %963 = vmatpush.msra.mxu0 0.0
        %964 = vmatpush.msra.mxu0 0.0
        %965 = vmatpush.msra.mxu0 0.0
        %966 = vmatpush.msra.mxu0 0.0
        %967 = vmatpush.msra.mxu0 0.0
        %968 = vmatpush.msra.mxu0 0.0
        %969 = vmatpush.msra.mxu0 0.0
        %970 = vmatpush.msra.mxu0 %v946
        %971 = vmatmul.f32.gmra.mxu0 %v953
        %v972 = vpop.f32.mrf.mxu0
        %v973 = vadd.f32 %v949, %v972
        %974 = vdwg.mxu0
        %v975 = vadd.f32 %v816, %v973
        %976 = vset.pattern.permute.xlu0 69
        %977 = vperm.xlu0 %976, %v257
        %v978 = vpop.permute.xlu0 %977
        %v980 = vmul.f32 %v978, %v975
        %v981 = vmul.f32 %v980, 0.15915494
        %v982 = vadd.f32 %v981, 0.5
        %v983 = vfloor.f32 %v982
        %v984 = vmul.f32 %v983, 6.28125
        %v985 = vsub.f32 %v980, %v984
        %v986 = vmul.f32 %v983, 0.0019353072
        %v987 = vsub.f32 %v985, %v986
        %vm988 = vcmp.gt.f32.partialorder %v987, 1.5707964
        %v989 = vsub.f32 3.1415927, %v987
        %v990 = vsel %vm988, %v989, %v987
        %vm991 = vcmp.lt.f32.partialorder %v990, -1.5707964
        %v992 = vsub.f32 -3.1415927, %v990
        %v993 = vsel %vm991, %v992, %v990
        %v994 = vmul.f32 %v993, %v993
        %v995 = vmul.f32 %v994, 2.5052108e-08
        %v996 = vsub.f32 2.7557319e-06, %v995
        %v997 = vmul.f32 %v994, %v996
        %v998 = vadd.f32 %v997, -0.0001984127
        %v999 = vmul.f32 %v994, %v998
        %v1000 = vadd.f32 %v999, 0.008333334
        %v1001 = vmul.f32 %v994, %v1000
        %v1002 = vadd.f32 %v1001, -0.16666667
        %v1003 = vmul.f32 %v994, %v1002
        %v1004 = vadd.f32 %v1003, 1.0
        %v1005 = vmul.f32 %v993, %v1004
        %v1006 = vmul.f32 %v1005, %v1005
        %1007 = vset.pattern.permute.xlu0 70
        %1008 = vperm.xlu0 %1007, %v257
        %v1009 = vpop.permute.xlu0 %1008
        %v1011 = vmul.f32 %v1009, %v1006
        %v1012 = vadd.f32 %v975, %v1011
        %1014 = vrot.lane.b32.xlu0 %v1012, 27
        %v1015 = vpop.permute.xlu0 %1014
        %vm1017 = vcmask 220160
        %v1018 = vsel %vm1017, 0.0, %v1015
        %vm1019 = vcmask 490496
        %v1020 = vsel %vm1019, %v1018, 0.0
        %1022 = vrot.lane.b32.xlu0 %v1020, 119
        %v1023 = vpop.permute.xlu0 %1022
        %1025 = vrot.lane.b32.xlu0 %v1020, 110
        %v1026 = vpop.permute.xlu0 %1025
        %1028 = vrot.lane.b32.xlu0 %v1020, 101
        %v1029 = vpop.permute.xlu0 %1028
        %1031 = vrot.lane.b32.xlu0 %v1020, 92
        %v1032 = vpop.permute.xlu0 %1031
        %1034 = vrot.lane.b32.xlu0 %v1020, 83
        %v1035 = vpop.permute.xlu0 %1034
        %1037 = vrot.lane.b32.xlu0 %v1020, 74
        %v1038 = vpop.permute.xlu0 %1037
        %1040 = vset.pattern.permute.xlu0 127
        %1041 = vperm.xlu0 %1040, %v257
        %v1042 = vpop.permute.xlu0 %1041
        %1044 = vrot.lane.b32.xlu0 %v257, 57
        %v1045 = vpop.permute.xlu0 %1044
        %v1046 = vsel %vm728, %v1045, 0
        %1048 = vmatpush.msra.mxu0 0.0
        %1049 = vmatpush.msra.mxu0 0.0
        %1050 = vmatpush.msra.mxu0 0.0
        %1051 = vmatpush.msra.mxu0 0.0
        %1052 = vmatpush.msra.mxu0 0.0
        %1053 = vmatpush.msra.mxu0 0.0
        %1054 = vmatpush.msra.mxu0 0.0
        %1055 = vmatpush.msra.mxu0 0.0
        %1056 = vmatpush.msra.mxu0 0.0
        %1057 = vmatpush.msra.mxu0 %v1038
        %1058 = vmatpush.msra.mxu0 %v1035
        %1059 = vmatpush.msra.mxu0 %v1032
        %1060 = vmatpush.msra.mxu0 %v1029
        %1061 = vmatpush.msra.mxu0 %v1026
        %1062 = vmatpush.msra.mxu0 %v1023
        %1063 = vmatpush.msra.mxu0 %v1020
        %1064 = vmatmul.f32.gmra.mxu0 %v1046
        %v1065 = vpop.f32.mrf.mxu0
        %v1066 = vadd.f32 %v1042, %v1065
        %1067 = vdwg.mxu0
        %1069 = vset.pattern.permute.xlu0 0
        %1070 = vperm.xlu0 %1069, %v258
        %v1071 = vpop.permute.xlu0 %1070
        %v1073 = vmul.f32 %v1071, %v1066
        %v1074 = vmul.f32 %v1073, 0.15915494
        %v1075 = vadd.f32 %v1074, 0.5
        %v1076 = vfloor.f32 %v1075
        %v1077 = vmul.f32 %v1076, 6.28125
        %v1078 = vsub.f32 %v1073, %v1077
        %v1079 = vmul.f32 %v1076, 0.0019353072
        %v1080 = vsub.f32 %v1078, %v1079
        %vm1081 = vcmp.gt.f32.partialorder %v1080, 1.5707964
        %v1082 = vsub.f32 3.1415927, %v1080
        %v1083 = vsel %vm1081, %v1082, %v1080
        %vm1084 = vcmp.lt.f32.partialorder %v1083, -1.5707964
        %v1085 = vsub.f32 -3.1415927, %v1083
        %v1086 = vsel %vm1084, %v1085, %v1083
        %v1087 = vmul.f32 %v1086, %v1086
        %v1088 = vmul.f32 %v1087, 2.5052108e-08
        %v1089 = vsub.f32 2.7557319e-06, %v1088
        %v1090 = vmul.f32 %v1087, %v1089
        %v1091 = vadd.f32 %v1090, -0.0001984127
        %v1092 = vmul.f32 %v1087, %v1091
        %v1093 = vadd.f32 %v1092, 0.008333334
        %v1094 = vmul.f32 %v1087, %v1093
        %v1095 = vadd.f32 %v1094, -0.16666667
        %v1096 = vmul.f32 %v1087, %v1095
        %v1097 = vadd.f32 %v1096, 1.0
        %v1098 = vmul.f32 %v1086, %v1097
        %v1099 = vmul.f32 %v1098, %v1098
        %1100 = vset.pattern.permute.xlu0 1
        %1101 = vperm.xlu0 %1100, %v258
        %v1102 = vpop.permute.xlu0 %1101
        %v1104 = vmul.f32 %v1102, %v1099
        %v1105 = vadd.f32 %v1066, %v1104
        %1106 = vset.pattern.permute.xlu0 10
        %1107 = vperm.xlu0 %1106, %v258
        %v1108 = vpop.permute.xlu0 %1107
        %1110 = vrot.lane.b32.xlu0 %v258, 126
        %v1111 = vpop.permute.xlu0 %1110
        %v1112 = vsel %vm336, %v1111, 0
        %1114 = vmatpush.msra.mxu0 0.0
        %1115 = vmatpush.msra.mxu0 0.0
        %1116 = vmatpush.msra.mxu0 0.0
        %1117 = vmatpush.msra.mxu0 0.0
        %1118 = vmatpush.msra.mxu0 0.0
        %1119 = vmatpush.msra.mxu0 0.0
        %1120 = vmatpush.msra.mxu0 0.0
        %1121 = vmatpush.msra.mxu0 0.0
        %1122 = vmatpush.msra.mxu0 0.0
        %1123 = vmatpush.msra.mxu0 0.0
        %1124 = vmatpush.msra.mxu0 0.0
        %1125 = vmatpush.msra.mxu0 0.0
        %1126 = vmatpush.msra.mxu0 0.0
        %1127 = vmatpush.msra.mxu0 0.0
        %1128 = vmatpush.msra.mxu0 0.0
        %1129 = vmatpush.msra.mxu0 %v1105
        %1130 = vmatmul.f32.gmra.mxu0 %v1112
        %v1131 = vpop.f32.mrf.mxu0
        %v1132 = vadd.f32 %v1108, %v1131
        %1133 = vdwg.mxu0
        %v1134 = vadd.f32 %v975, %v1132
        %1135 = vset.pattern.permute.xlu0 11
        %1136 = vperm.xlu0 %1135, %v258
        %v1137 = vpop.permute.xlu0 %1136
        %v1139 = vmul.f32 %v1137, %v1134
        %v1140 = vmul.f32 %v1139, 0.15915494
        %v1141 = vadd.f32 %v1140, 0.5
        %v1142 = vfloor.f32 %v1141
        %v1143 = vmul.f32 %v1142, 6.28125
        %v1144 = vsub.f32 %v1139, %v1143
        %v1145 = vmul.f32 %v1142, 0.0019353072
        %v1146 = vsub.f32 %v1144, %v1145
        %vm1147 = vcmp.gt.f32.partialorder %v1146, 1.5707964
        %v1148 = vsub.f32 3.1415927, %v1146
        %v1149 = vsel %vm1147, %v1148, %v1146
        %vm1150 = vcmp.lt.f32.partialorder %v1149, -1.5707964
        %v1151 = vsub.f32 -3.1415927, %v1149
        %v1152 = vsel %vm1150, %v1151, %v1149
        %v1153 = vmul.f32 %v1152, %v1152
        %v1154 = vmul.f32 %v1153, 2.5052108e-08
        %v1155 = vsub.f32 2.7557319e-06, %v1154
        %v1156 = vmul.f32 %v1153, %v1155
        %v1157 = vadd.f32 %v1156, -0.0001984127
        %v1158 = vmul.f32 %v1153, %v1157
        %v1159 = vadd.f32 %v1158, 0.008333334
        %v1160 = vmul.f32 %v1153, %v1159
        %v1161 = vadd.f32 %v1160, -0.16666667
        %v1162 = vmul.f32 %v1153, %v1161
        %v1163 = vadd.f32 %v1162, 1.0
        %v1164 = vmul.f32 %v1152, %v1163
        %v1165 = vmul.f32 %v1164, %v1164
        %1166 = vset.pattern.permute.xlu0 12
        %1167 = vperm.xlu0 %1166, %v258
        %v1168 = vpop.permute.xlu0 %1167
        %v1170 = vmul.f32 %v1168, %v1165
        %v1171 = vadd.f32 %v1134, %v1170
        %1173 = vrot.lane.b32.xlu0 %v1171, 127
        %v1174 = vpop.permute.xlu0 %1173
        %1176 = vset.pattern.permute.xlu0 29
        %1177 = vperm.xlu0 %1176, %v258
        %v1178 = vpop.permute.xlu0 %1177
        %1180 = vrot.lane.b32.xlu0 %v258, 115
        %v1181 = vpop.permute.xlu0 %1180
        %v1182 = vsel %vm636, %v1181, 0
        %1184 = vmatpush.msra.mxu0 0.0
        %1185 = vmatpush.msra.mxu0 0.0
        %1186 = vmatpush.msra.mxu0 0.0
        %1187 = vmatpush.msra.mxu0 0.0
        %1188 = vmatpush.msra.mxu0 0.0
        %1189 = vmatpush.msra.mxu0 0.0
        %1190 = vmatpush.msra.mxu0 0.0
        %1191 = vmatpush.msra.mxu0 0.0
        %1192 = vmatpush.msra.mxu0 0.0
        %1193 = vmatpush.msra.mxu0 0.0
        %1194 = vmatpush.msra.mxu0 0.0
        %1195 = vmatpush.msra.mxu0 0.0
        %1196 = vmatpush.msra.mxu0 0.0
        %1197 = vmatpush.msra.mxu0 0.0
        %1198 = vmatpush.msra.mxu0 %v1174
        %1199 = vmatpush.msra.mxu0 %v1171
        %1200 = vmatmul.f32.gmra.mxu0 %v1182
        %v1201 = vpop.f32.mrf.mxu0
        %v1202 = vadd.f32 %v1178, %v1201
        %1203 = vdwg.mxu0
        %1204 = vset.pattern.permute.xlu0 30
        %1205 = vperm.xlu0 %1204, %v258
        %v1206 = vpop.permute.xlu0 %1205
        %v1208 = vmul.f32 %v1206, %v1202
        %v1209 = vmul.f32 %v1208, 0.15915494
        %v1210 = vadd.f32 %v1209, 0.5
        %v1211 = vfloor.f32 %v1210
        %v1212 = vmul.f32 %v1211, 6.28125
        %v1213 = vsub.f32 %v1208, %v1212
        %v1214 = vmul.f32 %v1211, 0.0019353072
        %v1215 = vsub.f32 %v1213, %v1214
        %vm1216 = vcmp.gt.f32.partialorder %v1215, 1.5707964
        %v1217 = vsub.f32 3.1415927, %v1215
        %v1218 = vsel %vm1216, %v1217, %v1215
        %vm1219 = vcmp.lt.f32.partialorder %v1218, -1.5707964
        %v1220 = vsub.f32 -3.1415927, %v1218
        %v1221 = vsel %vm1219, %v1220, %v1218
        %v1222 = vmul.f32 %v1221, %v1221
        %v1223 = vmul.f32 %v1222, 2.5052108e-08
        %v1224 = vsub.f32 2.7557319e-06, %v1223
        %v1225 = vmul.f32 %v1222, %v1224
        %v1226 = vadd.f32 %v1225, -0.0001984127
        %v1227 = vmul.f32 %v1222, %v1226
        %v1228 = vadd.f32 %v1227, 0.008333334
        %v1229 = vmul.f32 %v1222, %v1228
        %v1230 = vadd.f32 %v1229, -0.16666667
        %v1231 = vmul.f32 %v1222, %v1230
        %v1232 = vadd.f32 %v1231, 1.0
        %v1233 = vmul.f32 %v1221, %v1232
        %v1234 = vmul.f32 %v1233, %v1233
        %1235 = vset.pattern.permute.xlu0 31
        %1236 = vperm.xlu0 %1235, %v258
        %v1237 = vpop.permute.xlu0 %1236
        %v1239 = vmul.f32 %v1237, %v1234
        %v1240 = vadd.f32 %v1202, %v1239
        %1242 = vrot.lane.b32.xlu0 %v1240, 3
        %v1243 = vpop.permute.xlu0 %1242
        %v1245 = vsel %vm532, 0.0, %v1243
        %vm1246 = vcmask 285696
        %v1247 = vsel %vm1246, %v1245, 0.0
        %v1249 = vrot.slane %v1247, 4
        %1250 = vrot.lane.b32.xlu0 %v1249, 127
        %v1251 = vpop.permute.xlu0 %1250
        %1253 = vrot.lane.b32.xlu0 %v1247, 126
        %v1254 = vpop.permute.xlu0 %1253
        %1256 = vrot.lane.b32.xlu0 %v1249, 125
        %v1257 = vpop.permute.xlu0 %1256
        %1259 = vrot.lane.b32.xlu0 %v1247, 124
        %v1260 = vpop.permute.xlu0 %1259
        %1262 = vrot.lane.b32.xlu0 %v1249, 123
        %v1263 = vpop.permute.xlu0 %1262
        %1265 = vrot.lane.b32.xlu0 %v1247, 122
        %v1266 = vpop.permute.xlu0 %1265
        %v1267 = vsel %vm327, %v1247, %v1251
        %v1268 = vsel %vm327, %v1254, %v1257
        %v1269 = vsel %vm327, %v1260, %v1263
        %1270 = vset.pattern.permute.xlu0 60
        %1271 = vperm.xlu0 %1270, %v258
        %v1272 = vpop.permute.xlu0 %1271
        %1274 = vrot.lane.b32.xlu0 %v258, 96
        %v1275 = vpop.permute.xlu0 %1274
        %v1276 = vsel %vm564, %v1275, 0
        %v1278 = vsel %vm327, %v1266, 0
        %1280 = vmatpush.msra.mxu0 0.0
        %1281 = vmatpush.msra.mxu0 0.0
        %1282 = vmatpush.msra.mxu0 0.0
        %1283 = vmatpush.msra.mxu0 0.0
        %1284 = vmatpush.msra.mxu0 0.0
        %1285 = vmatpush.msra.mxu0 0.0
        %1286 = vmatpush.msra.mxu0 0.0
        %1287 = vmatpush.msra.mxu0 0.0
        %1288 = vmatpush.msra.mxu0 0.0
        %1289 = vmatpush.msra.mxu0 0.0
        %1290 = vmatpush.msra.mxu0 0.0
        %1291 = vmatpush.msra.mxu0 0.0
        %1292 = vmatpush.msra.mxu0 %v1278
        %1293 = vmatpush.msra.mxu0 %v1269
        %1294 = vmatpush.msra.mxu0 %v1268
        %1295 = vmatpush.msra.mxu0 %v1267
        %1296 = vmatmul.f32.gmra.mxu0 %v1276
        %v1297 = vpop.f32.mrf.mxu0
        %v1298 = vadd.f32 %v1272, %v1297
        %1299 = vdwg.mxu0
        %1300 = vset.pattern.permute.xlu0 61
        %1301 = vperm.xlu0 %1300, %v258
        %v1302 = vpop.permute.xlu0 %1301
        %v1304 = vmul.f32 %v1302, %v1298
        %v1305 = vmul.f32 %v1304, 0.15915494
        %v1306 = vadd.f32 %v1305, 0.5
        %v1307 = vfloor.f32 %v1306
        %v1308 = vmul.f32 %v1307, 6.28125
        %v1309 = vsub.f32 %v1304, %v1308
        %v1310 = vmul.f32 %v1307, 0.0019353072
        %v1311 = vsub.f32 %v1309, %v1310
        %vm1312 = vcmp.gt.f32.partialorder %v1311, 1.5707964
        %v1313 = vsub.f32 3.1415927, %v1311
        %v1314 = vsel %vm1312, %v1313, %v1311
        %vm1315 = vcmp.lt.f32.partialorder %v1314, -1.5707964
        %v1316 = vsub.f32 -3.1415927, %v1314
        %v1317 = vsel %vm1315, %v1316, %v1314
        %v1318 = vmul.f32 %v1317, %v1317
        %v1319 = vmul.f32 %v1318, 2.5052108e-08
        %v1320 = vsub.f32 2.7557319e-06, %v1319
        %v1321 = vmul.f32 %v1318, %v1320
        %v1322 = vadd.f32 %v1321, -0.0001984127
        %v1323 = vmul.f32 %v1318, %v1322
        %v1324 = vadd.f32 %v1323, 0.008333334
        %v1325 = vmul.f32 %v1318, %v1324
        %v1326 = vadd.f32 %v1325, -0.16666667
        %v1327 = vmul.f32 %v1318, %v1326
        %v1328 = vadd.f32 %v1327, 1.0
        %v1329 = vmul.f32 %v1317, %v1328
        %v1330 = vmul.f32 %v1329, %v1329
        %1331 = vset.pattern.permute.xlu0 62
        %1332 = vperm.xlu0 %1331, %v258
        %v1333 = vpop.permute.xlu0 %1332
        %v1335 = vmul.f32 %v1333, %v1330
        %v1336 = vadd.f32 %v1298, %v1335
        %1337 = vset.pattern.permute.xlu0 67
        %1338 = vperm.xlu0 %1337, %v258
        %v1339 = vpop.permute.xlu0 %1338
        %1341 = vrot.lane.b32.xlu0 %v258, 65
        %v1342 = vpop.permute.xlu0 %1341
        %vm1343 = vcmask 31744
        %v1344 = vsel %vm1343, %v1342, 0
        %v1347 = vsel %vm327, %v1336, 0
        %1349 = vmatpush.msra.mxu0 0.0
        %1350 = vmatpush.msra.mxu0 0.0
        %1351 = vmatpush.msra.mxu0 0.0
        %1352 = vmatpush.msra.mxu0 0.0
        %1353 = vmatpush.msra.mxu0 0.0
        %1354 = vmatpush.msra.mxu0 0.0
        %1355 = vmatpush.msra.mxu0 0.0
        %1356 = vmatpush.msra.mxu0 0.0
        %1357 = vmatpush.msra.mxu0 0.0
        %1358 = vmatpush.msra.mxu0 0.0
        %1359 = vmatpush.msra.mxu0 0.0
        %1360 = vmatpush.msra.mxu0 0.0
        %1361 = vmatpush.msra.mxu0 0.0
        %1362 = vmatpush.msra.mxu0 0.0
        %1363 = vmatpush.msra.mxu0 0.0
        %1364 = vmatpush.msra.mxu0 %v1347
        %1365 = vmatmul.f32.gmra.mxu0 %v1344
        %v1366 = vpop.f32.mrf.mxu0
        %v1367 = vadd.f32 %v1339, %v1366
        %1368 = vdwg.mxu0
        %v1369 = vadd.f32 %v1202, %v1367
        %1370 = vset.pattern.permute.xlu0 68
        %1371 = vperm.xlu0 %1370, %v258
        %v1372 = vpop.permute.xlu0 %1371
        %v1374 = vmul.f32 %v1372, %v1369
        %v1375 = vmul.f32 %v1374, 0.15915494
        %v1376 = vadd.f32 %v1375, 0.5
        %v1377 = vfloor.f32 %v1376
        %v1378 = vmul.f32 %v1377, 6.28125
        %v1379 = vsub.f32 %v1374, %v1378
        %v1380 = vmul.f32 %v1377, 0.0019353072
        %v1381 = vsub.f32 %v1379, %v1380
        %vm1382 = vcmp.gt.f32.partialorder %v1381, 1.5707964
        %v1383 = vsub.f32 3.1415927, %v1381
        %v1384 = vsel %vm1382, %v1383, %v1381
        %vm1385 = vcmp.lt.f32.partialorder %v1384, -1.5707964
        %v1386 = vsub.f32 -3.1415927, %v1384
        %v1387 = vsel %vm1385, %v1386, %v1384
        %v1388 = vmul.f32 %v1387, %v1387
        %v1389 = vmul.f32 %v1388, 2.5052108e-08
        %v1390 = vsub.f32 2.7557319e-06, %v1389
        %v1391 = vmul.f32 %v1388, %v1390
        %v1392 = vadd.f32 %v1391, -0.0001984127
        %v1393 = vmul.f32 %v1388, %v1392
        %v1394 = vadd.f32 %v1393, 0.008333334
        %v1395 = vmul.f32 %v1388, %v1394
        %v1396 = vadd.f32 %v1395, -0.16666667
        %v1397 = vmul.f32 %v1388, %v1396
        %v1398 = vadd.f32 %v1397, 1.0
        %v1399 = vmul.f32 %v1387, %v1398
        %v1400 = vmul.f32 %v1399, %v1399
        %1401 = vset.pattern.permute.xlu0 69
        %1402 = vperm.xlu0 %1401, %v258
        %v1403 = vpop.permute.xlu0 %1402
        %v1405 = vmul.f32 %v1403, %v1400
        %v1406 = vadd.f32 %v1369, %v1405
        %1408 = vrot.lane.b32.xlu0 %v1406, 9
        %v1409 = vpop.permute.xlu0 %1408
        %v1411 = vsel %vm859, 0.0, %v1409
        %vm1412 = vcmask 334848
        %v1413 = vsel %vm1412, %v1411, 0.0
        %v1415 = vrot.slane %v1413, 4
        %1416 = vrot.lane.b32.xlu0 %v1415, 125
        %v1417 = vpop.permute.xlu0 %1416
        %1419 = vrot.lane.b32.xlu0 %v1413, 122
        %v1420 = vpop.permute.xlu0 %1419
        %1422 = vrot.lane.b32.xlu0 %v1415, 119
        %v1423 = vpop.permute.xlu0 %1422
        %1425 = vrot.lane.b32.xlu0 %v1413, 116
        %v1426 = vpop.permute.xlu0 %1425
        %1428 = vrot.lane.b32.xlu0 %v1415, 113
        %v1429 = vpop.permute.xlu0 %1428
        %1431 = vrot.lane.b32.xlu0 %v1413, 110
        %v1432 = vpop.permute.xlu0 %1431
        %v1433 = vsel %vm327, %v1413, %v1417
        %v1434 = vsel %vm327, %v1420, %v1423
        %v1435 = vsel %vm327, %v1426, %v1429
        %1436 = vset.pattern.permute.xlu0 98
        %1437 = vperm.xlu0 %1436, %v258
        %v1438 = vpop.permute.xlu0 %1437
        %1440 = vrot.lane.b32.xlu0 %v258, 58
        %v1441 = vpop.permute.xlu0 %1440
        %v1442 = vsel %vm564, %v1441, 0
        %v1444 = vsel %vm327, %v1432, 0
        %1446 = vmatpush.msra.mxu0 0.0
        %1447 = vmatpush.msra.mxu0 0.0
        %1448 = vmatpush.msra.mxu0 0.0
        %1449 = vmatpush.msra.mxu0 0.0
        %1450 = vmatpush.msra.mxu0 0.0
        %1451 = vmatpush.msra.mxu0 0.0
        %1452 = vmatpush.msra.mxu0 0.0
        %1453 = vmatpush.msra.mxu0 0.0
        %1454 = vmatpush.msra.mxu0 0.0
        %1455 = vmatpush.msra.mxu0 0.0
        %1456 = vmatpush.msra.mxu0 0.0
        %1457 = vmatpush.msra.mxu0 0.0
        %1458 = vmatpush.msra.mxu0 %v1444
        %1459 = vmatpush.msra.mxu0 %v1435
        %1460 = vmatpush.msra.mxu0 %v1434
        %1461 = vmatpush.msra.mxu0 %v1433
        %1462 = vmatmul.f32.gmra.mxu0 %v1442
        %v1463 = vpop.f32.mrf.mxu0
        %v1464 = vadd.f32 %v1438, %v1463
        %1465 = vdwg.mxu0
        %1466 = vset.pattern.permute.xlu0 99
        %1467 = vperm.xlu0 %1466, %v258
        %v1468 = vpop.permute.xlu0 %1467
        %v1470 = vmul.f32 %v1468, %v1464
        %v1471 = vmul.f32 %v1470, 0.15915494
        %v1472 = vadd.f32 %v1471, 0.5
        %v1473 = vfloor.f32 %v1472
        %v1474 = vmul.f32 %v1473, 6.28125
        %v1475 = vsub.f32 %v1470, %v1474
        %v1476 = vmul.f32 %v1473, 0.0019353072
        %v1477 = vsub.f32 %v1475, %v1476
        %vm1478 = vcmp.gt.f32.partialorder %v1477, 1.5707964
        %v1479 = vsub.f32 3.1415927, %v1477
        %v1480 = vsel %vm1478, %v1479, %v1477
        %vm1481 = vcmp.lt.f32.partialorder %v1480, -1.5707964
        %v1482 = vsub.f32 -3.1415927, %v1480
        %v1483 = vsel %vm1481, %v1482, %v1480
        %v1484 = vmul.f32 %v1483, %v1483
        %v1485 = vmul.f32 %v1484, 2.5052108e-08
        %v1486 = vsub.f32 2.7557319e-06, %v1485
        %v1487 = vmul.f32 %v1484, %v1486
        %v1488 = vadd.f32 %v1487, -0.0001984127
        %v1489 = vmul.f32 %v1484, %v1488
        %v1490 = vadd.f32 %v1489, 0.008333334
        %v1491 = vmul.f32 %v1484, %v1490
        %v1492 = vadd.f32 %v1491, -0.16666667
        %v1493 = vmul.f32 %v1484, %v1492
        %v1494 = vadd.f32 %v1493, 1.0
        %v1495 = vmul.f32 %v1483, %v1494
        %v1496 = vmul.f32 %v1495, %v1495
        %1497 = vset.pattern.permute.xlu0 100
        %1498 = vperm.xlu0 %1497, %v258
        %v1499 = vpop.permute.xlu0 %1498
        %v1501 = vmul.f32 %v1499, %v1496
        %v1502 = vadd.f32 %v1464, %v1501
        %1503 = vset.pattern.permute.xlu0 105
        %1504 = vperm.xlu0 %1503, %v258
        %v1505 = vpop.permute.xlu0 %1504
        %1507 = vrot.lane.b32.xlu0 %v258, 27
        %v1508 = vpop.permute.xlu0 %1507
        %v1509 = vsel %vm1343, %v1508, 0
        %v1512 = vsel %vm327, %v1502, 0
        %1514 = vmatpush.msra.mxu0 0.0
        %1515 = vmatpush.msra.mxu0 0.0
        %1516 = vmatpush.msra.mxu0 0.0
        %1517 = vmatpush.msra.mxu0 0.0
        %1518 = vmatpush.msra.mxu0 0.0
        %1519 = vmatpush.msra.mxu0 0.0
        %1520 = vmatpush.msra.mxu0 0.0
        %1521 = vmatpush.msra.mxu0 0.0
        %1522 = vmatpush.msra.mxu0 0.0
        %1523 = vmatpush.msra.mxu0 0.0
        %1524 = vmatpush.msra.mxu0 0.0
        %1525 = vmatpush.msra.mxu0 0.0
        %1526 = vmatpush.msra.mxu0 0.0
        %1527 = vmatpush.msra.mxu0 0.0
        %1528 = vmatpush.msra.mxu0 0.0
        %1529 = vmatpush.msra.mxu0 %v1512
        %1530 = vmatmul.f32.gmra.mxu0 %v1509
        %v1531 = vpop.f32.mrf.mxu0
        %v1532 = vadd.f32 %v1505, %v1531
        %1533 = vdwg.mxu0
        %v1534 = vadd.f32 %v1369, %v1532
        %1535 = vset.pattern.permute.xlu0 106
        %1536 = vperm.xlu0 %1535, %v258
        %v1537 = vpop.permute.xlu0 %1536
        %v1539 = vmul.f32 %v1537, %v1534
        %v1540 = vmul.f32 %v1539, 0.15915494
        %v1541 = vadd.f32 %v1540, 0.5
        %v1542 = vfloor.f32 %v1541
        %v1543 = vmul.f32 %v1542, 6.28125
        %v1544 = vsub.f32 %v1539, %v1543
        %v1545 = vmul.f32 %v1542, 0.0019353072
        %v1546 = vsub.f32 %v1544, %v1545
        %vm1547 = vcmp.gt.f32.partialorder %v1546, 1.5707964
        %v1548 = vsub.f32 3.1415927, %v1546
        %v1549 = vsel %vm1547, %v1548, %v1546
        %vm1550 = vcmp.lt.f32.partialorder %v1549, -1.5707964
        %v1551 = vsub.f32 -3.1415927, %v1549
        %v1552 = vsel %vm1550, %v1551, %v1549
        %v1553 = vmul.f32 %v1552, %v1552
        %v1554 = vmul.f32 %v1553, 2.5052108e-08
        %v1555 = vsub.f32 2.7557319e-06, %v1554
        %v1556 = vmul.f32 %v1553, %v1555
        %v1557 = vadd.f32 %v1556, -0.0001984127
        %v1558 = vmul.f32 %v1553, %v1557
        %v1559 = vadd.f32 %v1558, 0.008333334
        %v1560 = vmul.f32 %v1553, %v1559
        %v1561 = vadd.f32 %v1560, -0.16666667
        %v1562 = vmul.f32 %v1553, %v1561
        %v1563 = vadd.f32 %v1562, 1.0
        %v1564 = vmul.f32 %v1552, %v1563
        %v1565 = vmul.f32 %v1564, %v1564
        %1566 = vset.pattern.permute.xlu0 107
        %1567 = vperm.xlu0 %1566, %v258
        %v1568 = vpop.permute.xlu0 %1567
        %v1570 = vmul.f32 %v1568, %v1565
        %v1571 = vadd.f32 %v1534, %v1570
        %1573 = vrot.lane.b32.xlu0 %v1571, 27
        %v1574 = vpop.permute.xlu0 %1573
        %v1576 = vsel %vm1017, 0.0, %v1574
        %vm1577 = vcmask 482304
        %v1578 = vsel %vm1577, %v1576, 0.0
        %v1580 = vrot.slane %v1578, 4
        %1581 = vrot.lane.b32.xlu0 %v1580, 119
        %v1582 = vpop.permute.xlu0 %1581
        %1584 = vrot.lane.b32.xlu0 %v1578, 110
        %v1585 = vpop.permute.xlu0 %1584
        %1587 = vrot.lane.b32.xlu0 %v1580, 101
        %v1588 = vpop.permute.xlu0 %1587
        %1590 = vrot.lane.b32.xlu0 %v1578, 92
        %v1591 = vpop.permute.xlu0 %1590
        %1593 = vrot.lane.b32.xlu0 %v1580, 83
        %v1594 = vpop.permute.xlu0 %1593
        %1596 = vrot.lane.b32.xlu0 %v1578, 74
        %v1597 = vpop.permute.xlu0 %1596
        %v1598 = vsel %vm327, %v1578, %v1582
        %v1599 = vsel %vm327, %v1585, %v1588
        %v1600 = vsel %vm327, %v1591, %v1594
        %1602 = vset.pattern.permute.xlu0 8
        %1603 = vperm.xlu0 %1602, %v259
        %v1604 = vpop.permute.xlu0 %1603
        %1606 = vrot.lane.b32.xlu0 %v258, 20
        %v1607 = vpop.permute.xlu0 %1606
        %1608 = vrot.lane.b32.xlu0 %v259, 20
        %v1609 = vpop.permute.xlu0 %1608
        %vm1610 = vcmask 162816
        %v1611 = vsel %vm1610, %v1607, %v1609
        %v1612 = vsel %vm564, %v1611, 0
        %v1614 = vsel %vm327, %v1597, 0
        %1616 = vmatpush.msra.mxu0 0.0
        %1617 = vmatpush.msra.mxu0 0.0
        %1618 = vmatpush.msra.mxu0 0.0
        %1619 = vmatpush.msra.mxu0 0.0
        %1620 = vmatpush.msra.mxu0 0.0
        %1621 = vmatpush.msra.mxu0 0.0
        %1622 = vmatpush.msra.mxu0 0.0
        %1623 = vmatpush.msra.mxu0 0.0
        %1624 = vmatpush.msra.mxu0 0.0
        %1625 = vmatpush.msra.mxu0 0.0
        %1626 = vmatpush.msra.mxu0 0.0
        %1627 = vmatpush.msra.mxu0 0.0
        %1628 = vmatpush.msra.mxu0 %v1614
        %1629 = vmatpush.msra.mxu0 %v1600
        %1630 = vmatpush.msra.mxu0 %v1599
        %1631 = vmatpush.msra.mxu0 %v1598
        %1632 = vmatmul.f32.gmra.mxu0 %v1612
        %v1633 = vpop.f32.mrf.mxu0
        %v1634 = vadd.f32 %v1604, %v1633
        %1635 = vdwg.mxu0
        %1636 = vset.pattern.permute.xlu0 9
        %1637 = vperm.xlu0 %1636, %v259
        %v1638 = vpop.permute.xlu0 %1637
        %v1640 = vmul.f32 %v1638, %v1634
        %v1641 = vmul.f32 %v1640, 0.15915494
        %v1642 = vadd.f32 %v1641, 0.5
        %v1643 = vfloor.f32 %v1642
        %v1644 = vmul.f32 %v1643, 6.28125
        %v1645 = vsub.f32 %v1640, %v1644
        %v1646 = vmul.f32 %v1643, 0.0019353072
        %v1647 = vsub.f32 %v1645, %v1646
        %vm1648 = vcmp.gt.f32.partialorder %v1647, 1.5707964
        %v1649 = vsub.f32 3.1415927, %v1647
        %v1650 = vsel %vm1648, %v1649, %v1647
        %vm1651 = vcmp.lt.f32.partialorder %v1650, -1.5707964
        %v1652 = vsub.f32 -3.1415927, %v1650
        %v1653 = vsel %vm1651, %v1652, %v1650
        %v1654 = vmul.f32 %v1653, %v1653
        %v1655 = vmul.f32 %v1654, 2.5052108e-08
        %v1656 = vsub.f32 2.7557319e-06, %v1655
        %v1657 = vmul.f32 %v1654, %v1656
        %v1658 = vadd.f32 %v1657, -0.0001984127
        %v1659 = vmul.f32 %v1654, %v1658
        %v1660 = vadd.f32 %v1659, 0.008333334
        %v1661 = vmul.f32 %v1654, %v1660
        %v1662 = vadd.f32 %v1661, -0.16666667
        %v1663 = vmul.f32 %v1654, %v1662
        %v1664 = vadd.f32 %v1663, 1.0
        %v1665 = vmul.f32 %v1653, %v1664
        %v1666 = vmul.f32 %v1665, %v1665
        %1667 = vset.pattern.permute.xlu0 10
        %1668 = vperm.xlu0 %1667, %v259
        %v1669 = vpop.permute.xlu0 %1668
        %v1671 = vmul.f32 %v1669, %v1666
        %v1672 = vadd.f32 %v1634, %v1671
        %1673 = vset.pattern.permute.xlu0 15
        %1674 = vperm.xlu0 %1673, %v259
        %v1675 = vpop.permute.xlu0 %1674
        %1677 = vrot.lane.b32.xlu0 %v259, 117
        %v1678 = vpop.permute.xlu0 %1677
        %v1679 = vsel %vm1343, %v1678, 0
        %v1682 = vsel %vm327, %v1672, 0
        %1684 = vmatpush.msra.mxu0 0.0
        %1685 = vmatpush.msra.mxu0 0.0
        %1686 = vmatpush.msra.mxu0 0.0
        %1687 = vmatpush.msra.mxu0 0.0
        %1688 = vmatpush.msra.mxu0 0.0
        %1689 = vmatpush.msra.mxu0 0.0
        %1690 = vmatpush.msra.mxu0 0.0
        %1691 = vmatpush.msra.mxu0 0.0
        %1692 = vmatpush.msra.mxu0 0.0
        %1693 = vmatpush.msra.mxu0 0.0
        %1694 = vmatpush.msra.mxu0 0.0
        %1695 = vmatpush.msra.mxu0 0.0
        %1696 = vmatpush.msra.mxu0 0.0
        %1697 = vmatpush.msra.mxu0 0.0
        %1698 = vmatpush.msra.mxu0 0.0
        %1699 = vmatpush.msra.mxu0 %v1682
        %1700 = vmatmul.f32.gmra.mxu0 %v1679
        %v1701 = vpop.f32.mrf.mxu0
        %v1702 = vadd.f32 %v1675, %v1701
        %1703 = vdwg.mxu0
        %v1704 = vadd.f32 %v1534, %v1702
        %1705 = vset.pattern.permute.xlu0 16
        %1706 = vperm.xlu0 %1705, %v259
        %v1707 = vpop.permute.xlu0 %1706
        %v1709 = vmul.f32 %v1707, %v1704
        %v1710 = vmul.f32 %v1709, 0.15915494
        %v1711 = vadd.f32 %v1710, 0.5
        %v1712 = vfloor.f32 %v1711
        %v1713 = vmul.f32 %v1712, 6.28125
        %v1714 = vsub.f32 %v1709, %v1713
        %v1715 = vmul.f32 %v1712, 0.0019353072
        %v1716 = vsub.f32 %v1714, %v1715
        %vm1717 = vcmp.gt.f32.partialorder %v1716, 1.5707964
        %v1718 = vsub.f32 3.1415927, %v1716
        %v1719 = vsel %vm1717, %v1718, %v1716
        %vm1720 = vcmp.lt.f32.partialorder %v1719, -1.5707964
        %v1721 = vsub.f32 -3.1415927, %v1719
        %v1722 = vsel %vm1720, %v1721, %v1719
        %v1723 = vmul.f32 %v1722, %v1722
        %v1724 = vmul.f32 %v1723, 2.5052108e-08
        %v1725 = vsub.f32 2.7557319e-06, %v1724
        %v1726 = vmul.f32 %v1723, %v1725
        %v1727 = vadd.f32 %v1726, -0.0001984127
        %v1728 = vmul.f32 %v1723, %v1727
        %v1729 = vadd.f32 %v1728, 0.008333334
        %v1730 = vmul.f32 %v1723, %v1729
        %v1731 = vadd.f32 %v1730, -0.16666667
        %v1732 = vmul.f32 %v1723, %v1731
        %v1733 = vadd.f32 %v1732, 1.0
        %v1734 = vmul.f32 %v1722, %v1733
        %v1735 = vmul.f32 %v1734, %v1734
        %1736 = vset.pattern.permute.xlu0 17
        %1737 = vperm.xlu0 %1736, %v259
        %v1738 = vpop.permute.xlu0 %1737
        %v1740 = vmul.f32 %v1738, %v1735
        %v1741 = vadd.f32 %v1704, %v1740
        %1743 = vrot.lane.b32.xlu0 %v1741, 3
        %v1744 = vpop.permute.xlu0 %1743
        %v1746 = vsel %vm532, 0.0, %v1744
        %v1747 = vsel %vm1246, %v1746, 0.0
        %v1749 = vrot.slane %v1747, 4
        %1750 = vrot.lane.b32.xlu0 %v1749, 127
        %v1751 = vpop.permute.xlu0 %1750
        %1753 = vrot.lane.b32.xlu0 %v1747, 126
        %v1754 = vpop.permute.xlu0 %1753
        %1756 = vrot.lane.b32.xlu0 %v1749, 125
        %v1757 = vpop.permute.xlu0 %1756
        %1759 = vrot.lane.b32.xlu0 %v1747, 124
        %v1760 = vpop.permute.xlu0 %1759
        %1762 = vrot.lane.b32.xlu0 %v1749, 123
        %v1763 = vpop.permute.xlu0 %1762
        %1765 = vrot.lane.b32.xlu0 %v1747, 122
        %v1766 = vpop.permute.xlu0 %1765
        %v1767 = vsel %vm327, %v1747, %v1751
        %v1768 = vsel %vm327, %v1754, %v1757
        %v1769 = vsel %vm327, %v1760, %v1763
        %1770 = vrot.lane.b32.xlu0 %v259, 110
        %v1771 = vpop.permute.xlu0 %1770
        %v1772 = vsel %vm564, %v1771, 0
        %v1774 = vsel %vm327, %v1766, 0
        %1776 = vmatpush.msra.mxu0 0.0
        %1777 = vmatpush.msra.mxu0 0.0
        %1778 = vmatpush.msra.mxu0 0.0
        %1779 = vmatpush.msra.mxu0 0.0
        %1780 = vmatpush.msra.mxu0 0.0
        %1781 = vmatpush.msra.mxu0 0.0
        %1782 = vmatpush.msra.mxu0 0.0
        %1783 = vmatpush.msra.mxu0 0.0
        %1784 = vmatpush.msra.mxu0 0.0
        %1785 = vmatpush.msra.mxu0 0.0
        %1786 = vmatpush.msra.mxu0 0.0
        %1787 = vmatpush.msra.mxu0 0.0
        %1788 = vmatpush.msra.mxu0 %v1774
        %1789 = vmatpush.msra.mxu0 %v1769
        %1790 = vmatpush.msra.mxu0 %v1768
        %1791 = vmatpush.msra.mxu0 %v1767
        %1792 = vmatmul.f32.gmra.mxu0 %v1772
        %v1793 = vpop.f32.mrf.mxu0
        %v1794 = vadd.f32 0.0, %v1793
        %1795 = vdwg.mxu0
        %v1796 = vsub.f32 %v330, %v1794
        %v1797 = vmul.f32 %v1796, %v1796
        %vm1798 = vcmask 261120
        %v1799 = vsel %vm1798, %v1797, 0.0
        %1800 = vadd.xlane.f32.xlu0 %v1799
        %v1801 = vpop.xlane.xlu0 %1800
        %v1802 = vrot.slane %v1801, 4
        %v1803 = vadd.f32 %v1801, %v1802
        %v1804 = vrot.slane %v1803, 2
        %v1805 = vadd.f32 %v1803, %v1804
        %v1806 = vrot.slane %v1805, 1
        %v1807 = vadd.f32 %v1805, %v1806
        %v1809 = vrot.slane %v1794, 2
        %1810 = vrot.lane.b32.xlu0 %v1809, 32
        %v1811 = vpop.permute.xlu0 %1810
        %v1813 = vrot.slane %v1794, 4
        %1814 = vrot.lane.b32.xlu0 %v1813, 64
        %v1815 = vpop.permute.xlu0 %1814
        %v1817 = vrot.slane %v1794, 6
        %1818 = vrot.lane.b32.xlu0 %v1817, 96
        %v1819 = vpop.permute.xlu0 %1818
        %v1821 = vsel %vm1798, %v1794, %v1811
        %vm1822 = vcmask 523264
        %v1823 = vsel %vm1822, %v1821, %v1815
        %vm1824 = vcmask 785408
        %v1825 = vsel %vm1824, %v1823, %v1819
        %1826 = vmatpush.msra.mxu0 %v291
        %1827 = vmatpush.msra.mxu0 %v290
        %1828 = vmatpush.msra.mxu0 %v289
        %1829 = vmatpush.msra.mxu0 %v288
        %1830 = vmatpush.msra.mxu0 %v287
        %1831 = vmatpush.msra.mxu0 %v286
        %1832 = vmatpush.msra.mxu0 %v285
        %1833 = vmatpush.msra.mxu0 %v284
        %1834 = vmatpush.msra.mxu0 %v283
        %1835 = vmatpush.msra.mxu0 %v282
        %1836 = vmatpush.msra.mxu0 %v281
        %1837 = vmatpush.msra.mxu0 %v280
        %1838 = vmatpush.msra.mxu0 %v279
        %1839 = vmatpush.msra.mxu0 %v278
        %1840 = vmatpush.msra.mxu0 %v277
        %1841 = vmatpush.msra.mxu0 %v276
        %1842 = vmatmul.f32.gmra.mxu0 %v1825
        %v1843 = vpop.f32.mrf.mxu0
        %v1844 = vadd.f32 0.0, %v1843
        %1845 = vdwg.mxu0
        %v1846 = vsub.f32 %v255, %v1844
        %v1847 = vmul.f32 %v1846, %v1846
        %v1848 = vsel %vm325, %v1847, 0.0
        %1849 = vadd.xlane.f32.xlu0 %v1848
        %v1850 = vpop.xlane.xlu0 %1849
        %v1851 = vsel %vm325, %v1850, 0.0
        %v1852 = vrot.slane %v1851, 4
        %v1853 = vadd.f32 %v1851, %v1852
        %v1854 = vrot.slane %v1853, 2
        %v1855 = vadd.f32 %v1853, %v1854
        %v1856 = vrot.slane %v1855, 1
        %v1857 = vadd.f32 %v1855, %v1856
        %v1858 = vmax.f32 %v1844, -0.5
        %v1859 = vmin.f32 %v1858, 0.5
        %1860 = vst [vmem:[%s246] sm:$0x3] %v1859
        %v1861 = vlaneseq
        %v1862 = vand.u32 %v1861, 127
        %vm1863 = vcmp.eq.s32.totalorder %v1862, 0
        %v1864 = vsel %vm1863, 1, 0
        %v1865 = vcvt.s32.f32 %v1864
        %v1866 = vmul.f32 %v1857, %v1865
        %vm1867 = vcmp.eq.s32.totalorder %v1862, 1
        %v1868 = vsel %vm1867, 1, 0
        %v1869 = vcvt.s32.f32 %v1868
        %v1870 = vmul.f32 %v1807, %v1869
        %v1871 = vadd.f32 %v1866, %v1870
        %1872 = vst [vmem:[%s254] sm:$0x1] %v1871
        %s1873 = sand.u32 %s99, 1
        %s1874 = scalar_lea.sflag [#allocation4], %s1873
        %s1875 = sand.u32 %s99, 1
        %s1876 = smul.addr %s1875, 2
        %s1877 = scalar_lea.vmem [#allocation8], %s1876
        %p1878 = scmp.lt.s32.totalorder %s23, 1
        %s1879 = scalar_select %p1878, %s23, 1
        %s1880 = scalar_lea.vmem %s4, %s1879
        // Predicated region
        $region45: #{forward.1} parent=31 // pred_check
          %p1881 = pneg %p109
        $region46: #{forward.1} parent=31 // pred_check_branch
          %1883 = sbr.rel (%p1881) target = $region48
        $region47: #{forward.1} parent=31 // pred_region
          %1885 = vsyncadd %s1874, 0
          %s1886 = smul.addr %s23, 2
          %s1887 = scalar_lea.hbm %s3, %s1886
          %s1889 = sshll.u32 %s1877, 4
          %s1890 = int_to_ptr.vmem [resolvable:$true] %s1889
          %s1891 = sshll.u32 %s1887, 4
          %s1892 = int_to_ptr.hbm [resolvable:$true] %s1891
          %1894 = dma.vmem_to_hbm [thread:$0]  %s1890, 32, %s1892, %s1874
        $region48: #{forward.1} parent=31 // pred_fallthru
          _
        // Predicated region
        $region49: #{forward.1} parent=31 // pred_check
          %p1895 = pneg %p135
        $region50: #{forward.1} parent=31 // pred_check_branch
          %1897 = sbr.rel (%p1895) target = $region52
        $region51: #{forward.1} parent=31 // pred_region
          _
        $region52: #{forward.1} parent=31 // pred_fallthru
          _
      $region32: #{forward.1} parent=5 // pred_fallthru
        _
      %p1898 = scmp.le.s32.totalorder 2, %s18
      // Predicated region
      $region53: #{forward.1} parent=5 // pred_check
        %p1899 = pneg %p1898
      $region54: #{forward.1} parent=5 // pred_check_branch
        %1901 = sbr.rel (%p1899) target = $region56
      $region55: #{forward.1} parent=5 // pred_region
        %s1902 = ssub.s32 %s18, 2
        // Predicated region
        $region57: #{forward.1} parent=55 // pred_check
          %p1903 = pneg %p115
        $region58: #{forward.1} parent=55 // pred_check_branch
          %1905 = sbr.rel (%p1903) target = $region60
        $region59: #{forward.1} parent=55 // pred_region
          %s1906 = sand.u32 %s100, 1
          %s1907 = scalar_lea.sflag [#allocation4], %s1906
          %s1908 = sand.u32 %s100, 1
          %s1909 = smul.addr %s1908, 2
          %s1910 = scalar_lea.vmem [#allocation8], %s1909
          %1912 = dma.done %s1907, 32
        $region60: #{forward.1} parent=55 // pred_fallthru
          _
        // Predicated region
        $region61: #{forward.1} parent=55 // pred_check
          %p1913 = pneg %p141
        $region62: #{forward.1} parent=55 // pred_check_branch
          %1915 = sbr.rel (%p1913) target = $region64
        $region63: #{forward.1} parent=55 // pred_region
          %p1916 = scmp.lt.s32.totalorder %s24, 1
          %s1917 = scalar_select %p1916, %s24, 1
          %s1918 = scalar_lea.vmem %s4, %s1917
        $region64: #{forward.1} parent=55 // pred_fallthru
          _
      $region56: #{forward.1} parent=5 // pred_fallthru
        _
    $region6: #{forward.1} parent=1 // loop_footer
      %s22 = sadd.s32 1, %s18
    $region7: #{forward.1} parent=1 // loop_footer_branch
      %17 = sbr.rel target = $region3
    $region8: #{forward.1} parent=1 // loop_exit
      _
    %1919 = vsyncpa [#allocation3], 1
    %s1920 = scalar_lea.sflag [#allocation3], 1
    %1921 = vsyncpa %s1920, 1
    %1922 = vsyncpa [#allocation6], 1
    %1923 = vsyncpa [#allocation4], 1
    %s1924 = scalar_lea.sflag [#allocation4], 1
    %1925 = vsyncpa %s1924, 1

</llo_original>
